<compile_context>
chip_gen: v7x
topology: tpu7x:2x2x1
jax: 0.10.0
libtpu: 0.0.40
codegen_flags: <defaults>
</compile_context>

<pallas_src>
import jax
import jax.numpy as jnp
from jax.experimental import pallas as pl
from jax.experimental.pallas import tpu as pltpu


# ----------------------------------------------------------------------------
# Pallas kernels
# ----------------------------------------------------------------------------
def _round_up(x, m):
    return (x + m - 1) // m * m


def _matmul_act_kernel(slope=None, sigmoid=False):
    """Single-K-block matmul with fused (leaky-)ReLU / sigmoid epilogue."""
    def kernel(a_ref, b_ref, o_ref):
        r = jnp.dot(a_ref[...], b_ref[...], preferred_element_type=jnp.float32)
        if slope is not None:                         # leaky ReLU
            r = jnp.where(r >= 0, r, slope * r)
        if sigmoid:
            r = jax.nn.sigmoid(r)
        o_ref[...] = r.astype(o_ref.dtype)
    return kernel


def pallas_matmul_act(a, b, *, slope=None, sigmoid=False, tm=512):
    """C = act(A @ B).  A:(M,K) B:(K,N).  bf16 MXU inputs, f32 accumulate.

    K and N are left unpadded (full-dim blocks); only M is optionally padded
    up to a multiple of tm when M > tm and not divisible."""
    M, K = a.shape
    _, N = b.shape
    a = a.astype(jnp.bfloat16)
    b = b.astype(jnp.bfloat16)
    if M <= tm:
        tm_eff, Mp = M, M
    else:
        tm_eff = tm
        Mp = _round_up(M, tm_eff)
        if Mp != M:
            a = jnp.pad(a, ((0, Mp - M), (0, 0)))
    out = pl.pallas_call(
        _matmul_act_kernel(slope, sigmoid),
        out_shape=jax.ShapeDtypeStruct((Mp, N), jnp.float32),
        grid_spec=pltpu.PrefetchScalarGridSpec(
            num_scalar_prefetch=0,
            grid=(Mp // tm_eff,),
            in_specs=[pl.BlockSpec((tm_eff, K), lambda i: (i, 0)),
                      pl.BlockSpec((K, N), lambda i: (0, 0))],
            out_specs=pl.BlockSpec((tm_eff, N), lambda i: (i, 0))),
        compiler_params=pltpu.CompilerParams(
            dimension_semantics=("parallel",)),
    )(a, b)
    return out[:M] if Mp != M else out


def _matvec_act_kernel(slope=None, sigmoid=False):
    """A:(M,K) x b:(1,K) -> (M,1) via VPU multiply + lane reduce (Cout==1)."""
    def kernel(a_ref, b_ref, o_ref):
        r = jnp.sum(a_ref[...] * b_ref[...], axis=1, keepdims=True)
        if slope is not None:
            r = jnp.where(r >= 0, r, slope * r)
        if sigmoid:
            r = jax.nn.sigmoid(r)
        o_ref[...] = r.astype(o_ref.dtype)
    return kernel


def pallas_matvec_act(a, b, *, slope=None, sigmoid=False):
    M, K = a.shape
    a = a.astype(jnp.float32)
    b_row = b.reshape(1, K).astype(jnp.float32)
    return pl.pallas_call(
        _matvec_act_kernel(slope, sigmoid),
        out_shape=jax.ShapeDtypeStruct((M, 1), jnp.float32),
        grid_spec=pltpu.PrefetchScalarGridSpec(
            num_scalar_prefetch=0,
            grid=(1,),
            in_specs=[pl.BlockSpec((M, K), lambda i: (0, 0)),
                      pl.BlockSpec((1, K), lambda i: (0, 0))],
            out_specs=pl.BlockSpec((M, 1), lambda i: (0, 0))),
        compiler_params=pltpu.CompilerParams(
            dimension_semantics=("arbitrary",)),
    )(a, b_row)


def _conv_bn_lrelu_kernel(eps, slope):
    """Fused conv-matmul + training-mode BatchNorm (batch stats) + leakyReLU.

    Entire layer is one VMEM-resident block: y = A @ W, then per-channel
    mean/var over the M (=N*OH*OW) rows are computed in-kernel."""
    def kernel(a_ref, w_ref, g_ref, b_ref, o_ref):
        y = jnp.dot(a_ref[...], w_ref[...], preferred_element_type=jnp.float32)
        mean = jnp.mean(y, axis=0, keepdims=True)
        var = jnp.mean(jnp.square(y - mean), axis=0, keepdims=True)  # biased
        scale = g_ref[...] * jax.lax.rsqrt(var + eps)
        z = (y - mean) * scale + b_ref[...]
        o_ref[...] = jnp.where(z >= 0, z, slope * z).astype(o_ref.dtype)
    return kernel


def pallas_conv_bn_lrelu(a, w, gamma, beta, *, slope=0.2, eps=1e-5):
    """act(BN(A @ W)) in one pallas_call.  A:(M,K), W:(K,C).

    TODO(synk): assumes the whole (M,K) im2col block fits in VMEM (true at
    these model sizes); a tiled two-pass variant would be needed for very
    large activations."""
    M, K = a.shape
    C = w.shape[1]
    a = a.astype(jnp.bfloat16)
    w = w.astype(jnp.bfloat16)
    g = gamma.reshape(1, C).astype(jnp.float32)
    b = beta.reshape(1, C).astype(jnp.float32)
    return pl.pallas_call(
        _conv_bn_lrelu_kernel(eps, slope),
        out_shape=jax.ShapeDtypeStruct((M, C), jnp.float32),
        grid_spec=pltpu.PrefetchScalarGridSpec(
            num_scalar_prefetch=0,
            grid=(1,),
            in_specs=[pl.BlockSpec((M, K), lambda i: (0, 0)),
                      pl.BlockSpec((K, C), lambda i: (0, 0)),
                      pl.BlockSpec((1, C), lambda i: (0, 0)),
                      pl.BlockSpec((1, C), lambda i: (0, 0))],
            out_specs=pl.BlockSpec((M, C), lambda i: (0, 0))),
        compiler_params=pltpu.CompilerParams(
            dimension_semantics=("arbitrary",)),
    )(a, w, g, b)


# ----------------------------------------------------------------------------
# Conv layer = im2col (JAX glue) + Pallas matmul
# ----------------------------------------------------------------------------
def _im2col(x, kh, kw, sh, sw, ph, pw):
    """x: NHWC -> patches (N*OH*OW, kh*kw*C), plus output dims."""
    N, H, W, C = x.shape
    xp = jnp.pad(x, ((0, 0), (ph, ph), (pw, pw), (0, 0)))
    OH = (H + 2 * ph - kh) // sh + 1
    OW = (W + 2 * pw - kw) // sw + 1
    cols = []
    for i in range(kh):
        for j in range(kw):
            cols.append(xp[:, i:i + sh * OH:sh, j:j + sw * OW:sw, :])
    patches = jnp.stack(cols, axis=3)              # (N, OH, OW, kh*kw, C)
    return patches.reshape(N * OH * OW, kh * kw * C), (N, OH, OW)


def _w_to_mat(w_oihw):
    """PyTorch (O, I, kH, kW) -> (kH*kW*I, O), matching _im2col ordering."""
    Cout, Cin, KH, KW = w_oihw.shape
    return jnp.transpose(w_oihw, (2, 3, 1, 0)).reshape(KH * KW * Cin, Cout)


def _merged_conv1_weight(w1_oihw, w2_oihw):
    """Block-diagonal weight so that
       matmul(im2col(cat(img,lbl)), W) == cat(conv1_1(img), conv1_2(lbl))."""
    base, Cimg, KH, KW = w1_oihw.shape
    _, Clbl, _, _ = w2_oihw.shape
    w1_t = jnp.transpose(w1_oihw, (2, 3, 1, 0))      # (KH,KW,Cimg,base)
    w2_t = jnp.transpose(w2_oihw, (2, 3, 1, 0))      # (KH,KW,Clbl,base)
    blk = jnp.zeros((KH, KW, Cimg + Clbl, 2 * base), jnp.float32)
    blk = blk.at[:, :, :Cimg, :base].set(w1_t)
    blk = blk.at[:, :, Cimg:, base:].set(w2_t)
    return blk.reshape(KH * KW * (Cimg + Clbl), 2 * base)


def conv2d_act(x_nhwc, w_mat, kh, kw, stride, padding, *,
               slope=None, sigmoid=False, tm=512):
    """Conv (no bias) with fused activation; one pallas_call."""
    a, (N, OH, OW) = _im2col(x_nhwc, kh, kw, stride[0], stride[1],
                             padding[0], padding[1])
    Cout = w_mat.shape[1]
    if Cout == 1:
        y = pallas_matvec_act(a, w_mat, slope=slope, sigmoid=sigmoid)
    else:
        y = pallas_matmul_act(a, w_mat, slope=slope, sigmoid=sigmoid, tm=tm)
    return y.reshape(N, OH, OW, Cout)


def conv2d_bn_lrelu(x_nhwc, w_mat, gamma, beta, kh, kw, stride, padding, *,
                    slope=0.2, eps=1e-5):
    """Conv + training-mode BatchNorm2d + LeakyReLU fused in one pallas_call."""
    a, (N, OH, OW) = _im2col(x_nhwc, kh, kw, stride[0], stride[1],
                             padding[0], padding[1])
    Cout = w_mat.shape[1]
    y = pallas_conv_bn_lrelu(a, w_mat, gamma, beta, slope=slope, eps=eps)
    return y.reshape(N, OH, OW, Cout)


# ----------------------------------------------------------------------------
# Discriminator forward
# ----------------------------------------------------------------------------
def discriminator_forward(params, img_nchw, label_nchw):
    x = jnp.transpose(img_nchw, (0, 2, 3, 1))      # NCHW -> NHWC
    y = jnp.transpose(label_nchw, (0, 2, 3, 1))

    # conv1_1 / conv1_2 / channel-concat merged into one block-diagonal matmul
    xin = jnp.concatenate([x, y], axis=-1)
    w1 = _merged_conv1_weight(params["conv1_1"], params["conv1_2"])
    x = conv2d_act(xin, w1, 4, 4, (2, 2), (1, 1), slope=0.2, tm=512)

    # conv2 + BN + leaky ReLU(0.2), fully fused
    x = conv2d_bn_lrelu(x, _w_to_mat(params["conv2"]),
                        params["conv2_bn_g"], params["conv2_bn_b"],
                        4, 4, (2, 2), (1, 1), slope=0.2)

    # conv3 + BN + leaky ReLU(0.2), fully fused
    x = conv2d_bn_lrelu(x, _w_to_mat(params["conv3"]),
                        params["conv3_bn_g"], params["conv3_bn_b"],
                        4, 4, (2, 2), (1, 1), slope=0.2)

    # NOTE: conv4_bn is defined in __init__ but NOT used in forward;
    # leaky_relu here uses the PyTorch default slope 0.01.
    x = conv2d_act(x, _w_to_mat(params["conv4"]), 4, 4, (2, 2), (1, 1),
                   slope=0.01)

    x = conv2d_act(x, _w_to_mat(params["conv5"]), 4, 4, (1, 1), (0, 0),
                   slope=0.01)
    x = conv2d_act(x, _w_to_mat(params["conv6"]), 3, 1, (1, 1), (0, 0),
                   sigmoid=True)

    return jnp.transpose(x, (0, 3, 1, 2))          # NHWC -> NCHW


def init_params(key, num_img_channels, num_feature_vec_channels, base):
    ks = jax.random.split(key, 7)
    def w(k, shape):
        return (0.02 * jax.random.normal(k, shape)).astype(jnp.float32)
    return {
        "conv1_1": w(ks[0], (base, num_img_channels, 4, 4)),
        "conv1_2": w(ks[1], (base, num_feature_vec_channels, 4, 4)),
        "conv2":   w(ks[2], (base * 4, base * 2, 4, 4)),
        "conv2_bn_g": jnp.ones((base * 4,), jnp.float32),
        "conv2_bn_b": jnp.zeros((base * 4,), jnp.float32),
        "conv3":   w(ks[3], (base * 8, base * 4, 4, 4)),
        "conv3_bn_g": jnp.ones((base * 8,), jnp.float32),
        "conv3_bn_b": jnp.zeros((base * 8,), jnp.float32),
        "conv4":   w(ks[4], (base * 16, base * 8, 4, 4)),
        "conv5":   w(ks[5], (1, base * 16, 4, 4)),
        "conv6":   w(ks[6], (1, 1, 3, 1)),
    }


if __name__ == "__main__":
    key = jax.random.PRNGKey(0)
    k_p, k_img, k_lbl = jax.random.split(key, 3)

    # Small config: base_num_out_channels=4, 3 image channels, 2 label channels.
    # Spatial 96x64 -> after 4 stride-2 convs: 6x4 -> conv5(4x4): 3x1 ->
    # conv6(3x1): 1x1.
    NUM_IMG_CH, NUM_FEAT_CH, BASE = 3, 2, 4
    N, H, W = 2, 96, 64

    params = init_params(k_p, NUM_IMG_CH, NUM_FEAT_CH, BASE)
    img = jax.random.normal(k_img, (N, NUM_IMG_CH, H, W), jnp.float32)
    lbl = jax.random.normal(k_lbl, (N, NUM_FEAT_CH, H, W), jnp.float32)

    fwd = jax.jit(discriminator_forward)
    out = jax.block_until_ready(fwd(params, img, lbl))

    assert out.shape == (N, 1, 1, 1), out.shape
    assert bool(jnp.all(jnp.isfinite(out)))
    assert bool(jnp.all((out > 0.0) & (out < 1.0)))   # sigmoid output range
    print("KERNEL_OK")
</pallas_src>

<mosaic_0001>
module attributes {stable_mosaic.version = 11 : i64} {
  func.func @kernel(%arg0: i32, %arg1: memref<512x80xbf16, #tpu.memory_space<vmem>>, %arg2: memref<80x8xbf16, #tpu.memory_space<vmem>>, %arg3: memref<512x8xf32, #tpu.memory_space<vmem>>) attributes {dimension_semantics = [#tpu.dimension_semantics<parallel>], iteration_bounds = array<i64: 6>, scalar_prefetch = 0 : i64, scratch_operands = 0 : i64, tpu.core_type = #tpu.core_type<tc>, window_params = [{transform_indices = @transform_0, window_bounds = array<i64: 512, 80>}, {pipeline_mode = #tpu.pipeline_mode<synchronous>, transform_indices = @transform_1, window_bounds = array<i64: 80, 8>}, {transform_indices = @transform_2, window_bounds = array<i64: 512, 8>}]} {
    %c0 = arith.constant 0 : index
    %c0_0 = arith.constant 0 : index
    %0 = vector.load %arg1[%c0, %c0_0] : memref<512x80xbf16, #tpu.memory_space<vmem>>, vector<512x80xbf16>
    %c0_1 = arith.constant 0 : index
    %c0_2 = arith.constant 0 : index
    %1 = vector.load %arg2[%c0_1, %c0_2] : memref<80x8xbf16, #tpu.memory_space<vmem>>, vector<80x8xbf16>
    %cst = arith.constant dense<0.000000e+00> : vector<512x8xf32>
    %2 = tpu.matmul %0, %1, %cst {dimension_numbers = #tpu.dot_dimension_numbers<[1], [0], [0], [1], [0, 0, 1, 1], [], []>} : vector<512x80xbf16>, vector<80x8xbf16>, vector<512x8xf32> -> vector<512x8xf32>
    %cst_3 = arith.constant 0.000000e+00 : f32
    %3 = vector.broadcast %cst_3 : f32 to vector<512x8xf32>
    %4 = arith.cmpf oge, %2, %3 : vector<512x8xf32>
    %cst_4 = arith.constant 2.000000e-01 : f32
    %5 = vector.broadcast %cst_4 : f32 to vector<512x8xf32>
    %6 = arith.mulf %5, %2 : vector<512x8xf32>
    %7 = arith.select %4, %2, %6 : vector<512x8xi1>, vector<512x8xf32>
    %c0_5 = arith.constant 0 : index
    %c0_6 = arith.constant 0 : index
    %8 = vector.load %arg3[%c0_5, %c0_6] : memref<512x8xf32, #tpu.memory_space<vmem>>, vector<512x8xf32>
    tpu.vector_store %arg3[%c0_5, %c0_6], %7 {strides = array<i32>} : memref<512x8xf32, #tpu.memory_space<vmem>>, vector<512x8xf32>,
    return
  }
  func.func @transform_0(%arg0: i32) -> (i32, i32) {
    %c0_i32 = arith.constant 0 : i32
    %c0_i32_0 = arith.constant 0 : i32
    return %arg0, %c0_i32 : i32, i32
  }
  func.func @transform_1(%arg0: i32) -> (i32, i32) {
    %c0_i32 = arith.constant 0 : i32
    %c0_i32_0 = arith.constant 0 : i32
    %c0_i32_1 = arith.constant 0 : i32
    return %c0_i32, %c0_i32_0 : i32, i32
  }
  func.func @transform_2(%arg0: i32) -> (i32, i32) {
    %c0_i32 = arith.constant 0 : i32
    %c0_i32_0 = arith.constant 0 : i32
    return %arg0, %c0_i32 : i32, i32
  }
}

module attributes {stable_mosaic.version = 11 : i64} {
  func.func @kernel(%arg0: i32, %arg1: memref<768x128xbf16, #tpu.memory_space<vmem>>, %arg2: memref<128x16xbf16, #tpu.memory_space<vmem>>, %arg3: memref<1x16xf32, #tpu.memory_space<vmem>>, %arg4: memref<1x16xf32, #tpu.memory_space<vmem>>, %arg5: memref<768x16xf32, #tpu.memory_space<vmem>>) attributes {dimension_semantics = [#tpu.dimension_semantics<arbitrary>], iteration_bounds = array<i64: 1>, scalar_prefetch = 0 : i64, scratch_operands = 0 : i64, tpu.core_type = #tpu.core_type<tc>, window_params = [{pipeline_mode = #tpu.pipeline_mode<synchronous>, transform_indices = @transform_0, window_bounds = array<i64: 768, 128>}, {pipeline_mode = #tpu.pipeline_mode<synchronous>, transform_indices = @transform_1, window_bounds = array<i64: 128, 16>}, {pipeline_mode = #tpu.pipeline_mode<synchronous>, transform_indices = @transform_2, window_bounds = array<i64: 1, 16>}, {pipeline_mode = #tpu.pipeline_mode<synchronous>, transform_indices = @transform_3, window_bounds = array<i64: 1, 16>}, {pipeline_mode = #tpu.pipeline_mode<synchronous>, transform_indices = @transform_4, window_bounds = array<i64: 768, 16>}]} {
    %c0 = arith.constant 0 : index
    %c0_0 = arith.constant 0 : index
    %0 = vector.load %arg1[%c0, %c0_0] : memref<768x128xbf16, #tpu.memory_space<vmem>>, vector<768x128xbf16>
    %c0_1 = arith.constant 0 : index
    %c0_2 = arith.constant 0 : index
    %1 = vector.load %arg2[%c0_1, %c0_2] : memref<128x16xbf16, #tpu.memory_space<vmem>>, vector<128x16xbf16>
    %cst = arith.constant dense<0.000000e+00> : vector<768x16xf32>
    %2 = tpu.matmul %0, %1, %cst {dimension_numbers = #tpu.dot_dimension_numbers<[1], [0], [0], [1], [0, 0, 1, 1], [], []>} : vector<768x128xbf16>, vector<128x16xbf16>, vector<768x16xf32> -> vector<768x16xf32>
    %cst_3 = arith.constant dense<0.000000e+00> : vector<16xf32>
    %3 = vector.multi_reduction <add>, %2, %cst_3 [0] : vector<768x16xf32> to vector<16xf32>
    %4 = vector.shape_cast %3 : vector<16xf32> to vector<1x16xf32>
    %cst_4 = arith.constant 7.680000e+02 : f32
    %5 = vector.broadcast %cst_4 : f32 to vector<1x16xf32>
    %6 = arith.divf %4, %5 : vector<1x16xf32>
    %7 = vector.broadcast %6 : vector<1x16xf32> to vector<768x16xf32>
    %8 = arith.subf %2, %7 : vector<768x16xf32>
    %9 = arith.mulf %8, %8 : vector<768x16xf32>
    %cst_5 = arith.constant dense<0.000000e+00> : vector<16xf32>
    %10 = vector.multi_reduction <add>, %9, %cst_5 [0] : vector<768x16xf32> to vector<16xf32>
    %11 = vector.shape_cast %10 : vector<16xf32> to vector<1x16xf32>
    %cst_6 = arith.constant 7.680000e+02 : f32
    %12 = vector.broadcast %cst_6 : f32 to vector<1x16xf32>
    %13 = arith.divf %11, %12 : vector<1x16xf32>
    %c0_7 = arith.constant 0 : index
    %c0_8 = arith.constant 0 : index
    %14 = vector.load %arg3[%c0_7, %c0_8] : memref<1x16xf32, #tpu.memory_space<vmem>>, vector<1x16xf32>
    %cst_9 = arith.constant 9.99999974E-6 : f32
    %15 = vector.broadcast %cst_9 : f32 to vector<1x16xf32>
    %16 = arith.addf %13, %15 : vector<1x16xf32>
    %17 = math.rsqrt %16 : vector<1x16xf32>
    %18 = arith.mulf %14, %17 : vector<1x16xf32>
    %19 = vector.broadcast %6 : vector<1x16xf32> to vector<768x16xf32>
    %20 = arith.subf %2, %19 : vector<768x16xf32>
    %21 = vector.broadcast %18 : vector<1x16xf32> to vector<768x16xf32>
    %22 = arith.mulf %20, %21 : vector<768x16xf32>
    %c0_10 = arith.constant 0 : index
    %c0_11 = arith.constant 0 : index
    %23 = vector.load %arg4[%c0_10, %c0_11] : memref<1x16xf32, #tpu.memory_space<vmem>>, vector<1x16xf32>
    %24 = vector.broadcast %23 : vector<1x16xf32> to vector<768x16xf32>
    %25 = arith.addf %22, %24 : vector<768x16xf32>
    %cst_12 = arith.constant 0.000000e+00 : f32
    %26 = vector.broadcast %cst_12 : f32 to vector<768x16xf32>
    %27 = arith.cmpf oge, %25, %26 : vector<768x16xf32>
    %cst_13 = arith.constant 2.000000e-01 : f32
    %28 = vector.broadcast %cst_13 : f32 to vector<768x16xf32>
    %29 = arith.mulf %28, %25 : vector<768x16xf32>
    %30 = arith.select %27, %25, %29 : vector<768x16xi1>, vector<768x16xf32>
    %c0_14 = arith.constant 0 : index
    %c0_15 = arith.constant 0 : index
    %31 = vector.load %arg5[%c0_14, %c0_15] : memref<768x16xf32, #tpu.memory_space<vmem>>, vector<768x16xf32>
    tpu.vector_store %arg5[%c0_14, %c0_15], %30 {strides = array<i32>} : memref<768x16xf32, #tpu.memory_space<vmem>>, vector<768x16xf32>,
    return
  }
  func.func @transform_0(%arg0: i32) -> (i32, i32) {
    %c0_i32 = arith.constant 0 : i32
    %c0_i32_0 = arith.constant 0 : i32
    %c0_i32_1 = arith.constant 0 : i32
    return %c0_i32, %c0_i32_0 : i32, i32
  }
  func.func @transform_1(%arg0: i32) -> (i32, i32) {
    %c0_i32 = arith.constant 0 : i32
    %c0_i32_0 = arith.constant 0 : i32
    %c0_i32_1 = arith.constant 0 : i32
    return %c0_i32, %c0_i32_0 : i32, i32
  }
  func.func @transform_2(%arg0: i32) -> (i32, i32) {
    %c0_i32 = arith.constant 0 : i32
    %c0_i32_0 = arith.constant 0 : i32
    %c0_i32_1 = arith.constant 0 : i32
    return %c0_i32, %c0_i32_0 : i32, i32
  }
  func.func @transform_3(%arg0: i32) -> (i32, i32) {
    %c0_i32 = arith.constant 0 : i32
    %c0_i32_0 = arith.constant 0 : i32
    %c0_i32_1 = arith.constant 0 : i32
    return %c0_i32, %c0_i32_0 : i32, i32
  }
  func.func @transform_4(%arg0: i32) -> (i32, i32) {
    %c0_i32 = arith.constant 0 : i32
    %c0_i32_0 = arith.constant 0 : i32
    %c0_i32_1 = arith.constant 0 : i32
    return %c0_i32, %c0_i32_0 : i32, i32
  }
}

module attributes {stable_mosaic.version = 11 : i64} {
  func.func @kernel(%arg0: i32, %arg1: memref<192x256xbf16, #tpu.memory_space<vmem>>, %arg2: memref<256x32xbf16, #tpu.memory_space<vmem>>, %arg3: memref<1x32xf32, #tpu.memory_space<vmem>>, %arg4: memref<1x32xf32, #tpu.memory_space<vmem>>, %arg5: memref<192x32xf32, #tpu.memory_space<vmem>>) attributes {dimension_semantics = [#tpu.dimension_semantics<arbitrary>], iteration_bounds = array<i64: 1>, scalar_prefetch = 0 : i64, scratch_operands = 0 : i64, tpu.core_type = #tpu.core_type<tc>, window_params = [{pipeline_mode = #tpu.pipeline_mode<synchronous>, transform_indices = @transform_0, window_bounds = array<i64: 192, 256>}, {pipeline_mode = #tpu.pipeline_mode<synchronous>, transform_indices = @transform_1, window_bounds = array<i64: 256, 32>}, {pipeline_mode = #tpu.pipeline_mode<synchronous>, transform_indices = @transform_2, window_bounds = array<i64: 1, 32>}, {pipeline_mode = #tpu.pipeline_mode<synchronous>, transform_indices = @transform_3, window_bounds = array<i64: 1, 32>}, {pipeline_mode = #tpu.pipeline_mode<synchronous>, transform_indices = @transform_4, window_bounds = array<i64: 192, 32>}]} {
    %c0 = arith.constant 0 : index
    %c0_0 = arith.constant 0 : index
    %0 = vector.load %arg1[%c0, %c0_0] : memref<192x256xbf16, #tpu.memory_space<vmem>>, vector<192x256xbf16>
    %c0_1 = arith.constant 0 : index
    %c0_2 = arith.constant 0 : index
    %1 = vector.load %arg2[%c0_1, %c0_2] : memref<256x32xbf16, #tpu.memory_space<vmem>>, vector<256x32xbf16>
    %cst = arith.constant dense<0.000000e+00> : vector<192x32xf32>
    %2 = tpu.matmul %0, %1, %cst {dimension_numbers = #tpu.dot_dimension_numbers<[1], [0], [0], [1], [0, 0, 1, 1], [], []>} : vector<192x256xbf16>, vector<256x32xbf16>, vector<192x32xf32> -> vector<192x32xf32>
    %cst_3 = arith.constant dense<0.000000e+00> : vector<32xf32>
    %3 = vector.multi_reduction <add>, %2, %cst_3 [0] : vector<192x32xf32> to vector<32xf32>
    %4 = vector.shape_cast %3 : vector<32xf32> to vector<1x32xf32>
    %cst_4 = arith.constant 1.920000e+02 : f32
    %5 = vector.broadcast %cst_4 : f32 to vector<1x32xf32>
    %6 = arith.divf %4, %5 : vector<1x32xf32>
    %7 = vector.broadcast %6 : vector<1x32xf32> to vector<192x32xf32>
    %8 = arith.subf %2, %7 : vector<192x32xf32>
    %9 = arith.mulf %8, %8 : vector<192x32xf32>
    %cst_5 = arith.constant dense<0.000000e+00> : vector<32xf32>
    %10 = vector.multi_reduction <add>, %9, %cst_5 [0] : vector<192x32xf32> to vector<32xf32>
    %11 = vector.shape_cast %10 : vector<32xf32> to vector<1x32xf32>
    %cst_6 = arith.constant 1.920000e+02 : f32
    %12 = vector.broadcast %cst_6 : f32 to vector<1x32xf32>
    %13 = arith.divf %11, %12 : vector<1x32xf32>
    %c0_7 = arith.constant 0 : index
    %c0_8 = arith.constant 0 : index
    %14 = vector.load %arg3[%c0_7, %c0_8] : memref<1x32xf32, #tpu.memory_space<vmem>>, vector<1x32xf32>
    %cst_9 = arith.constant 9.99999974E-6 : f32
    %15 = vector.broadcast %cst_9 : f32 to vector<1x32xf32>
    %16 = arith.addf %13, %15 : vector<1x32xf32>
    %17 = math.rsqrt %16 : vector<1x32xf32>
    %18 = arith.mulf %14, %17 : vector<1x32xf32>
    %19 = vector.broadcast %6 : vector<1x32xf32> to vector<192x32xf32>
    %20 = arith.subf %2, %19 : vector<192x32xf32>
    %21 = vector.broadcast %18 : vector<1x32xf32> to vector<192x32xf32>
    %22 = arith.mulf %20, %21 : vector<192x32xf32>
    %c0_10 = arith.constant 0 : index
    %c0_11 = arith.constant 0 : index
    %23 = vector.load %arg4[%c0_10, %c0_11] : memref<1x32xf32, #tpu.memory_space<vmem>>, vector<1x32xf32>
    %24 = vector.broadcast %23 : vector<1x32xf32> to vector<192x32xf32>
    %25 = arith.addf %22, %24 : vector<192x32xf32>
    %cst_12 = arith.constant 0.000000e+00 : f32
    %26 = vector.broadcast %cst_12 : f32 to vector<192x32xf32>
    %27 = arith.cmpf oge, %25, %26 : vector<192x32xf32>
    %cst_13 = arith.constant 2.000000e-01 : f32
    %28 = vector.broadcast %cst_13 : f32 to vector<192x32xf32>
    %29 = arith.mulf %28, %25 : vector<192x32xf32>
    %30 = arith.select %27, %25, %29 : vector<192x32xi1>, vector<192x32xf32>
    %c0_14 = arith.constant 0 : index
    %c0_15 = arith.constant 0 : index
    %31 = vector.load %arg5[%c0_14, %c0_15] : memref<192x32xf32, #tpu.memory_space<vmem>>, vector<192x32xf32>
    tpu.vector_store %arg5[%c0_14, %c0_15], %30 {strides = array<i32>} : memref<192x32xf32, #tpu.memory_space<vmem>>, vector<192x32xf32>,
    return
  }
  func.func @transform_0(%arg0: i32) -> (i32, i32) {
    %c0_i32 = arith.constant 0 : i32
    %c0_i32_0 = arith.constant 0 : i32
    %c0_i32_1 = arith.constant 0 : i32
    return %c0_i32, %c0_i32_0 : i32, i32
  }
  func.func @transform_1(%arg0: i32) -> (i32, i32) {
    %c0_i32 = arith.constant 0 : i32
    %c0_i32_0 = arith.constant 0 : i32
    %c0_i32_1 = arith.constant 0 : i32
    return %c0_i32, %c0_i32_0 : i32, i32
  }
  func.func @transform_2(%arg0: i32) -> (i32, i32) {
    %c0_i32 = arith.constant 0 : i32
    %c0_i32_0 = arith.constant 0 : i32
    %c0_i32_1 = arith.constant 0 : i32
    return %c0_i32, %c0_i32_0 : i32, i32
  }
  func.func @transform_3(%arg0: i32) -> (i32, i32) {
    %c0_i32 = arith.constant 0 : i32
    %c0_i32_0 = arith.constant 0 : i32
    %c0_i32_1 = arith.constant 0 : i32
    return %c0_i32, %c0_i32_0 : i32, i32
  }
  func.func @transform_4(%arg0: i32) -> (i32, i32) {
    %c0_i32 = arith.constant 0 : i32
    %c0_i32_0 = arith.constant 0 : i32
    %c0_i32_1 = arith.constant 0 : i32
    return %c0_i32, %c0_i32_0 : i32, i32
  }
}

module attributes {stable_mosaic.version = 11 : i64} {
  func.func @kernel(%arg0: i32, %arg1: memref<48x512xbf16, #tpu.memory_space<vmem>>, %arg2: memref<512x64xbf16, #tpu.memory_space<vmem>>, %arg3: memref<48x64xf32, #tpu.memory_space<vmem>>) attributes {dimension_semantics = [#tpu.dimension_semantics<parallel>], iteration_bounds = array<i64: 1>, scalar_prefetch = 0 : i64, scratch_operands = 0 : i64, tpu.core_type = #tpu.core_type<tc>, window_params = [{transform_indices = @transform_0, window_bounds = array<i64: 48, 512>}, {pipeline_mode = #tpu.pipeline_mode<synchronous>, transform_indices = @transform_1, window_bounds = array<i64: 512, 64>}, {transform_indices = @transform_2, window_bounds = array<i64: 48, 64>}]} {
    %c0 = arith.constant 0 : index
    %c0_0 = arith.constant 0 : index
    %0 = vector.load %arg1[%c0, %c0_0] : memref<48x512xbf16, #tpu.memory_space<vmem>>, vector<48x512xbf16>
    %c0_1 = arith.constant 0 : index
    %c0_2 = arith.constant 0 : index
    %1 = vector.load %arg2[%c0_1, %c0_2] : memref<512x64xbf16, #tpu.memory_space<vmem>>, vector<512x64xbf16>
    %cst = arith.constant dense<0.000000e+00> : vector<48x64xf32>
    %2 = tpu.matmul %0, %1, %cst {dimension_numbers = #tpu.dot_dimension_numbers<[1], [0], [0], [1], [0, 0, 1, 1], [], []>} : vector<48x512xbf16>, vector<512x64xbf16>, vector<48x64xf32> -> vector<48x64xf32>
    %cst_3 = arith.constant 0.000000e+00 : f32
    %3 = vector.broadcast %cst_3 : f32 to vector<48x64xf32>
    %4 = arith.cmpf oge, %2, %3 : vector<48x64xf32>
    %cst_4 = arith.constant 0.00999999977 : f32
    %5 = vector.broadcast %cst_4 : f32 to vector<48x64xf32>
    %6 = arith.mulf %5, %2 : vector<48x64xf32>
    %7 = arith.select %4, %2, %6 : vector<48x64xi1>, vector<48x64xf32>
    %c0_5 = arith.constant 0 : index
    %c0_6 = arith.constant 0 : index
    %8 = vector.load %arg3[%c0_5, %c0_6] : memref<48x64xf32, #tpu.memory_space<vmem>>, vector<48x64xf32>
    tpu.vector_store %arg3[%c0_5, %c0_6], %7 {strides = array<i32>} : memref<48x64xf32, #tpu.memory_space<vmem>>, vector<48x64xf32>,
    return
  }
  func.func @transform_0(%arg0: i32) -> (i32, i32) {
    %c0_i32 = arith.constant 0 : i32
    %c0_i32_0 = arith.constant 0 : i32
    return %arg0, %c0_i32 : i32, i32
  }
  func.func @transform_1(%arg0: i32) -> (i32, i32) {
    %c0_i32 = arith.constant 0 : i32
    %c0_i32_0 = arith.constant 0 : i32
    %c0_i32_1 = arith.constant 0 : i32
    return %c0_i32, %c0_i32_0 : i32, i32
  }
  func.func @transform_2(%arg0: i32) -> (i32, i32) {
    %c0_i32 = arith.constant 0 : i32
    %c0_i32_0 = arith.constant 0 : i32
    return %arg0, %c0_i32 : i32, i32
  }
}

module attributes {stable_mosaic.version = 11 : i64} {
  func.func @kernel(%arg0: i32, %arg1: memref<6x1024xf32, #tpu.memory_space<vmem>>, %arg2: memref<1x1024xf32, #tpu.memory_space<vmem>>, %arg3: memref<6x1xf32, #tpu.memory_space<vmem>>) attributes {dimension_semantics = [#tpu.dimension_semantics<arbitrary>], iteration_bounds = array<i64: 1>, scalar_prefetch = 0 : i64, scratch_operands = 0 : i64, tpu.core_type = #tpu.core_type<tc>, window_params = [{pipeline_mode = #tpu.pipeline_mode<synchronous>, transform_indices = @transform_0, window_bounds = array<i64: 6, 1024>}, {pipeline_mode = #tpu.pipeline_mode<synchronous>, transform_indices = @transform_1, window_bounds = array<i64: 1, 1024>}, {pipeline_mode = #tpu.pipeline_mode<synchronous>, transform_indices = @transform_2, window_bounds = array<i64: 6, 1>}]} {
    %c0 = arith.constant 0 : index
    %c0_0 = arith.constant 0 : index
    %0 = vector.load %arg1[%c0, %c0_0] : memref<6x1024xf32, #tpu.memory_space<vmem>>, vector<6x1024xf32>
    %c0_1 = arith.constant 0 : index
    %c0_2 = arith.constant 0 : index
    %1 = vector.load %arg2[%c0_1, %c0_2] : memref<1x1024xf32, #tpu.memory_space<vmem>>, vector<1x1024xf32>
    %2 = vector.broadcast %1 : vector<1x1024xf32> to vector<6x1024xf32>
    %3 = arith.mulf %0, %2 : vector<6x1024xf32>
    %cst = arith.constant dense<0.000000e+00> : vector<6xf32>
    %4 = vector.multi_reduction <add>, %3, %cst [1] : vector<6x1024xf32> to vector<6xf32>
    %5 = vector.shape_cast %4 : vector<6xf32> to vector<6x1xf32>
    %cst_3 = arith.constant 0.000000e+00 : f32
    %6 = vector.broadcast %cst_3 : f32 to vector<6x1xf32>
    %7 = arith.cmpf oge, %5, %6 : vector<6x1xf32>
    %cst_4 = arith.constant 0.00999999977 : f32
    %8 = vector.broadcast %cst_4 : f32 to vector<6x1xf32>
    %9 = arith.mulf %8, %5 : vector<6x1xf32>
    %10 = arith.select %7, %5, %9 : vector<6x1xi1>, vector<6x1xf32>
    %c0_5 = arith.constant 0 : index
    %c0_6 = arith.constant 0 : index
    %11 = vector.load %arg3[%c0_5, %c0_6] : memref<6x1xf32, #tpu.memory_space<vmem>>, vector<6x1xf32>
    tpu.vector_store %arg3[%c0_5, %c0_6], %10 {strides = array<i32>} : memref<6x1xf32, #tpu.memory_space<vmem>>, vector<6x1xf32>,
    return
  }
  func.func @transform_0(%arg0: i32) -> (i32, i32) {
    %c0_i32 = arith.constant 0 : i32
    %c0_i32_0 = arith.constant 0 : i32
    %c0_i32_1 = arith.constant 0 : i32
    return %c0_i32, %c0_i32_0 : i32, i32
  }
  func.func @transform_1(%arg0: i32) -> (i32, i32) {
    %c0_i32 = arith.constant 0 : i32
    %c0_i32_0 = arith.constant 0 : i32
    %c0_i32_1 = arith.constant 0 : i32
    return %c0_i32, %c0_i32_0 : i32, i32
  }
  func.func @transform_2(%arg0: i32) -> (i32, i32) {
    %c0_i32 = arith.constant 0 : i32
    %c0_i32_0 = arith.constant 0 : i32
    %c0_i32_1 = arith.constant 0 : i32
    return %c0_i32, %c0_i32_0 : i32, i32
  }
}

module attributes {stable_mosaic.version = 11 : i64} {
  func.func @kernel(%arg0: i32, %arg1: memref<2x3xf32, #tpu.memory_space<vmem>>, %arg2: memref<1x3xf32, #tpu.memory_space<vmem>>, %arg3: memref<2x1xf32, #tpu.memory_space<vmem>>) attributes {dimension_semantics = [#tpu.dimension_semantics<arbitrary>], iteration_bounds = array<i64: 1>, scalar_prefetch = 0 : i64, scratch_operands = 0 : i64, tpu.core_type = #tpu.core_type<tc>, window_params = [{pipeline_mode = #tpu.pipeline_mode<synchronous>, transform_indices = @transform_0, window_bounds = array<i64: 2, 3>}, {pipeline_mode = #tpu.pipeline_mode<synchronous>, transform_indices = @transform_1, window_bounds = array<i64: 1, 3>}, {pipeline_mode = #tpu.pipeline_mode<synchronous>, transform_indices = @transform_2, window_bounds = array<i64: 2, 1>}]} {
    %c0 = arith.constant 0 : index
    %c0_0 = arith.constant 0 : index
    %0 = vector.load %arg1[%c0, %c0_0] : memref<2x3xf32, #tpu.memory_space<vmem>>, vector<2x3xf32>
    %c0_1 = arith.constant 0 : index
    %c0_2 = arith.constant 0 : index
    %1 = vector.load %arg2[%c0_1, %c0_2] : memref<1x3xf32, #tpu.memory_space<vmem>>, vector<1x3xf32>
    %2 = vector.broadcast %1 : vector<1x3xf32> to vector<2x3xf32>
    %3 = arith.mulf %0, %2 : vector<2x3xf32>
    %cst = arith.constant dense<0.000000e+00> : vector<2xf32>
    %4 = vector.multi_reduction <add>, %3, %cst [1] : vector<2x3xf32> to vector<2xf32>
    %5 = vector.shape_cast %4 : vector<2xf32> to vector<2x1xf32>
    %6 = arith.negf %5 : vector<2x1xf32>
    %7 = math.exp %6 : vector<2x1xf32>
    %cst_3 = arith.constant 1.000000e+00 : f32
    %8 = vector.broadcast %cst_3 : f32 to vector<2x1xf32>
    %9 = arith.addf %8, %7 : vector<2x1xf32>
    %10 = arith.divf %8, %9 : vector<2x1xf32>
    %c0_4 = arith.constant 0 : index
    %c0_5 = arith.constant 0 : index
    %11 = vector.load %arg3[%c0_4, %c0_5] : memref<2x1xf32, #tpu.memory_space<vmem>>, vector<2x1xf32>
    tpu.vector_store %arg3[%c0_4, %c0_5], %10 {strides = array<i32>} : memref<2x1xf32, #tpu.memory_space<vmem>>, vector<2x1xf32>,
    return
  }
  func.func @transform_0(%arg0: i32) -> (i32, i32) {
    %c0_i32 = arith.constant 0 : i32
    %c0_i32_0 = arith.constant 0 : i32
    %c0_i32_1 = arith.constant 0 : i32
    return %c0_i32, %c0_i32_0 : i32, i32
  }
  func.func @transform_1(%arg0: i32) -> (i32, i32) {
    %c0_i32 = arith.constant 0 : i32
    %c0_i32_0 = arith.constant 0 : i32
    %c0_i32_1 = arith.constant 0 : i32
    return %c0_i32, %c0_i32_0 : i32, i32
  }
  func.func @transform_2(%arg0: i32) -> (i32, i32) {
    %c0_i32 = arith.constant 0 : i32
    %c0_i32_0 = arith.constant 0 : i32
    %c0_i32_1 = arith.constant 0 : i32
    return %c0_i32, %c0_i32_0 : i32, i32
  }
}

</mosaic_0001>

<llo_original>
// kernel: discriminator_forward.6
$region0: #{discriminator_forward.6}
  #allocation0 [shape = 'u32[]', space=smem, size = 0x4, offset = 0x4, fixed_abs, tag = 'smem constant byte address 0x4 - core index']
  #allocation1 [shape = 'u32[144,128]{1,0:T(1,128)}', space=vmem, size = 0x12000, scoped, tag = 'internal scratch']
  %s0 = inlined_call_operand.vmem [shape: bf16[3072,80], index: 0, kind: input, shape index: {}]
  %s1 = inlined_call_operand.vmem [shape: bf16[80,8], index: 1, kind: input, shape index: {}]
  %s2 = inlined_call_operand.vmem [shape: f32[3072,8], index: 2, kind: output, shape index: {}]
  %s3 = sld [smem:[#allocation0]]
  $region41: #{discriminator_forward.6} parent=0
    _
  %s5 = ssub.s32 1, %s3
  %s6 = scalar_select 0, %s5, %s3
  loop: start=0, step=1, limit=8
  $region2: #{discriminator_forward.6} parent=0 // loop_pre_header
    _
  $region3: #{discriminator_forward.6} parent=0 // loop_header
    %s8 = sphi 0, %s12
    %p9 = scmp.ge.s32.totalorder %s8, 8
    %s18 = sphi 0, %s20
    %s21 = sphi 0, %s18
    %s22 = sphi 0, %s21
    %s38 = sphi 0, %s22
    %s42 = sphi 0, %s42
    %s44 = sphi 0, %s42
    %s45 = sphi 0, %s44
    %s59 = sphi 0, %s45
    %s65 = sphi 0, %s67
    %s68 = sphi 0, %s65
    %s69 = sphi 0, %s68
    %s85 = sphi 0, %s69
  $region4: #{discriminator_forward.6} parent=0 // loop_header_branch
    %11 = sbr.rel (%p9) target = $region8
  $region5: #{discriminator_forward.6} parent=0 // loop_body
    %s13 = ssub.s32 %s8, 1
    %s14 = ssub.s32 %s8, 2
    %s15 = sadd.s32 %s8, 1
    %s16 = ssub.s32 %s8, %s15
    %p17 = scmp.eq.s32.totalorder %s16, 0
    %s19 = sadd.s32 %s18, 1
    %s20 = scalar_select %p17, %s18, %s19
    %p23 = pneg %p17
    %p24 = scmp.eq.s32.totalorder %s8, 5
    %p25 = por %p23, %p24
    %p26 = scmp.ne.s32.totalorder %s18, %s21
    %p27 = scmp.eq.s32.totalorder %s8, 0
    %p28 = por %p26, %p27
    %p29 = scmp.ne.s32.totalorder %s18, %s21
    %p30 = scmp.eq.s32.totalorder %s13, 5
    %p31 = por %p29, %p30
    %p32 = scmp.ne.s32.totalorder %s21, %s22
    %p33 = scmp.eq.s32.totalorder %s13, 0
    %p34 = por %p32, %p33
    %p35 = scmp.ne.s32.totalorder %s21, %s22
    %p36 = scmp.eq.s32.totalorder %s14, 5
    %p37 = por %p35, %p36
    %p39 = scmp.ne.s32.totalorder %s22, %s38
    %p40 = scmp.eq.s32.totalorder %s14, 0
    %p41 = por %p39, %p40
    %s43 = sadd.s32 %s42, 1
    %p46 = scmp.eq.s32.totalorder %s8, 5
    %p47 = scmp.ne.s32.totalorder %s42, %s44
    %p48 = scmp.eq.s32.totalorder %s8, 0
    %p49 = por %p47, %p48
    %p50 = scmp.ne.s32.totalorder %s42, %s44
    %p51 = scmp.eq.s32.totalorder %s13, 5
    %p52 = por %p50, %p51
    %p53 = scmp.ne.s32.totalorder %s44, %s45
    %p54 = scmp.eq.s32.totalorder %s13, 0
    %p55 = por %p53, %p54
    %p56 = scmp.ne.s32.totalorder %s44, %s45
    %p57 = scmp.eq.s32.totalorder %s14, 5
    %p58 = por %p56, %p57
    %p60 = scmp.ne.s32.totalorder %s45, %s59
    %p61 = scmp.eq.s32.totalorder %s14, 0
    %p62 = por %p60, %p61
    %s63 = ssub.s32 %s8, %s15
    %p64 = scmp.eq.s32.totalorder %s63, 0
    %s66 = sadd.s32 %s65, 1
    %s67 = scalar_select %p64, %s65, %s66
    %p70 = pneg %p64
    %p71 = scmp.eq.s32.totalorder %s8, 5
    %p72 = por %p70, %p71
    %p73 = scmp.ne.s32.totalorder %s65, %s68
    %p74 = scmp.eq.s32.totalorder %s8, 0
    %p75 = por %p73, %p74
    %p76 = scmp.ne.s32.totalorder %s65, %s68
    %p77 = scmp.eq.s32.totalorder %s13, 5
    %p78 = por %p76, %p77
    %p79 = scmp.ne.s32.totalorder %s68, %s69
    %p80 = scmp.eq.s32.totalorder %s13, 0
    %p81 = por %p79, %p80
    %p82 = scmp.ne.s32.totalorder %s68, %s69
    %p83 = scmp.eq.s32.totalorder %s14, 5
    %p84 = por %p82, %p83
    %p86 = scmp.ne.s32.totalorder %s69, %s85
    %p87 = scmp.eq.s32.totalorder %s14, 0
    %p88 = por %p86, %p87
    %p89 = scmp.le.s32.totalorder 1, %s8
    %p90 = scmp.lt.s32.totalorder %s8, 7
    %p91 = pnand %p89, %p90
    %p92 = pneg %p91
    // Predicated region
    $region9: #{discriminator_forward.6} parent=5 // pred_check
      _
    $region10: #{discriminator_forward.6} parent=5 // pred_check_branch
      %94 = sbr.rel (%p91) target = $region12
    $region11: #{discriminator_forward.6} parent=5 // pred_region
      %s95 = ssub.s32 %s8, 1
      // Predicated region
      $region13: #{discriminator_forward.6} parent=11 // pred_check
        %p96 = pneg %p55
      $region14: #{discriminator_forward.6} parent=11 // pred_check_branch
        %98 = sbr.rel (%p96) target = $region16
      $region15: #{discriminator_forward.6} parent=11 // pred_region
        _
      $region16: #{discriminator_forward.6} parent=11 // pred_fallthru
        _
    $region12: #{discriminator_forward.6} parent=5 // pred_fallthru
      _
    %p99 = scmp.lt.s32.totalorder %s8, 6
    // Predicated region
    $region17: #{discriminator_forward.6} parent=5 // pred_check
      %p100 = pneg %p99
    $region18: #{discriminator_forward.6} parent=5 // pred_check_branch
      %102 = sbr.rel (%p100) target = $region20
    $region19: #{discriminator_forward.6} parent=5 // pred_region
      // Predicated region
      $region21: #{discriminator_forward.6} parent=19 // pred_check
        %p103 = pneg %p28
      $region22: #{discriminator_forward.6} parent=19 // pred_check_branch
        %105 = sbr.rel (%p103) target = $region24
      $region23: #{discriminator_forward.6} parent=19 // pred_region
        %s106 = smul.u32 64, %s8
        %p107 = scmp.lt.s32.totalorder %s106, 383
        %s108 = scalar_select %p107, %s106, 383
        %s109 = smul.addr %s108, 4
        %s110 = scalar_lea.vmem %s0, %s109
        %s111 = smul.u32 64, %s8
      $region24: #{discriminator_forward.6} parent=19 // pred_fallthru
        _
    $region20: #{discriminator_forward.6} parent=5 // pred_fallthru
      _
    %p112 = scmp.le.s32.totalorder 1, %s8
    %p113 = scmp.lt.s32.totalorder %s8, 7
    %p114 = pnand %p112, %p113
    %p115 = pneg %p114
    // Predicated region
    $region25: #{discriminator_forward.6} parent=5 // pred_check
      _
    $region26: #{discriminator_forward.6} parent=5 // pred_check_branch
      %117 = sbr.rel (%p114) target = $region28
    $region27: #{discriminator_forward.6} parent=5 // pred_region
      %s118 = ssub.s32 %s8, 1
      %s119 = smul.u32 64, %s13
      %p120 = scmp.lt.s32.totalorder %s119, 383
      %s121 = scalar_select %p120, %s119, 383
      %s122 = smul.addr %s121, 4
      %s123 = scalar_lea.vmem %s0, %s122
      %p124 = pneg %p34
      %p125 = pneg %p31
      %p126 = pneg %p55
      %p127 = pneg %p52
      %p128 = pneg %p81
      %p129 = pneg %p78
      %s130 = smul.u32 64, %s13
      %p131 = scmp.lt.s32.totalorder %s130, 383
      %s132 = scalar_select %p131, %s130, 383
      %s133 = smul.addr %s132, 8
      %s134 = scalar_lea.vmem %s2, %s133
      %s135 = smul.u32 64, %s13
      %p136 = scmp.lt.s32.totalorder %s135, 383
      %s137 = scalar_select %p136, %s135, 383
      %s138 = smul.addr %s137, 4
      %s139 = scalar_lea.vmem %s0, %s138
      %s140 = smul.u32 64, %s13
      %s141 = smul.u32 64, %s13
      %p142 = scmp.lt.s32.totalorder %s141, 383
      %s143 = scalar_select %p142, %s141, 383
      %s144 = smul.addr %s143, 8
      %s145 = scalar_lea.vmem %s2, %s144
      %s146 = smul.u32 64, %s13
      %v148 = vld [vmem:[%s139] sm:$0xf]
      %v149 = vld [vmem:[%s139 + $0x4] sm:$0xf]
      %v150 = vld [vmem:[%s139 + $0x8] sm:$0xf]
      %v151 = vld [vmem:[%s139 + $0xc] sm:$0xf]
      %v152 = vld [vmem:[%s139 + $0x10] sm:$0xf]
      %v153 = vld [vmem:[%s139 + $0x14] sm:$0xf]
      %v154 = vld [vmem:[%s139 + $0x18] sm:$0xf]
      %v155 = vld [vmem:[%s139 + $0x1c] sm:$0xf]
      %v156 = vld [vmem:[%s139 + $0x20] sm:$0xf]
      %v157 = vld [vmem:[%s139 + $0x24] sm:$0xf]
      %v158 = vld [vmem:[%s139 + $0x28] sm:$0xf]
      %v159 = vld [vmem:[%s139 + $0x2c] sm:$0xf]
      %v160 = vld [vmem:[%s139 + $0x30] sm:$0xf]
      %v161 = vld [vmem:[%s139 + $0x34] sm:$0xf]
      %v162 = vld [vmem:[%s139 + $0x38] sm:$0xf]
      %v163 = vld [vmem:[%s139 + $0x3c] sm:$0xf]
      %v164 = vld [vmem:[%s139 + $0x40] sm:$0xf]
      %v165 = vld [vmem:[%s139 + $0x44] sm:$0xf]
      %v166 = vld [vmem:[%s139 + $0x48] sm:$0xf]
      %v167 = vld [vmem:[%s139 + $0x4c] sm:$0xf]
      %v168 = vld [vmem:[%s139 + $0x50] sm:$0xf]
      %v169 = vld [vmem:[%s139 + $0x54] sm:$0xf]
      %v170 = vld [vmem:[%s139 + $0x58] sm:$0xf]
      %v171 = vld [vmem:[%s139 + $0x5c] sm:$0xf]
      %v172 = vld [vmem:[%s139 + $0x60] sm:$0xf]
      %v173 = vld [vmem:[%s139 + $0x64] sm:$0xf]
      %v174 = vld [vmem:[%s139 + $0x68] sm:$0xf]
      %v175 = vld [vmem:[%s139 + $0x6c] sm:$0xf]
      %v176 = vld [vmem:[%s139 + $0x70] sm:$0xf]
      %v177 = vld [vmem:[%s139 + $0x74] sm:$0xf]
      %v178 = vld [vmem:[%s139 + $0x78] sm:$0xf]
      %v179 = vld [vmem:[%s139 + $0x7c] sm:$0xf]
      %v180 = vld [vmem:[%s139 + $0x80] sm:$0xf]
      %v181 = vld [vmem:[%s139 + $0x84] sm:$0xf]
      %v182 = vld [vmem:[%s139 + $0x88] sm:$0xf]
      %v183 = vld [vmem:[%s139 + $0x8c] sm:$0xf]
      %v184 = vld [vmem:[%s139 + $0x90] sm:$0xf]
      %v185 = vld [vmem:[%s139 + $0x94] sm:$0xf]
      %v186 = vld [vmem:[%s139 + $0x98] sm:$0xf]
      %v187 = vld [vmem:[%s139 + $0x9c] sm:$0xf]
      %v188 = vld [vmem:[%s139 + $0xa0] sm:$0xf]
      %v189 = vld [vmem:[%s139 + $0xa4] sm:$0xf]
      %v190 = vld [vmem:[%s139 + $0xa8] sm:$0xf]
      %v191 = vld [vmem:[%s139 + $0xac] sm:$0xf]
      %v192 = vld [vmem:[%s139 + $0xb0] sm:$0xf]
      %v193 = vld [vmem:[%s139 + $0xb4] sm:$0xf]
      %v194 = vld [vmem:[%s139 + $0xb8] sm:$0xf]
      %v195 = vld [vmem:[%s139 + $0xbc] sm:$0xf]
      %v196 = vld [vmem:[%s139 + $0xc0] sm:$0xf]
      %v197 = vld [vmem:[%s139 + $0xc4] sm:$0xf]
      %v198 = vld [vmem:[%s139 + $0xc8] sm:$0xf]
      %v199 = vld [vmem:[%s139 + $0xcc] sm:$0xf]
      %v200 = vld [vmem:[%s139 + $0xd0] sm:$0xf]
      %v201 = vld [vmem:[%s139 + $0xd4] sm:$0xf]
      %v202 = vld [vmem:[%s139 + $0xd8] sm:$0xf]
      %v203 = vld [vmem:[%s139 + $0xdc] sm:$0xf]
      %v204 = vld [vmem:[%s139 + $0xe0] sm:$0xf]
      %v205 = vld [vmem:[%s139 + $0xe4] sm:$0xf]
      %v206 = vld [vmem:[%s139 + $0xe8] sm:$0xf]
      %v207 = vld [vmem:[%s139 + $0xec] sm:$0xf]
      %v208 = vld [vmem:[%s139 + $0xf0] sm:$0xf]
      %v209 = vld [vmem:[%s139 + $0xf4] sm:$0xf]
      %v210 = vld [vmem:[%s139 + $0xf8] sm:$0xf]
      %v211 = vld [vmem:[%s139 + $0xfc] sm:$0xf]
      %v212 = vld [vmem:[%s1] sm:$0xf]
      %v213 = vld [vmem:[%s1 + $0x4] sm:$0xf]
      %v214 = vld [vmem:[%s1 + $0x8] sm:$0xf]
      %v215 = vld [vmem:[%s1 + $0xc] sm:$0xf]
      %v216 = vld [vmem:[%s1 + $0x10] sm:$0xf]
      %v217 = vld [vmem:[%s1 + $0x14] sm:$0xf]
      %v218 = vld [vmem:[%s1 + $0x18] sm:$0xf]
      %v219 = vld [vmem:[%s1 + $0x1c] sm:$0xf]
      %v220 = vld [vmem:[%s1 + $0x20] sm:$0xf]
      %v221 = vld [vmem:[%s1 + $0x24] sm:$0xf]
      %v286 = vunpack.c.l.b16 %v148
      %v287 = vunpack.c.l.b16 %v149
      %v288 = vunpack.c.l.b16 %v150
      %v289 = vunpack.c.l.b16 %v151
      %v290 = vunpack.c.l.b16 %v152
      %v291 = vunpack.c.l.b16 %v153
      %v292 = vunpack.c.l.b16 %v154
      %v293 = vunpack.c.l.b16 %v155
      %v294 = vunpack.c.l.b16 %v156
      %v295 = vunpack.c.l.b16 %v157
      %v296 = vunpack.c.l.b16 %v158
      %v297 = vunpack.c.l.b16 %v159
      %v298 = vunpack.c.l.b16 %v160
      %v299 = vunpack.c.l.b16 %v161
      %v300 = vunpack.c.l.b16 %v162
      %v301 = vunpack.c.l.b16 %v163
      %v302 = vunpack.c.l.b16 %v164
      %v303 = vunpack.c.l.b16 %v165
      %v304 = vunpack.c.l.b16 %v166
      %v305 = vunpack.c.l.b16 %v167
      %v306 = vunpack.c.l.b16 %v168
      %v307 = vunpack.c.l.b16 %v169
      %v308 = vunpack.c.l.b16 %v170
      %v309 = vunpack.c.l.b16 %v171
      %v310 = vunpack.c.l.b16 %v172
      %v311 = vunpack.c.l.b16 %v173
      %v312 = vunpack.c.l.b16 %v174
      %v313 = vunpack.c.l.b16 %v175
      %v314 = vunpack.c.l.b16 %v176
      %v315 = vunpack.c.l.b16 %v177
      %v316 = vunpack.c.l.b16 %v178
      %v317 = vunpack.c.l.b16 %v179
      %v318 = vunpack.c.l.b16 %v180
      %v319 = vunpack.c.l.b16 %v181
      %v320 = vunpack.c.l.b16 %v182
      %v321 = vunpack.c.l.b16 %v183
      %v322 = vunpack.c.l.b16 %v184
      %v323 = vunpack.c.l.b16 %v185
      %v324 = vunpack.c.l.b16 %v186
      %v325 = vunpack.c.l.b16 %v187
      %v326 = vunpack.c.l.b16 %v188
      %v327 = vunpack.c.l.b16 %v189
      %v328 = vunpack.c.l.b16 %v190
      %v329 = vunpack.c.l.b16 %v191
      %v330 = vunpack.c.l.b16 %v192
      %v331 = vunpack.c.l.b16 %v193
      %v332 = vunpack.c.l.b16 %v194
      %v333 = vunpack.c.l.b16 %v195
      %v334 = vunpack.c.l.b16 %v196
      %v335 = vunpack.c.l.b16 %v197
      %v336 = vunpack.c.l.b16 %v198
      %v337 = vunpack.c.l.b16 %v199
      %v338 = vunpack.c.l.b16 %v200
      %v339 = vunpack.c.l.b16 %v201
      %v340 = vunpack.c.l.b16 %v202
      %v341 = vunpack.c.l.b16 %v203
      %v342 = vunpack.c.l.b16 %v204
      %v343 = vunpack.c.l.b16 %v205
      %v344 = vunpack.c.l.b16 %v206
      %v345 = vunpack.c.l.b16 %v207
      %v346 = vunpack.c.l.b16 %v208
      %v347 = vunpack.c.l.b16 %v209
      %v348 = vunpack.c.l.b16 %v210
      %v349 = vunpack.c.l.b16 %v211
      %v350 = vpack.c.b16 %v287, %v286
      %v351 = vpack.c.b16 %v289, %v288
      %v352 = vpack.c.b16 %v291, %v290
      %v353 = vpack.c.b16 %v293, %v292
      %v354 = vpack.c.b16 %v295, %v294
      %v355 = vpack.c.b16 %v297, %v296
      %v356 = vpack.c.b16 %v299, %v298
      %v357 = vpack.c.b16 %v301, %v300
      %v358 = vpack.c.b16 %v303, %v302
      %v359 = vpack.c.b16 %v305, %v304
      %v360 = vpack.c.b16 %v307, %v306
      %v361 = vpack.c.b16 %v309, %v308
      %v362 = vpack.c.b16 %v311, %v310
      %v363 = vpack.c.b16 %v313, %v312
      %v364 = vpack.c.b16 %v315, %v314
      %v365 = vpack.c.b16 %v317, %v316
      %v366 = vpack.c.b16 %v319, %v318
      %v367 = vpack.c.b16 %v321, %v320
      %v368 = vpack.c.b16 %v323, %v322
      %v369 = vpack.c.b16 %v325, %v324
      %v370 = vpack.c.b16 %v327, %v326
      %v371 = vpack.c.b16 %v329, %v328
      %v372 = vpack.c.b16 %v331, %v330
      %v373 = vpack.c.b16 %v333, %v332
      %v374 = vpack.c.b16 %v335, %v334
      %v375 = vpack.c.b16 %v337, %v336
      %v376 = vpack.c.b16 %v339, %v338
      %v377 = vpack.c.b16 %v341, %v340
      %v378 = vpack.c.b16 %v343, %v342
      %v379 = vpack.c.b16 %v345, %v344
      %v380 = vpack.c.b16 %v347, %v346
      %v381 = vpack.c.b16 %v349, %v348
      %v392 = vunpack.c.l.b16 %v212
      %v393 = vunpack.c.l.b16 %v213
      %v394 = vunpack.c.l.b16 %v214
      %v395 = vunpack.c.l.b16 %v215
      %v396 = vunpack.c.l.b16 %v216
      %v397 = vunpack.c.l.b16 %v217
      %v398 = vunpack.c.l.b16 %v218
      %v399 = vunpack.c.l.b16 %v219
      %v400 = vunpack.c.l.b16 %v220
      %v401 = vunpack.c.l.b16 %v221
      %v402 = vpack.c.b16 %v393, %v392
      %v403 = vpack.c.b16 %v395, %v394
      %v404 = vpack.c.b16 %v397, %v396
      %v405 = vpack.c.b16 %v399, %v398
      %v406 = vpack.c.b16 %v401, %v400
      %vm412 = vcmask 654336
      %v414 = vsel %vm412, %v350, 0
      %v417 = vsel %vm412, %v351, 0
      %v420 = vsel %vm412, %v352, 0
      %v423 = vsel %vm412, %v353, 0
      %v426 = vsel %vm412, %v354, 0
      %v429 = vsel %vm412, %v355, 0
      %v432 = vsel %vm412, %v356, 0
      %v435 = vsel %vm412, %v357, 0
      %v438 = vsel %vm412, %v358, 0
      %v441 = vsel %vm412, %v359, 0
      %v444 = vsel %vm412, %v360, 0
      %v447 = vsel %vm412, %v361, 0
      %v450 = vsel %vm412, %v362, 0
      %v453 = vsel %vm412, %v363, 0
      %v456 = vsel %vm412, %v364, 0
      %v459 = vsel %vm412, %v365, 0
      %v462 = vsel %vm412, %v366, 0
      %v465 = vsel %vm412, %v367, 0
      %v468 = vsel %vm412, %v368, 0
      %v471 = vsel %vm412, %v369, 0
      %v474 = vsel %vm412, %v370, 0
      %v477 = vsel %vm412, %v371, 0
      %v480 = vsel %vm412, %v372, 0
      %v483 = vsel %vm412, %v373, 0
      %v486 = vsel %vm412, %v374, 0
      %v489 = vsel %vm412, %v375, 0
      %v492 = vsel %vm412, %v376, 0
      %v495 = vsel %vm412, %v377, 0
      %v498 = vsel %vm412, %v378, 0
      %v501 = vsel %vm412, %v379, 0
      %v504 = vsel %vm412, %v380, 0
      %v507 = vsel %vm412, %v381, 0
      %509 = vmatprep.subr.bf16.mxu0 0
      %510 = vmatpush1.bf16.msra.mxu0 %v402
      %511 = vmatprep.subr.bf16.mxu0 0
      %512 = vmatpush1.bf16.msra.mxu0 %v403
      %513 = vmatprep.subr.bf16.mxu0 0
      %514 = vmatpush1.bf16.msra.mxu0 %v404
      %515 = vmatprep.subr.bf16.mxu0 0
      %516 = vmatpush1.bf16.msra.mxu0 %v405
      %517 = vmatprep.subr.bf16.mxu0 0
      %518 = vmatpush1.bf16.msra.mxu0 %v406
      %519 = vmatprep.subr.bf16.mxu0 0
      %520 = vmatpush1.bf16.msra.mxu0 0
      %521 = vmatprep.subr.bf16.mxu0 0
      %522 = vmatpush1.bf16.msra.mxu0 0
      %523 = vmatprep.subr.bf16.mxu0 0
      %524 = vmatpush1.bf16.msra.mxu0 0
      %525 = vmatprep.subr.bf16.mxu0 0
      %526 = vmatpush1.bf16.msra.mxu0 0
      %527 = vmatprep.subr.bf16.mxu0 0
      %528 = vmatpush1.bf16.msra.mxu0 0
      %529 = vmatprep.subr.bf16.mxu0 0
      %530 = vmatpush1.bf16.msra.mxu0 0
      %531 = vmatprep.subr.bf16.mxu0 0
      %532 = vmatpush1.bf16.msra.mxu0 0
      %533 = vmatprep.subr.bf16.mxu0 0
      %534 = vmatpush1.bf16.msra.mxu0 0
      %535 = vmatprep.subr.bf16.mxu0 0
      %536 = vmatpush1.bf16.msra.mxu0 0
      %537 = vmatprep.subr.bf16.mxu0 0
      %538 = vmatpush1.bf16.msra.mxu0 0
      %539 = vmatprep.subr.bf16.mxu0 0
      %540 = vmatpush1.bf16.msra.mxu0 0
      %541 = vmatprep.mubr.bf16.mxu0 0
      %542 = vmatmul.mubr.bf16.gmra.mrb[0].mxu0 %v414
      %v543 = vpop.f32.mrb[0].mxu0
      %v544 = vadd.f32 0.0, %v543
      %v545 = vpop.f32.mrb[0].mxu0
      %v546 = vpop.f32.mrb[0].mxu0
      %v547 = vadd.f32 0.0, %v546
      %v548 = vpop.f32.mrb[0].mxu0
      %549 = vmatprep.mubr.bf16.mxu0 0
      %550 = vmatmul.mubr.bf16.gmra.mrb[0].mxu0 %v417
      %v551 = vpop.f32.mrb[0].mxu0
      %v552 = vadd.f32 0.0, %v551
      %v553 = vpop.f32.mrb[0].mxu0
      %v554 = vpop.f32.mrb[0].mxu0
      %v555 = vadd.f32 0.0, %v554
      %v556 = vpop.f32.mrb[0].mxu0
      %557 = vmatprep.mubr.bf16.mxu0 0
      %558 = vmatmul.mubr.bf16.gmra.mrb[0].mxu0 %v420
      %v559 = vpop.f32.mrb[0].mxu0
      %v560 = vadd.f32 0.0, %v559
      %v561 = vpop.f32.mrb[0].mxu0
      %v562 = vpop.f32.mrb[0].mxu0
      %v563 = vadd.f32 0.0, %v562
      %v564 = vpop.f32.mrb[0].mxu0
      %565 = vmatprep.mubr.bf16.mxu0 0
      %566 = vmatmul.mubr.bf16.gmra.mrb[0].mxu0 %v423
      %v567 = vpop.f32.mrb[0].mxu0
      %v568 = vadd.f32 0.0, %v567
      %v569 = vpop.f32.mrb[0].mxu0
      %v570 = vpop.f32.mrb[0].mxu0
      %v571 = vadd.f32 0.0, %v570
      %v572 = vpop.f32.mrb[0].mxu0
      %573 = vmatprep.mubr.bf16.mxu0 0
      %574 = vmatmul.mubr.bf16.gmra.mrb[0].mxu0 %v426
      %v575 = vpop.f32.mrb[0].mxu0
      %v576 = vadd.f32 0.0, %v575
      %v577 = vpop.f32.mrb[0].mxu0
      %v578 = vpop.f32.mrb[0].mxu0
      %v579 = vadd.f32 0.0, %v578
      %v580 = vpop.f32.mrb[0].mxu0
      %581 = vmatprep.mubr.bf16.mxu0 0
      %582 = vmatmul.mubr.bf16.gmra.mrb[0].mxu0 %v429
      %v583 = vpop.f32.mrb[0].mxu0
      %v584 = vadd.f32 0.0, %v583
      %v585 = vpop.f32.mrb[0].mxu0
      %v586 = vpop.f32.mrb[0].mxu0
      %v587 = vadd.f32 0.0, %v586
      %v588 = vpop.f32.mrb[0].mxu0
      %589 = vmatprep.mubr.bf16.mxu0 0
      %590 = vmatmul.mubr.bf16.gmra.mrb[0].mxu0 %v432
      %v591 = vpop.f32.mrb[0].mxu0
      %v592 = vadd.f32 0.0, %v591
      %v593 = vpop.f32.mrb[0].mxu0
      %v594 = vpop.f32.mrb[0].mxu0
      %v595 = vadd.f32 0.0, %v594
      %v596 = vpop.f32.mrb[0].mxu0
      %597 = vmatprep.mubr.bf16.mxu0 0
      %598 = vmatmul.mubr.bf16.gmra.mrb[0].mxu0 %v435
      %v599 = vpop.f32.mrb[0].mxu0
      %v600 = vadd.f32 0.0, %v599
      %v601 = vpop.f32.mrb[0].mxu0
      %v602 = vpop.f32.mrb[0].mxu0
      %v603 = vadd.f32 0.0, %v602
      %v604 = vpop.f32.mrb[0].mxu0
      %605 = vmatprep.mubr.bf16.mxu0 0
      %606 = vmatmul.mubr.bf16.gmra.mrb[0].mxu0 %v438
      %v607 = vpop.f32.mrb[0].mxu0
      %v608 = vadd.f32 0.0, %v607
      %v609 = vpop.f32.mrb[0].mxu0
      %v610 = vpop.f32.mrb[0].mxu0
      %v611 = vadd.f32 0.0, %v610
      %v612 = vpop.f32.mrb[0].mxu0
      %613 = vmatprep.mubr.bf16.mxu0 0
      %614 = vmatmul.mubr.bf16.gmra.mrb[0].mxu0 %v441
      %v615 = vpop.f32.mrb[0].mxu0
      %v616 = vadd.f32 0.0, %v615
      %v617 = vpop.f32.mrb[0].mxu0
      %v618 = vpop.f32.mrb[0].mxu0
      %v619 = vadd.f32 0.0, %v618
      %v620 = vpop.f32.mrb[0].mxu0
      %621 = vmatprep.mubr.bf16.mxu0 0
      %622 = vmatmul.mubr.bf16.gmra.mrb[0].mxu0 %v444
      %v623 = vpop.f32.mrb[0].mxu0
      %v624 = vadd.f32 0.0, %v623
      %v625 = vpop.f32.mrb[0].mxu0
      %v626 = vpop.f32.mrb[0].mxu0
      %v627 = vadd.f32 0.0, %v626
      %v628 = vpop.f32.mrb[0].mxu0
      %629 = vmatprep.mubr.bf16.mxu0 0
      %630 = vmatmul.mubr.bf16.gmra.mrb[0].mxu0 %v447
      %v631 = vpop.f32.mrb[0].mxu0
      %v632 = vadd.f32 0.0, %v631
      %v633 = vpop.f32.mrb[0].mxu0
      %v634 = vpop.f32.mrb[0].mxu0
      %v635 = vadd.f32 0.0, %v634
      %v636 = vpop.f32.mrb[0].mxu0
      %637 = vmatprep.mubr.bf16.mxu0 0
      %638 = vmatmul.mubr.bf16.gmra.mrb[0].mxu0 %v450
      %v639 = vpop.f32.mrb[0].mxu0
      %v640 = vadd.f32 0.0, %v639
      %v641 = vpop.f32.mrb[0].mxu0
      %v642 = vpop.f32.mrb[0].mxu0
      %v643 = vadd.f32 0.0, %v642
      %v644 = vpop.f32.mrb[0].mxu0
      %645 = vmatprep.mubr.bf16.mxu0 0
      %646 = vmatmul.mubr.bf16.gmra.mrb[0].mxu0 %v453
      %v647 = vpop.f32.mrb[0].mxu0
      %v648 = vadd.f32 0.0, %v647
      %v649 = vpop.f32.mrb[0].mxu0
      %v650 = vpop.f32.mrb[0].mxu0
      %v651 = vadd.f32 0.0, %v650
      %v652 = vpop.f32.mrb[0].mxu0
      %653 = vmatprep.mubr.bf16.mxu0 0
      %654 = vmatmul.mubr.bf16.gmra.mrb[0].mxu0 %v456
      %v655 = vpop.f32.mrb[0].mxu0
      %v656 = vadd.f32 0.0, %v655
      %v657 = vpop.f32.mrb[0].mxu0
      %v658 = vpop.f32.mrb[0].mxu0
      %v659 = vadd.f32 0.0, %v658
      %v660 = vpop.f32.mrb[0].mxu0
      %661 = vmatprep.mubr.bf16.mxu0 0
      %662 = vmatmul.mubr.bf16.gmra.mrb[0].mxu0 %v459
      %v663 = vpop.f32.mrb[0].mxu0
      %v664 = vadd.f32 0.0, %v663
      %v665 = vpop.f32.mrb[0].mxu0
      %v666 = vpop.f32.mrb[0].mxu0
      %v667 = vadd.f32 0.0, %v666
      %v668 = vpop.f32.mrb[0].mxu0
      %669 = vmatprep.mubr.bf16.mxu0 0
      %670 = vmatmul.mubr.bf16.gmra.mrb[0].mxu0 %v462
      %v671 = vpop.f32.mrb[0].mxu0
      %v672 = vadd.f32 0.0, %v671
      %v673 = vpop.f32.mrb[0].mxu0
      %v674 = vpop.f32.mrb[0].mxu0
      %v675 = vadd.f32 0.0, %v674
      %v676 = vpop.f32.mrb[0].mxu0
      %677 = vmatprep.mubr.bf16.mxu0 0
      %678 = vmatmul.mubr.bf16.gmra.mrb[0].mxu0 %v465
      %v679 = vpop.f32.mrb[0].mxu0
      %v680 = vadd.f32 0.0, %v679
      %v681 = vpop.f32.mrb[0].mxu0
      %v682 = vpop.f32.mrb[0].mxu0
      %v683 = vadd.f32 0.0, %v682
      %v684 = vpop.f32.mrb[0].mxu0
      %685 = vmatprep.mubr.bf16.mxu0 0
      %686 = vmatmul.mubr.bf16.gmra.mrb[0].mxu0 %v468
      %v687 = vpop.f32.mrb[0].mxu0
      %v688 = vadd.f32 0.0, %v687
      %v689 = vpop.f32.mrb[0].mxu0
      %v690 = vpop.f32.mrb[0].mxu0
      %v691 = vadd.f32 0.0, %v690
      %v692 = vpop.f32.mrb[0].mxu0
      %693 = vmatprep.mubr.bf16.mxu0 0
      %694 = vmatmul.mubr.bf16.gmra.mrb[0].mxu0 %v471
      %v695 = vpop.f32.mrb[0].mxu0
      %v696 = vadd.f32 0.0, %v695
      %v697 = vpop.f32.mrb[0].mxu0
      %v698 = vpop.f32.mrb[0].mxu0
      %v699 = vadd.f32 0.0, %v698
      %v700 = vpop.f32.mrb[0].mxu0
      %701 = vmatprep.mubr.bf16.mxu0 0
      %702 = vmatmul.mubr.bf16.gmra.mrb[0].mxu0 %v474
      %v703 = vpop.f32.mrb[0].mxu0
      %v704 = vadd.f32 0.0, %v703
      %v705 = vpop.f32.mrb[0].mxu0
      %v706 = vpop.f32.mrb[0].mxu0
      %v707 = vadd.f32 0.0, %v706
      %v708 = vpop.f32.mrb[0].mxu0
      %709 = vmatprep.mubr.bf16.mxu0 0
      %710 = vmatmul.mubr.bf16.gmra.mrb[0].mxu0 %v477
      %v711 = vpop.f32.mrb[0].mxu0
      %v712 = vadd.f32 0.0, %v711
      %v713 = vpop.f32.mrb[0].mxu0
      %v714 = vpop.f32.mrb[0].mxu0
      %v715 = vadd.f32 0.0, %v714
      %v716 = vpop.f32.mrb[0].mxu0
      %717 = vmatprep.mubr.bf16.mxu0 0
      %718 = vmatmul.mubr.bf16.gmra.mrb[0].mxu0 %v480
      %v719 = vpop.f32.mrb[0].mxu0
      %v720 = vadd.f32 0.0, %v719
      %v721 = vpop.f32.mrb[0].mxu0
      %v722 = vpop.f32.mrb[0].mxu0
      %v723 = vadd.f32 0.0, %v722
      %v724 = vpop.f32.mrb[0].mxu0
      %725 = vmatprep.mubr.bf16.mxu0 0
      %726 = vmatmul.mubr.bf16.gmra.mrb[0].mxu0 %v483
      %v727 = vpop.f32.mrb[0].mxu0
      %v728 = vadd.f32 0.0, %v727
      %v729 = vpop.f32.mrb[0].mxu0
      %v730 = vpop.f32.mrb[0].mxu0
      %v731 = vadd.f32 0.0, %v730
      %v732 = vpop.f32.mrb[0].mxu0
      %733 = vmatprep.mubr.bf16.mxu0 0
      %734 = vmatmul.mubr.bf16.gmra.mrb[0].mxu0 %v486
      %v735 = vpop.f32.mrb[0].mxu0
      %v736 = vadd.f32 0.0, %v735
      %v737 = vpop.f32.mrb[0].mxu0
      %v738 = vpop.f32.mrb[0].mxu0
      %v739 = vadd.f32 0.0, %v738
      %v740 = vpop.f32.mrb[0].mxu0
      %741 = vmatprep.mubr.bf16.mxu0 0
      %742 = vmatmul.mubr.bf16.gmra.mrb[0].mxu0 %v489
      %v743 = vpop.f32.mrb[0].mxu0
      %v744 = vadd.f32 0.0, %v743
      %v745 = vpop.f32.mrb[0].mxu0
      %v746 = vpop.f32.mrb[0].mxu0
      %v747 = vadd.f32 0.0, %v746
      %v748 = vpop.f32.mrb[0].mxu0
      %749 = vmatprep.mubr.bf16.mxu0 0
      %750 = vmatmul.mubr.bf16.gmra.mrb[0].mxu0 %v492
      %v751 = vpop.f32.mrb[0].mxu0
      %v752 = vadd.f32 0.0, %v751
      %v753 = vpop.f32.mrb[0].mxu0
      %v754 = vpop.f32.mrb[0].mxu0
      %v755 = vadd.f32 0.0, %v754
      %v756 = vpop.f32.mrb[0].mxu0
      %757 = vmatprep.mubr.bf16.mxu0 0
      %758 = vmatmul.mubr.bf16.gmra.mrb[0].mxu0 %v495
      %v759 = vpop.f32.mrb[0].mxu0
      %v760 = vadd.f32 0.0, %v759
      %v761 = vpop.f32.mrb[0].mxu0
      %v762 = vpop.f32.mrb[0].mxu0
      %v763 = vadd.f32 0.0, %v762
      %v764 = vpop.f32.mrb[0].mxu0
      %765 = vmatprep.mubr.bf16.mxu0 0
      %766 = vmatmul.mubr.bf16.gmra.mrb[0].mxu0 %v498
      %v767 = vpop.f32.mrb[0].mxu0
      %v768 = vadd.f32 0.0, %v767
      %v769 = vpop.f32.mrb[0].mxu0
      %v770 = vpop.f32.mrb[0].mxu0
      %v771 = vadd.f32 0.0, %v770
      %v772 = vpop.f32.mrb[0].mxu0
      %773 = vmatprep.mubr.bf16.mxu0 0
      %774 = vmatmul.mubr.bf16.gmra.mrb[0].mxu0 %v501
      %v775 = vpop.f32.mrb[0].mxu0
      %v776 = vadd.f32 0.0, %v775
      %v777 = vpop.f32.mrb[0].mxu0
      %v778 = vpop.f32.mrb[0].mxu0
      %v779 = vadd.f32 0.0, %v778
      %v780 = vpop.f32.mrb[0].mxu0
      %781 = vmatprep.mubr.bf16.mxu0 0
      %782 = vmatmul.mubr.bf16.gmra.mrb[0].mxu0 %v504
      %v783 = vpop.f32.mrb[0].mxu0
      %v784 = vadd.f32 0.0, %v783
      %v785 = vpop.f32.mrb[0].mxu0
      %v786 = vpop.f32.mrb[0].mxu0
      %v787 = vadd.f32 0.0, %v786
      %v788 = vpop.f32.mrb[0].mxu0
      %789 = vmatprep.mubr.bf16.mxu0 0
      %790 = vmatmul.mubr.bf16.gmra.mrb[0].mxu0 %v507
      %v791 = vpop.f32.mrb[0].mxu0
      %v792 = vadd.f32 0.0, %v791
      %v793 = vpop.f32.mrb[0].mxu0
      %v794 = vpop.f32.mrb[0].mxu0
      %v795 = vadd.f32 0.0, %v794
      %v796 = vpop.f32.mrb[0].mxu0
      %797 = vdwg.mxu0
      %vm798 = vcmp.ge.f32.partialorder %v544, 0.0
      %vm799 = vcmp.ge.f32.partialorder %v547, 0.0
      %vm800 = vcmp.ge.f32.partialorder %v552, 0.0
      %vm801 = vcmp.ge.f32.partialorder %v555, 0.0
      %vm802 = vcmp.ge.f32.partialorder %v560, 0.0
      %vm803 = vcmp.ge.f32.partialorder %v563, 0.0
      %vm804 = vcmp.ge.f32.partialorder %v568, 0.0
      %vm805 = vcmp.ge.f32.partialorder %v571, 0.0
      %vm806 = vcmp.ge.f32.partialorder %v576, 0.0
      %vm807 = vcmp.ge.f32.partialorder %v579, 0.0
      %vm808 = vcmp.ge.f32.partialorder %v584, 0.0
      %vm809 = vcmp.ge.f32.partialorder %v587, 0.0
      %vm810 = vcmp.ge.f32.partialorder %v592, 0.0
      %vm811 = vcmp.ge.f32.partialorder %v595, 0.0
      %vm812 = vcmp.ge.f32.partialorder %v600, 0.0
      %vm813 = vcmp.ge.f32.partialorder %v603, 0.0
      %vm814 = vcmp.ge.f32.partialorder %v608, 0.0
      %vm815 = vcmp.ge.f32.partialorder %v611, 0.0
      %vm816 = vcmp.ge.f32.partialorder %v616, 0.0
      %vm817 = vcmp.ge.f32.partialorder %v619, 0.0
      %vm818 = vcmp.ge.f32.partialorder %v624, 0.0
      %vm819 = vcmp.ge.f32.partialorder %v627, 0.0
      %vm820 = vcmp.ge.f32.partialorder %v632, 0.0
      %vm821 = vcmp.ge.f32.partialorder %v635, 0.0
      %vm822 = vcmp.ge.f32.partialorder %v640, 0.0
      %vm823 = vcmp.ge.f32.partialorder %v643, 0.0
      %vm824 = vcmp.ge.f32.partialorder %v648, 0.0
      %vm825 = vcmp.ge.f32.partialorder %v651, 0.0
      %vm826 = vcmp.ge.f32.partialorder %v656, 0.0
      %vm827 = vcmp.ge.f32.partialorder %v659, 0.0
      %vm828 = vcmp.ge.f32.partialorder %v664, 0.0
      %vm829 = vcmp.ge.f32.partialorder %v667, 0.0
      %vm830 = vcmp.ge.f32.partialorder %v672, 0.0
      %vm831 = vcmp.ge.f32.partialorder %v675, 0.0
      %vm832 = vcmp.ge.f32.partialorder %v680, 0.0
      %vm833 = vcmp.ge.f32.partialorder %v683, 0.0
      %vm834 = vcmp.ge.f32.partialorder %v688, 0.0
      %vm835 = vcmp.ge.f32.partialorder %v691, 0.0
      %vm836 = vcmp.ge.f32.partialorder %v696, 0.0
      %vm837 = vcmp.ge.f32.partialorder %v699, 0.0
      %vm838 = vcmp.ge.f32.partialorder %v704, 0.0
      %vm839 = vcmp.ge.f32.partialorder %v707, 0.0
      %vm840 = vcmp.ge.f32.partialorder %v712, 0.0
      %vm841 = vcmp.ge.f32.partialorder %v715, 0.0
      %vm842 = vcmp.ge.f32.partialorder %v720, 0.0
      %vm843 = vcmp.ge.f32.partialorder %v723, 0.0
      %vm844 = vcmp.ge.f32.partialorder %v728, 0.0
      %vm845 = vcmp.ge.f32.partialorder %v731, 0.0
      %vm846 = vcmp.ge.f32.partialorder %v736, 0.0
      %vm847 = vcmp.ge.f32.partialorder %v739, 0.0
      %vm848 = vcmp.ge.f32.partialorder %v744, 0.0
      %vm849 = vcmp.ge.f32.partialorder %v747, 0.0
      %vm850 = vcmp.ge.f32.partialorder %v752, 0.0
      %vm851 = vcmp.ge.f32.partialorder %v755, 0.0
      %vm852 = vcmp.ge.f32.partialorder %v760, 0.0
      %vm853 = vcmp.ge.f32.partialorder %v763, 0.0
      %vm854 = vcmp.ge.f32.partialorder %v768, 0.0
      %vm855 = vcmp.ge.f32.partialorder %v771, 0.0
      %vm856 = vcmp.ge.f32.partialorder %v776, 0.0
      %vm857 = vcmp.ge.f32.partialorder %v779, 0.0
      %vm858 = vcmp.ge.f32.partialorder %v784, 0.0
      %vm859 = vcmp.ge.f32.partialorder %v787, 0.0
      %vm860 = vcmp.ge.f32.partialorder %v792, 0.0
      %vm861 = vcmp.ge.f32.partialorder %v795, 0.0
      %v862 = vmul.f32 %v544, 0.2
      %v863 = vmul.f32 %v547, 0.2
      %v864 = vmul.f32 %v552, 0.2
      %v865 = vmul.f32 %v555, 0.2
      %v866 = vmul.f32 %v560, 0.2
      %v867 = vmul.f32 %v563, 0.2
      %v868 = vmul.f32 %v568, 0.2
      %v869 = vmul.f32 %v571, 0.2
      %v870 = vmul.f32 %v576, 0.2
      %v871 = vmul.f32 %v579, 0.2
      %v872 = vmul.f32 %v584, 0.2
      %v873 = vmul.f32 %v587, 0.2
      %v874 = vmul.f32 %v592, 0.2
      %v875 = vmul.f32 %v595, 0.2
      %v876 = vmul.f32 %v600, 0.2
      %v877 = vmul.f32 %v603, 0.2
      %v878 = vmul.f32 %v608, 0.2
      %v879 = vmul.f32 %v611, 0.2
      %v880 = vmul.f32 %v616, 0.2
      %v881 = vmul.f32 %v619, 0.2
      %v882 = vmul.f32 %v624, 0.2
      %v883 = vmul.f32 %v627, 0.2
      %v884 = vmul.f32 %v632, 0.2
      %v885 = vmul.f32 %v635, 0.2
      %v886 = vmul.f32 %v640, 0.2
      %v887 = vmul.f32 %v643, 0.2
      %v888 = vmul.f32 %v648, 0.2
      %v889 = vmul.f32 %v651, 0.2
      %v890 = vmul.f32 %v656, 0.2
      %v891 = vmul.f32 %v659, 0.2
      %v892 = vmul.f32 %v664, 0.2
      %v893 = vmul.f32 %v667, 0.2
      %v894 = vmul.f32 %v672, 0.2
      %v895 = vmul.f32 %v675, 0.2
      %v896 = vmul.f32 %v680, 0.2
      %v897 = vmul.f32 %v683, 0.2
      %v898 = vmul.f32 %v688, 0.2
      %v899 = vmul.f32 %v691, 0.2
      %v900 = vmul.f32 %v696, 0.2
      %v901 = vmul.f32 %v699, 0.2
      %v902 = vmul.f32 %v704, 0.2
      %v903 = vmul.f32 %v707, 0.2
      %v904 = vmul.f32 %v712, 0.2
      %v905 = vmul.f32 %v715, 0.2
      %v906 = vmul.f32 %v720, 0.2
      %v907 = vmul.f32 %v723, 0.2
      %v908 = vmul.f32 %v728, 0.2
      %v909 = vmul.f32 %v731, 0.2
      %v910 = vmul.f32 %v736, 0.2
      %v911 = vmul.f32 %v739, 0.2
      %v912 = vmul.f32 %v744, 0.2
      %v913 = vmul.f32 %v747, 0.2
      %v914 = vmul.f32 %v752, 0.2
      %v915 = vmul.f32 %v755, 0.2
      %v916 = vmul.f32 %v760, 0.2
      %v917 = vmul.f32 %v763, 0.2
      %v918 = vmul.f32 %v768, 0.2
      %v919 = vmul.f32 %v771, 0.2
      %v920 = vmul.f32 %v776, 0.2
      %v921 = vmul.f32 %v779, 0.2
      %v922 = vmul.f32 %v784, 0.2
      %v923 = vmul.f32 %v787, 0.2
      %v924 = vmul.f32 %v792, 0.2
      %v925 = vmul.f32 %v795, 0.2
      %v926 = vsel %vm798, %v544, %v862
      %v927 = vsel %vm799, %v547, %v863
      %v928 = vsel %vm800, %v552, %v864
      %v929 = vsel %vm801, %v555, %v865
      %v930 = vsel %vm802, %v560, %v866
      %v931 = vsel %vm803, %v563, %v867
      %v932 = vsel %vm804, %v568, %v868
      %v933 = vsel %vm805, %v571, %v869
      %v934 = vsel %vm806, %v576, %v870
      %v935 = vsel %vm807, %v579, %v871
      %v936 = vsel %vm808, %v584, %v872
      %v937 = vsel %vm809, %v587, %v873
      %v938 = vsel %vm810, %v592, %v874
      %v939 = vsel %vm811, %v595, %v875
      %v940 = vsel %vm812, %v600, %v876
      %v941 = vsel %vm813, %v603, %v877
      %v942 = vsel %vm814, %v608, %v878
      %v943 = vsel %vm815, %v611, %v879
      %v944 = vsel %vm816, %v616, %v880
      %v945 = vsel %vm817, %v619, %v881
      %v946 = vsel %vm818, %v624, %v882
      %v947 = vsel %vm819, %v627, %v883
      %v948 = vsel %vm820, %v632, %v884
      %v949 = vsel %vm821, %v635, %v885
      %v950 = vsel %vm822, %v640, %v886
      %v951 = vsel %vm823, %v643, %v887
      %v952 = vsel %vm824, %v648, %v888
      %v953 = vsel %vm825, %v651, %v889
      %v954 = vsel %vm826, %v656, %v890
      %v955 = vsel %vm827, %v659, %v891
      %v956 = vsel %vm828, %v664, %v892
      %v957 = vsel %vm829, %v667, %v893
      %v958 = vsel %vm830, %v672, %v894
      %v959 = vsel %vm831, %v675, %v895
      %v960 = vsel %vm832, %v680, %v896
      %v961 = vsel %vm833, %v683, %v897
      %v962 = vsel %vm834, %v688, %v898
      %v963 = vsel %vm835, %v691, %v899
      %v964 = vsel %vm836, %v696, %v900
      %v965 = vsel %vm837, %v699, %v901
      %v966 = vsel %vm838, %v704, %v902
      %v967 = vsel %vm839, %v707, %v903
      %v968 = vsel %vm840, %v712, %v904
      %v969 = vsel %vm841, %v715, %v905
      %v970 = vsel %vm842, %v720, %v906
      %v971 = vsel %vm843, %v723, %v907
      %v972 = vsel %vm844, %v728, %v908
      %v973 = vsel %vm845, %v731, %v909
      %v974 = vsel %vm846, %v736, %v910
      %v975 = vsel %vm847, %v739, %v911
      %v976 = vsel %vm848, %v744, %v912
      %v977 = vsel %vm849, %v747, %v913
      %v978 = vsel %vm850, %v752, %v914
      %v979 = vsel %vm851, %v755, %v915
      %v980 = vsel %vm852, %v760, %v916
      %v981 = vsel %vm853, %v763, %v917
      %v982 = vsel %vm854, %v768, %v918
      %v983 = vsel %vm855, %v771, %v919
      %v984 = vsel %vm856, %v776, %v920
      %v985 = vsel %vm857, %v779, %v921
      %v986 = vsel %vm858, %v784, %v922
      %v987 = vsel %vm859, %v787, %v923
      %v988 = vsel %vm860, %v792, %v924
      %v989 = vsel %vm861, %v795, %v925
      %vm990 = vcmask 64512
      %991 = vst.msk [vmem:[%s145] sm:$0xff] %vm990, %v926
      %992 = vst.msk [vmem:[%s145 + $0x8] sm:$0xff] %vm990, %v927
      %993 = vst.msk [vmem:[%s145 + $0x10] sm:$0xff] %vm990, %v928
      %994 = vst.msk [vmem:[%s145 + $0x18] sm:$0xff] %vm990, %v929
      %995 = vst.msk [vmem:[%s145 + $0x20] sm:$0xff] %vm990, %v930
      %996 = vst.msk [vmem:[%s145 + $0x28] sm:$0xff] %vm990, %v931
      %997 = vst.msk [vmem:[%s145 + $0x30] sm:$0xff] %vm990, %v932
      %998 = vst.msk [vmem:[%s145 + $0x38] sm:$0xff] %vm990, %v933
      %999 = vst.msk [vmem:[%s145 + $0x40] sm:$0xff] %vm990, %v934
      %1000 = vst.msk [vmem:[%s145 + $0x48] sm:$0xff] %vm990, %v935
      %1001 = vst.msk [vmem:[%s145 + $0x50] sm:$0xff] %vm990, %v936
      %1002 = vst.msk [vmem:[%s145 + $0x58] sm:$0xff] %vm990, %v937
      %1003 = vst.msk [vmem:[%s145 + $0x60] sm:$0xff] %vm990, %v938
      %1004 = vst.msk [vmem:[%s145 + $0x68] sm:$0xff] %vm990, %v939
      %1005 = vst.msk [vmem:[%s145 + $0x70] sm:$0xff] %vm990, %v940
      %1006 = vst.msk [vmem:[%s145 + $0x78] sm:$0xff] %vm990, %v941
      %1007 = vst.msk [vmem:[%s145 + $0x80] sm:$0xff] %vm990, %v942
      %1008 = vst.msk [vmem:[%s145 + $0x88] sm:$0xff] %vm990, %v943
      %1009 = vst.msk [vmem:[%s145 + $0x90] sm:$0xff] %vm990, %v944
      %1010 = vst.msk [vmem:[%s145 + $0x98] sm:$0xff] %vm990, %v945
      %1011 = vst.msk [vmem:[%s145 + $0xa0] sm:$0xff] %vm990, %v946
      %1012 = vst.msk [vmem:[%s145 + $0xa8] sm:$0xff] %vm990, %v947
      %1013 = vst.msk [vmem:[%s145 + $0xb0] sm:$0xff] %vm990, %v948
      %1014 = vst.msk [vmem:[%s145 + $0xb8] sm:$0xff] %vm990, %v949
      %1015 = vst.msk [vmem:[%s145 + $0xc0] sm:$0xff] %vm990, %v950
      %1016 = vst.msk [vmem:[%s145 + $0xc8] sm:$0xff] %vm990, %v951
      %1017 = vst.msk [vmem:[%s145 + $0xd0] sm:$0xff] %vm990, %v952
      %1018 = vst.msk [vmem:[%s145 + $0xd8] sm:$0xff] %vm990, %v953
      %1019 = vst.msk [vmem:[%s145 + $0xe0] sm:$0xff] %vm990, %v954
      %1020 = vst.msk [vmem:[%s145 + $0xe8] sm:$0xff] %vm990, %v955
      %1021 = vst.msk [vmem:[%s145 + $0xf0] sm:$0xff] %vm990, %v956
      %1022 = vst.msk [vmem:[%s145 + $0xf8] sm:$0xff] %vm990, %v957
      %1023 = vst.msk [vmem:[%s145 + $0x100] sm:$0xff] %vm990, %v958
      %1024 = vst.msk [vmem:[%s145 + $0x108] sm:$0xff] %vm990, %v959
      %1025 = vst.msk [vmem:[%s145 + $0x110] sm:$0xff] %vm990, %v960
      %1026 = vst.msk [vmem:[%s145 + $0x118] sm:$0xff] %vm990, %v961
      %1027 = vst.msk [vmem:[%s145 + $0x120] sm:$0xff] %vm990, %v962
      %1028 = vst.msk [vmem:[%s145 + $0x128] sm:$0xff] %vm990, %v963
      %1029 = vst.msk [vmem:[%s145 + $0x130] sm:$0xff] %vm990, %v964
      %1030 = vst.msk [vmem:[%s145 + $0x138] sm:$0xff] %vm990, %v965
      %1031 = vst.msk [vmem:[%s145 + $0x140] sm:$0xff] %vm990, %v966
      %1032 = vst.msk [vmem:[%s145 + $0x148] sm:$0xff] %vm990, %v967
      %1033 = vst.msk [vmem:[%s145 + $0x150] sm:$0xff] %vm990, %v968
      %1034 = vst.msk [vmem:[%s145 + $0x158] sm:$0xff] %vm990, %v969
      %1035 = vst.msk [vmem:[%s145 + $0x160] sm:$0xff] %vm990, %v970
      %1036 = vst.msk [vmem:[%s145 + $0x168] sm:$0xff] %vm990, %v971
      %1037 = vst.msk [vmem:[%s145 + $0x170] sm:$0xff] %vm990, %v972
      %1038 = vst.msk [vmem:[%s145 + $0x178] sm:$0xff] %vm990, %v973
      %1039 = vst.msk [vmem:[%s145 + $0x180] sm:$0xff] %vm990, %v974
      %1040 = vst.msk [vmem:[%s145 + $0x188] sm:$0xff] %vm990, %v975
      %1041 = vst.msk [vmem:[%s145 + $0x190] sm:$0xff] %vm990, %v976
      %1042 = vst.msk [vmem:[%s145 + $0x198] sm:$0xff] %vm990, %v977
      %1043 = vst.msk [vmem:[%s145 + $0x1a0] sm:$0xff] %vm990, %v978
      %1044 = vst.msk [vmem:[%s145 + $0x1a8] sm:$0xff] %vm990, %v979
      %1045 = vst.msk [vmem:[%s145 + $0x1b0] sm:$0xff] %vm990, %v980
      %1046 = vst.msk [vmem:[%s145 + $0x1b8] sm:$0xff] %vm990, %v981
      %1047 = vst.msk [vmem:[%s145 + $0x1c0] sm:$0xff] %vm990, %v982
      %1048 = vst.msk [vmem:[%s145 + $0x1c8] sm:$0xff] %vm990, %v983
      %1049 = vst.msk [vmem:[%s145 + $0x1d0] sm:$0xff] %vm990, %v984
      %1050 = vst.msk [vmem:[%s145 + $0x1d8] sm:$0xff] %vm990, %v985
      %1051 = vst.msk [vmem:[%s145 + $0x1e0] sm:$0xff] %vm990, %v986
      %1052 = vst.msk [vmem:[%s145 + $0x1e8] sm:$0xff] %vm990, %v987
      %1053 = vst.msk [vmem:[%s145 + $0x1f0] sm:$0xff] %vm990, %v988
      %1054 = vst.msk [vmem:[%s145 + $0x1f8] sm:$0xff] %vm990, %v989
      %s1055 = smul.u32 64, %s13
      %p1056 = scmp.lt.s32.totalorder %s1055, 383
      %s1057 = scalar_select %p1056, %s1055, 383
      %s1058 = smul.addr %s1057, 8
      %s1059 = scalar_lea.vmem %s2, %s1058
      // Predicated region
      $region29: #{discriminator_forward.6} parent=27 // pred_check
        %p1060 = pneg %p78
      $region30: #{discriminator_forward.6} parent=27 // pred_check_branch
        %1062 = sbr.rel (%p1060) target = $region32
      $region31: #{discriminator_forward.6} parent=27 // pred_region
        %s1063 = smul.u32 64, %s13
      $region32: #{discriminator_forward.6} parent=27 // pred_fallthru
        _
    $region28: #{discriminator_forward.6} parent=5 // pred_fallthru
      _
    %p1064 = scmp.le.s32.totalorder 2, %s8
    // Predicated region
    $region33: #{discriminator_forward.6} parent=5 // pred_check
      %p1065 = pneg %p1064
    $region34: #{discriminator_forward.6} parent=5 // pred_check_branch
      %1067 = sbr.rel (%p1065) target = $region36
    $region35: #{discriminator_forward.6} parent=5 // pred_region
      %s1068 = ssub.s32 %s8, 2
      // Predicated region
      $region37: #{discriminator_forward.6} parent=35 // pred_check
        %p1069 = pneg %p84
      $region38: #{discriminator_forward.6} parent=35 // pred_check_branch
        %1071 = sbr.rel (%p1069) target = $region40
      $region39: #{discriminator_forward.6} parent=35 // pred_region
        %s1072 = smul.u32 64, %s14
        %p1073 = scmp.lt.s32.totalorder %s1072, 383
        %s1074 = scalar_select %p1073, %s1072, 383
        %s1075 = smul.addr %s1074, 8
        %s1076 = scalar_lea.vmem %s2, %s1075
      $region40: #{discriminator_forward.6} parent=35 // pred_fallthru
        _
    $region36: #{discriminator_forward.6} parent=5 // pred_fallthru
      _
  $region6: #{discriminator_forward.6} parent=0 // loop_footer
    %s12 = sadd.s32 1, %s8
  $region7: #{discriminator_forward.6} parent=0 // loop_footer_branch
    %7 = sbr.rel target = $region3
  $region8: #{discriminator_forward.6} parent=0 // loop_exit
    _

// kernel: discriminator_forward.7
$region0: #{discriminator_forward.7}
  #allocation0 [shape = 'u32[]', space=smem, size = 0x4, offset = 0x4, fixed_abs, tag = 'smem constant byte address 0x4 - core index']
  #allocation1 [shape = 'u32[144,128]{1,0:T(1,128)}', space=vmem, size = 0x12000, scoped, tag = 'internal scratch']
  %s0 = inlined_call_operand.vmem [shape: bf16[768,128], index: 0, kind: input, shape index: {}]
  %s1 = inlined_call_operand.vmem [shape: bf16[128,16], index: 1, kind: input, shape index: {}]
  %s2 = inlined_call_operand.vmem [shape: f32[1,16], index: 2, kind: input, shape index: {}]
  %s3 = inlined_call_operand.vmem [shape: f32[1,16], index: 3, kind: input, shape index: {}]
  %s4 = inlined_call_operand.vmem [shape: f32[768,16], index: 4, kind: output, shape index: {}]
  %s5 = sld [smem:[#allocation0]]
  $region26: #{discriminator_forward.7} parent=0
    _
  %s7 = ssub.s32 1, %s5
  %s8 = scalar_select 0, %s7, %s5
  // Predicated region
  $region2: #{discriminator_forward.7} parent=0 // pred_check
    _
  $region3: #{discriminator_forward.7} parent=0 // pred_check_branch
    %10 = sbr.rel (0) target = $region5
  $region4: #{discriminator_forward.7} parent=0 // pred_region
    _
  $region5: #{discriminator_forward.7} parent=0 // pred_fallthru
    _
  // Predicated region
  $region6: #{discriminator_forward.7} parent=0 // pred_check
    _
  $region7: #{discriminator_forward.7} parent=0 // pred_check_branch
    %12 = sbr.rel (0) target = $region9
  $region8: #{discriminator_forward.7} parent=0 // pred_region
    _
  $region9: #{discriminator_forward.7} parent=0 // pred_fallthru
    _
  // Predicated region
  $region10: #{discriminator_forward.7} parent=0 // pred_check
    _
  $region11: #{discriminator_forward.7} parent=0 // pred_check_branch
    %14 = sbr.rel (0) target = $region13
  $region12: #{discriminator_forward.7} parent=0 // pred_region
    _
  $region13: #{discriminator_forward.7} parent=0 // pred_fallthru
    _
  // Predicated region
  $region14: #{discriminator_forward.7} parent=0 // pred_check
    _
  $region15: #{discriminator_forward.7} parent=0 // pred_check_branch
    %16 = sbr.rel (0) target = $region17
  $region16: #{discriminator_forward.7} parent=0 // pred_region
    _
  $region17: #{discriminator_forward.7} parent=0 // pred_fallthru
    _
  %v18 = vld [vmem:[%s0] sm:$0xf]
  %v19 = vld [vmem:[%s0 + $0x4] sm:$0xf]
  %v20 = vld [vmem:[%s0 + $0x8] sm:$0xf]
  %v21 = vld [vmem:[%s0 + $0xc] sm:$0xf]
  %v22 = vld [vmem:[%s0 + $0x10] sm:$0xf]
  %v23 = vld [vmem:[%s0 + $0x14] sm:$0xf]
  %v24 = vld [vmem:[%s0 + $0x18] sm:$0xf]
  %v25 = vld [vmem:[%s0 + $0x1c] sm:$0xf]
  %v26 = vld [vmem:[%s0 + $0x20] sm:$0xf]
  %v27 = vld [vmem:[%s0 + $0x24] sm:$0xf]
  %v28 = vld [vmem:[%s0 + $0x28] sm:$0xf]
  %v29 = vld [vmem:[%s0 + $0x2c] sm:$0xf]
  %v30 = vld [vmem:[%s0 + $0x30] sm:$0xf]
  %v31 = vld [vmem:[%s0 + $0x34] sm:$0xf]
  %v32 = vld [vmem:[%s0 + $0x38] sm:$0xf]
  %v33 = vld [vmem:[%s0 + $0x3c] sm:$0xf]
  %v34 = vld [vmem:[%s0 + $0x40] sm:$0xf]
  %v35 = vld [vmem:[%s0 + $0x44] sm:$0xf]
  %v36 = vld [vmem:[%s0 + $0x48] sm:$0xf]
  %v37 = vld [vmem:[%s0 + $0x4c] sm:$0xf]
  %v38 = vld [vmem:[%s0 + $0x50] sm:$0xf]
  %v39 = vld [vmem:[%s0 + $0x54] sm:$0xf]
  %v40 = vld [vmem:[%s0 + $0x58] sm:$0xf]
  %v41 = vld [vmem:[%s0 + $0x5c] sm:$0xf]
  %v42 = vld [vmem:[%s0 + $0x60] sm:$0xf]
  %v43 = vld [vmem:[%s0 + $0x64] sm:$0xf]
  %v44 = vld [vmem:[%s0 + $0x68] sm:$0xf]
  %v45 = vld [vmem:[%s0 + $0x6c] sm:$0xf]
  %v46 = vld [vmem:[%s0 + $0x70] sm:$0xf]
  %v47 = vld [vmem:[%s0 + $0x74] sm:$0xf]
  %v48 = vld [vmem:[%s0 + $0x78] sm:$0xf]
  %v49 = vld [vmem:[%s0 + $0x7c] sm:$0xf]
  %v50 = vld [vmem:[%s0 + $0x80] sm:$0xf]
  %v51 = vld [vmem:[%s0 + $0x84] sm:$0xf]
  %v52 = vld [vmem:[%s0 + $0x88] sm:$0xf]
  %v53 = vld [vmem:[%s0 + $0x8c] sm:$0xf]
  %v54 = vld [vmem:[%s0 + $0x90] sm:$0xf]
  %v55 = vld [vmem:[%s0 + $0x94] sm:$0xf]
  %v56 = vld [vmem:[%s0 + $0x98] sm:$0xf]
  %v57 = vld [vmem:[%s0 + $0x9c] sm:$0xf]
  %v58 = vld [vmem:[%s0 + $0xa0] sm:$0xf]
  %v59 = vld [vmem:[%s0 + $0xa4] sm:$0xf]
  %v60 = vld [vmem:[%s0 + $0xa8] sm:$0xf]
  %v61 = vld [vmem:[%s0 + $0xac] sm:$0xf]
  %v62 = vld [vmem:[%s0 + $0xb0] sm:$0xf]
  %v63 = vld [vmem:[%s0 + $0xb4] sm:$0xf]
  %v64 = vld [vmem:[%s0 + $0xb8] sm:$0xf]
  %v65 = vld [vmem:[%s0 + $0xbc] sm:$0xf]
  %v66 = vld [vmem:[%s0 + $0xc0] sm:$0xf]
  %v67 = vld [vmem:[%s0 + $0xc4] sm:$0xf]
  %v68 = vld [vmem:[%s0 + $0xc8] sm:$0xf]
  %v69 = vld [vmem:[%s0 + $0xcc] sm:$0xf]
  %v70 = vld [vmem:[%s0 + $0xd0] sm:$0xf]
  %v71 = vld [vmem:[%s0 + $0xd4] sm:$0xf]
  %v72 = vld [vmem:[%s0 + $0xd8] sm:$0xf]
  %v73 = vld [vmem:[%s0 + $0xdc] sm:$0xf]
  %v74 = vld [vmem:[%s0 + $0xe0] sm:$0xf]
  %v75 = vld [vmem:[%s0 + $0xe4] sm:$0xf]
  %v76 = vld [vmem:[%s0 + $0xe8] sm:$0xf]
  %v77 = vld [vmem:[%s0 + $0xec] sm:$0xf]
  %v78 = vld [vmem:[%s0 + $0xf0] sm:$0xf]
  %v79 = vld [vmem:[%s0 + $0xf4] sm:$0xf]
  %v80 = vld [vmem:[%s0 + $0xf8] sm:$0xf]
  %v81 = vld [vmem:[%s0 + $0xfc] sm:$0xf]
  %v82 = vld [vmem:[%s0 + $0x100] sm:$0xf]
  %v83 = vld [vmem:[%s0 + $0x104] sm:$0xf]
  %v84 = vld [vmem:[%s0 + $0x108] sm:$0xf]
  %v85 = vld [vmem:[%s0 + $0x10c] sm:$0xf]
  %v86 = vld [vmem:[%s0 + $0x110] sm:$0xf]
  %v87 = vld [vmem:[%s0 + $0x114] sm:$0xf]
  %v88 = vld [vmem:[%s0 + $0x118] sm:$0xf]
  %v89 = vld [vmem:[%s0 + $0x11c] sm:$0xf]
  %v90 = vld [vmem:[%s0 + $0x120] sm:$0xf]
  %v91 = vld [vmem:[%s0 + $0x124] sm:$0xf]
  %v92 = vld [vmem:[%s0 + $0x128] sm:$0xf]
  %v93 = vld [vmem:[%s0 + $0x12c] sm:$0xf]
  %v94 = vld [vmem:[%s0 + $0x130] sm:$0xf]
  %v95 = vld [vmem:[%s0 + $0x134] sm:$0xf]
  %v96 = vld [vmem:[%s0 + $0x138] sm:$0xf]
  %v97 = vld [vmem:[%s0 + $0x13c] sm:$0xf]
  %v98 = vld [vmem:[%s0 + $0x140] sm:$0xf]
  %v99 = vld [vmem:[%s0 + $0x144] sm:$0xf]
  %v100 = vld [vmem:[%s0 + $0x148] sm:$0xf]
  %v101 = vld [vmem:[%s0 + $0x14c] sm:$0xf]
  %v102 = vld [vmem:[%s0 + $0x150] sm:$0xf]
  %v103 = vld [vmem:[%s0 + $0x154] sm:$0xf]
  %v104 = vld [vmem:[%s0 + $0x158] sm:$0xf]
  %v105 = vld [vmem:[%s0 + $0x15c] sm:$0xf]
  %v106 = vld [vmem:[%s0 + $0x160] sm:$0xf]
  %v107 = vld [vmem:[%s0 + $0x164] sm:$0xf]
  %v108 = vld [vmem:[%s0 + $0x168] sm:$0xf]
  %v109 = vld [vmem:[%s0 + $0x16c] sm:$0xf]
  %v110 = vld [vmem:[%s0 + $0x170] sm:$0xf]
  %v111 = vld [vmem:[%s0 + $0x174] sm:$0xf]
  %v112 = vld [vmem:[%s0 + $0x178] sm:$0xf]
  %v113 = vld [vmem:[%s0 + $0x17c] sm:$0xf]
  %v114 = vld [vmem:[%s1] sm:$0xf]
  %v115 = vld [vmem:[%s1 + $0x4] sm:$0xf]
  %v116 = vld [vmem:[%s1 + $0x8] sm:$0xf]
  %v117 = vld [vmem:[%s1 + $0xc] sm:$0xf]
  %v118 = vld [vmem:[%s1 + $0x10] sm:$0xf]
  %v119 = vld [vmem:[%s1 + $0x14] sm:$0xf]
  %v120 = vld [vmem:[%s1 + $0x18] sm:$0xf]
  %v121 = vld [vmem:[%s1 + $0x1c] sm:$0xf]
  %v122 = vld [vmem:[%s1 + $0x20] sm:$0xf]
  %v123 = vld [vmem:[%s1 + $0x24] sm:$0xf]
  %v124 = vld [vmem:[%s1 + $0x28] sm:$0xf]
  %v125 = vld [vmem:[%s1 + $0x2c] sm:$0xf]
  %v126 = vld [vmem:[%s1 + $0x30] sm:$0xf]
  %v127 = vld [vmem:[%s1 + $0x34] sm:$0xf]
  %v128 = vld [vmem:[%s1 + $0x38] sm:$0xf]
  %v129 = vld [vmem:[%s1 + $0x3c] sm:$0xf]
  %v226 = vunpack.c.l.b16 %v18
  %v227 = vunpack.c.l.b16 %v19
  %v228 = vunpack.c.l.b16 %v20
  %v229 = vunpack.c.l.b16 %v21
  %v230 = vunpack.c.l.b16 %v22
  %v231 = vunpack.c.l.b16 %v23
  %v232 = vunpack.c.l.b16 %v24
  %v233 = vunpack.c.l.b16 %v25
  %v234 = vunpack.c.l.b16 %v26
  %v235 = vunpack.c.l.b16 %v27
  %v236 = vunpack.c.l.b16 %v28
  %v237 = vunpack.c.l.b16 %v29
  %v238 = vunpack.c.l.b16 %v30
  %v239 = vunpack.c.l.b16 %v31
  %v240 = vunpack.c.l.b16 %v32
  %v241 = vunpack.c.l.b16 %v33
  %v242 = vunpack.c.l.b16 %v34
  %v243 = vunpack.c.l.b16 %v35
  %v244 = vunpack.c.l.b16 %v36
  %v245 = vunpack.c.l.b16 %v37
  %v246 = vunpack.c.l.b16 %v38
  %v247 = vunpack.c.l.b16 %v39
  %v248 = vunpack.c.l.b16 %v40
  %v249 = vunpack.c.l.b16 %v41
  %v250 = vunpack.c.l.b16 %v42
  %v251 = vunpack.c.l.b16 %v43
  %v252 = vunpack.c.l.b16 %v44
  %v253 = vunpack.c.l.b16 %v45
  %v254 = vunpack.c.l.b16 %v46
  %v255 = vunpack.c.l.b16 %v47
  %v256 = vunpack.c.l.b16 %v48
  %v257 = vunpack.c.l.b16 %v49
  %v258 = vunpack.c.l.b16 %v50
  %v259 = vunpack.c.l.b16 %v51
  %v260 = vunpack.c.l.b16 %v52
  %v261 = vunpack.c.l.b16 %v53
  %v262 = vunpack.c.l.b16 %v54
  %v263 = vunpack.c.l.b16 %v55
  %v264 = vunpack.c.l.b16 %v56
  %v265 = vunpack.c.l.b16 %v57
  %v266 = vunpack.c.l.b16 %v58
  %v267 = vunpack.c.l.b16 %v59
  %v268 = vunpack.c.l.b16 %v60
  %v269 = vunpack.c.l.b16 %v61
  %v270 = vunpack.c.l.b16 %v62
  %v271 = vunpack.c.l.b16 %v63
  %v272 = vunpack.c.l.b16 %v64
  %v273 = vunpack.c.l.b16 %v65
  %v274 = vunpack.c.l.b16 %v66
  %v275 = vunpack.c.l.b16 %v67
  %v276 = vunpack.c.l.b16 %v68
  %v277 = vunpack.c.l.b16 %v69
  %v278 = vunpack.c.l.b16 %v70
  %v279 = vunpack.c.l.b16 %v71
  %v280 = vunpack.c.l.b16 %v72
  %v281 = vunpack.c.l.b16 %v73
  %v282 = vunpack.c.l.b16 %v74
  %v283 = vunpack.c.l.b16 %v75
  %v284 = vunpack.c.l.b16 %v76
  %v285 = vunpack.c.l.b16 %v77
  %v286 = vunpack.c.l.b16 %v78
  %v287 = vunpack.c.l.b16 %v79
  %v288 = vunpack.c.l.b16 %v80
  %v289 = vunpack.c.l.b16 %v81
  %v290 = vunpack.c.l.b16 %v82
  %v291 = vunpack.c.l.b16 %v83
  %v292 = vunpack.c.l.b16 %v84
  %v293 = vunpack.c.l.b16 %v85
  %v294 = vunpack.c.l.b16 %v86
  %v295 = vunpack.c.l.b16 %v87
  %v296 = vunpack.c.l.b16 %v88
  %v297 = vunpack.c.l.b16 %v89
  %v298 = vunpack.c.l.b16 %v90
  %v299 = vunpack.c.l.b16 %v91
  %v300 = vunpack.c.l.b16 %v92
  %v301 = vunpack.c.l.b16 %v93
  %v302 = vunpack.c.l.b16 %v94
  %v303 = vunpack.c.l.b16 %v95
  %v304 = vunpack.c.l.b16 %v96
  %v305 = vunpack.c.l.b16 %v97
  %v306 = vunpack.c.l.b16 %v98
  %v307 = vunpack.c.l.b16 %v99
  %v308 = vunpack.c.l.b16 %v100
  %v309 = vunpack.c.l.b16 %v101
  %v310 = vunpack.c.l.b16 %v102
  %v311 = vunpack.c.l.b16 %v103
  %v312 = vunpack.c.l.b16 %v104
  %v313 = vunpack.c.l.b16 %v105
  %v314 = vunpack.c.l.b16 %v106
  %v315 = vunpack.c.l.b16 %v107
  %v316 = vunpack.c.l.b16 %v108
  %v317 = vunpack.c.l.b16 %v109
  %v318 = vunpack.c.l.b16 %v110
  %v319 = vunpack.c.l.b16 %v111
  %v320 = vunpack.c.l.b16 %v112
  %v321 = vunpack.c.l.b16 %v113
  %v322 = vpack.c.b16 %v227, %v226
  %v323 = vpack.c.b16 %v229, %v228
  %v324 = vpack.c.b16 %v231, %v230
  %v325 = vpack.c.b16 %v233, %v232
  %v326 = vpack.c.b16 %v235, %v234
  %v327 = vpack.c.b16 %v237, %v236
  %v328 = vpack.c.b16 %v239, %v238
  %v329 = vpack.c.b16 %v241, %v240
  %v330 = vpack.c.b16 %v243, %v242
  %v331 = vpack.c.b16 %v245, %v244
  %v332 = vpack.c.b16 %v247, %v246
  %v333 = vpack.c.b16 %v249, %v248
  %v334 = vpack.c.b16 %v251, %v250
  %v335 = vpack.c.b16 %v253, %v252
  %v336 = vpack.c.b16 %v255, %v254
  %v337 = vpack.c.b16 %v257, %v256
  %v338 = vpack.c.b16 %v259, %v258
  %v339 = vpack.c.b16 %v261, %v260
  %v340 = vpack.c.b16 %v263, %v262
  %v341 = vpack.c.b16 %v265, %v264
  %v342 = vpack.c.b16 %v267, %v266
  %v343 = vpack.c.b16 %v269, %v268
  %v344 = vpack.c.b16 %v271, %v270
  %v345 = vpack.c.b16 %v273, %v272
  %v346 = vpack.c.b16 %v275, %v274
  %v347 = vpack.c.b16 %v277, %v276
  %v348 = vpack.c.b16 %v279, %v278
  %v349 = vpack.c.b16 %v281, %v280
  %v350 = vpack.c.b16 %v283, %v282
  %v351 = vpack.c.b16 %v285, %v284
  %v352 = vpack.c.b16 %v287, %v286
  %v353 = vpack.c.b16 %v289, %v288
  %v354 = vpack.c.b16 %v291, %v290
  %v355 = vpack.c.b16 %v293, %v292
  %v356 = vpack.c.b16 %v295, %v294
  %v357 = vpack.c.b16 %v297, %v296
  %v358 = vpack.c.b16 %v299, %v298
  %v359 = vpack.c.b16 %v301, %v300
  %v360 = vpack.c.b16 %v303, %v302
  %v361 = vpack.c.b16 %v305, %v304
  %v362 = vpack.c.b16 %v307, %v306
  %v363 = vpack.c.b16 %v309, %v308
  %v364 = vpack.c.b16 %v311, %v310
  %v365 = vpack.c.b16 %v313, %v312
  %v366 = vpack.c.b16 %v315, %v314
  %v367 = vpack.c.b16 %v317, %v316
  %v368 = vpack.c.b16 %v319, %v318
  %v369 = vpack.c.b16 %v321, %v320
  %v434 = vunpack.c.l.b16 %v114
  %v435 = vunpack.c.l.b16 %v115
  %v436 = vunpack.c.l.b16 %v116
  %v437 = vunpack.c.l.b16 %v117
  %v438 = vunpack.c.l.b16 %v118
  %v439 = vunpack.c.l.b16 %v119
  %v440 = vunpack.c.l.b16 %v120
  %v441 = vunpack.c.l.b16 %v121
  %v442 = vunpack.c.l.b16 %v122
  %v443 = vunpack.c.l.b16 %v123
  %v444 = vunpack.c.l.b16 %v124
  %v445 = vunpack.c.l.b16 %v125
  %v446 = vunpack.c.l.b16 %v126
  %v447 = vunpack.c.l.b16 %v127
  %v448 = vunpack.c.l.b16 %v128
  %v449 = vunpack.c.l.b16 %v129
  %v450 = vpack.c.b16 %v435, %v434
  %v451 = vpack.c.b16 %v437, %v436
  %v452 = vpack.c.b16 %v439, %v438
  %v453 = vpack.c.b16 %v441, %v440
  %v454 = vpack.c.b16 %v443, %v442
  %v455 = vpack.c.b16 %v445, %v444
  %v456 = vpack.c.b16 %v447, %v446
  %v457 = vpack.c.b16 %v449, %v448
  %466 = vmatprep.subr.bf16.mxu0 0
  %467 = vmatpush1.bf16.msra.mxu0 %v450
  %468 = vmatprep.subr.bf16.mxu0 0
  %469 = vmatpush1.bf16.msra.mxu0 %v451
  %470 = vmatprep.subr.bf16.mxu0 0
  %471 = vmatpush1.bf16.msra.mxu0 %v452
  %472 = vmatprep.subr.bf16.mxu0 0
  %473 = vmatpush1.bf16.msra.mxu0 %v453
  %474 = vmatprep.subr.bf16.mxu0 0
  %475 = vmatpush1.bf16.msra.mxu0 %v454
  %476 = vmatprep.subr.bf16.mxu0 0
  %477 = vmatpush1.bf16.msra.mxu0 %v455
  %478 = vmatprep.subr.bf16.mxu0 0
  %479 = vmatpush1.bf16.msra.mxu0 %v456
  %480 = vmatprep.subr.bf16.mxu0 0
  %481 = vmatpush1.bf16.msra.mxu0 %v457
  %482 = vmatprep.subr.bf16.mxu0 0
  %483 = vmatpush1.bf16.msra.mxu0 0
  %484 = vmatprep.subr.bf16.mxu0 0
  %485 = vmatpush1.bf16.msra.mxu0 0
  %486 = vmatprep.subr.bf16.mxu0 0
  %487 = vmatpush1.bf16.msra.mxu0 0
  %488 = vmatprep.subr.bf16.mxu0 0
  %489 = vmatpush1.bf16.msra.mxu0 0
  %490 = vmatprep.subr.bf16.mxu0 0
  %491 = vmatpush1.bf16.msra.mxu0 0
  %492 = vmatprep.subr.bf16.mxu0 0
  %493 = vmatpush1.bf16.msra.mxu0 0
  %494 = vmatprep.subr.bf16.mxu0 0
  %495 = vmatpush1.bf16.msra.mxu0 0
  %496 = vmatprep.subr.bf16.mxu0 0
  %497 = vmatpush1.bf16.msra.mxu0 0
  %498 = vmatprep.mubr.bf16.mxu0 0
  %499 = vmatmul.mubr.bf16.gmra.mrb[0].mxu0 %v322
  %v500 = vpop.f32.mrb[0].mxu0
  %v501 = vadd.f32 0.0, %v500
  %v502 = vpop.f32.mrb[0].mxu0
  %v503 = vpop.f32.mrb[0].mxu0
  %v504 = vadd.f32 0.0, %v503
  %v505 = vpop.f32.mrb[0].mxu0
  %506 = vmatprep.mubr.bf16.mxu0 0
  %507 = vmatmul.mubr.bf16.gmra.mrb[0].mxu0 %v323
  %v508 = vpop.f32.mrb[0].mxu0
  %v509 = vadd.f32 0.0, %v508
  %v510 = vpop.f32.mrb[0].mxu0
  %v511 = vpop.f32.mrb[0].mxu0
  %v512 = vadd.f32 0.0, %v511
  %v513 = vpop.f32.mrb[0].mxu0
  %514 = vmatprep.mubr.bf16.mxu0 0
  %515 = vmatmul.mubr.bf16.gmra.mrb[0].mxu0 %v324
  %v516 = vpop.f32.mrb[0].mxu0
  %v517 = vadd.f32 0.0, %v516
  %v518 = vpop.f32.mrb[0].mxu0
  %v519 = vpop.f32.mrb[0].mxu0
  %v520 = vadd.f32 0.0, %v519
  %v521 = vpop.f32.mrb[0].mxu0
  %522 = vmatprep.mubr.bf16.mxu0 0
  %523 = vmatmul.mubr.bf16.gmra.mrb[0].mxu0 %v325
  %v524 = vpop.f32.mrb[0].mxu0
  %v525 = vadd.f32 0.0, %v524
  %v526 = vpop.f32.mrb[0].mxu0
  %v527 = vpop.f32.mrb[0].mxu0
  %v528 = vadd.f32 0.0, %v527
  %v529 = vpop.f32.mrb[0].mxu0
  %530 = vmatprep.mubr.bf16.mxu0 0
  %531 = vmatmul.mubr.bf16.gmra.mrb[0].mxu0 %v326
  %v532 = vpop.f32.mrb[0].mxu0
  %v533 = vadd.f32 0.0, %v532
  %v534 = vpop.f32.mrb[0].mxu0
  %v535 = vpop.f32.mrb[0].mxu0
  %v536 = vadd.f32 0.0, %v535
  %v537 = vpop.f32.mrb[0].mxu0
  %538 = vmatprep.mubr.bf16.mxu0 0
  %539 = vmatmul.mubr.bf16.gmra.mrb[0].mxu0 %v327
  %v540 = vpop.f32.mrb[0].mxu0
  %v541 = vadd.f32 0.0, %v540
  %v542 = vpop.f32.mrb[0].mxu0
  %v543 = vpop.f32.mrb[0].mxu0
  %v544 = vadd.f32 0.0, %v543
  %v545 = vpop.f32.mrb[0].mxu0
  %546 = vmatprep.mubr.bf16.mxu0 0
  %547 = vmatmul.mubr.bf16.gmra.mrb[0].mxu0 %v328
  %v548 = vpop.f32.mrb[0].mxu0
  %v549 = vadd.f32 0.0, %v548
  %v550 = vpop.f32.mrb[0].mxu0
  %v551 = vpop.f32.mrb[0].mxu0
  %v552 = vadd.f32 0.0, %v551
  %v553 = vpop.f32.mrb[0].mxu0
  %554 = vmatprep.mubr.bf16.mxu0 0
  %555 = vmatmul.mubr.bf16.gmra.mrb[0].mxu0 %v329
  %v556 = vpop.f32.mrb[0].mxu0
  %v557 = vadd.f32 0.0, %v556
  %v558 = vpop.f32.mrb[0].mxu0
  %v559 = vpop.f32.mrb[0].mxu0
  %v560 = vadd.f32 0.0, %v559
  %v561 = vpop.f32.mrb[0].mxu0
  %562 = vmatprep.mubr.bf16.mxu0 0
  %563 = vmatmul.mubr.bf16.gmra.mrb[0].mxu0 %v330
  %v564 = vpop.f32.mrb[0].mxu0
  %v565 = vadd.f32 0.0, %v564
  %v566 = vpop.f32.mrb[0].mxu0
  %v567 = vpop.f32.mrb[0].mxu0
  %v568 = vadd.f32 0.0, %v567
  %v569 = vpop.f32.mrb[0].mxu0
  %570 = vmatprep.mubr.bf16.mxu0 0
  %571 = vmatmul.mubr.bf16.gmra.mrb[0].mxu0 %v331
  %v572 = vpop.f32.mrb[0].mxu0
  %v573 = vadd.f32 0.0, %v572
  %v574 = vpop.f32.mrb[0].mxu0
  %v575 = vpop.f32.mrb[0].mxu0
  %v576 = vadd.f32 0.0, %v575
  %v577 = vpop.f32.mrb[0].mxu0
  %578 = vmatprep.mubr.bf16.mxu0 0
  %579 = vmatmul.mubr.bf16.gmra.mrb[0].mxu0 %v332
  %v580 = vpop.f32.mrb[0].mxu0
  %v581 = vadd.f32 0.0, %v580
  %v582 = vpop.f32.mrb[0].mxu0
  %v583 = vpop.f32.mrb[0].mxu0
  %v584 = vadd.f32 0.0, %v583
  %v585 = vpop.f32.mrb[0].mxu0
  %586 = vmatprep.mubr.bf16.mxu0 0
  %587 = vmatmul.mubr.bf16.gmra.mrb[0].mxu0 %v333
  %v588 = vpop.f32.mrb[0].mxu0
  %v589 = vadd.f32 0.0, %v588
  %v590 = vpop.f32.mrb[0].mxu0
  %v591 = vpop.f32.mrb[0].mxu0
  %v592 = vadd.f32 0.0, %v591
  %v593 = vpop.f32.mrb[0].mxu0
  %594 = vmatprep.mubr.bf16.mxu0 0
  %595 = vmatmul.mubr.bf16.gmra.mrb[0].mxu0 %v334
  %v596 = vpop.f32.mrb[0].mxu0
  %v597 = vadd.f32 0.0, %v596
  %v598 = vpop.f32.mrb[0].mxu0
  %v599 = vpop.f32.mrb[0].mxu0
  %v600 = vadd.f32 0.0, %v599
  %v601 = vpop.f32.mrb[0].mxu0
  %602 = vmatprep.mubr.bf16.mxu0 0
  %603 = vmatmul.mubr.bf16.gmra.mrb[0].mxu0 %v335
  %v604 = vpop.f32.mrb[0].mxu0
  %v605 = vadd.f32 0.0, %v604
  %v606 = vpop.f32.mrb[0].mxu0
  %v607 = vpop.f32.mrb[0].mxu0
  %v608 = vadd.f32 0.0, %v607
  %v609 = vpop.f32.mrb[0].mxu0
  %610 = vmatprep.mubr.bf16.mxu0 0
  %611 = vmatmul.mubr.bf16.gmra.mrb[0].mxu0 %v336
  %v612 = vpop.f32.mrb[0].mxu0
  %v613 = vadd.f32 0.0, %v612
  %v614 = vpop.f32.mrb[0].mxu0
  %v615 = vpop.f32.mrb[0].mxu0
  %v616 = vadd.f32 0.0, %v615
  %v617 = vpop.f32.mrb[0].mxu0
  %618 = vmatprep.mubr.bf16.mxu0 0
  %619 = vmatmul.mubr.bf16.gmra.mrb[0].mxu0 %v337
  %v620 = vpop.f32.mrb[0].mxu0
  %v621 = vadd.f32 0.0, %v620
  %v622 = vpop.f32.mrb[0].mxu0
  %v623 = vpop.f32.mrb[0].mxu0
  %v624 = vadd.f32 0.0, %v623
  %v625 = vpop.f32.mrb[0].mxu0
  %626 = vmatprep.mubr.bf16.mxu0 0
  %627 = vmatmul.mubr.bf16.gmra.mrb[0].mxu0 %v338
  %v628 = vpop.f32.mrb[0].mxu0
  %v629 = vadd.f32 0.0, %v628
  %v630 = vpop.f32.mrb[0].mxu0
  %v631 = vpop.f32.mrb[0].mxu0
  %v632 = vadd.f32 0.0, %v631
  %v633 = vpop.f32.mrb[0].mxu0
  %634 = vmatprep.mubr.bf16.mxu0 0
  %635 = vmatmul.mubr.bf16.gmra.mrb[0].mxu0 %v339
  %v636 = vpop.f32.mrb[0].mxu0
  %v637 = vadd.f32 0.0, %v636
  %v638 = vpop.f32.mrb[0].mxu0
  %v639 = vpop.f32.mrb[0].mxu0
  %v640 = vadd.f32 0.0, %v639
  %v641 = vpop.f32.mrb[0].mxu0
  %642 = vmatprep.mubr.bf16.mxu0 0
  %643 = vmatmul.mubr.bf16.gmra.mrb[0].mxu0 %v340
  %v644 = vpop.f32.mrb[0].mxu0
  %v645 = vadd.f32 0.0, %v644
  %v646 = vpop.f32.mrb[0].mxu0
  %v647 = vpop.f32.mrb[0].mxu0
  %v648 = vadd.f32 0.0, %v647
  %v649 = vpop.f32.mrb[0].mxu0
  %650 = vmatprep.mubr.bf16.mxu0 0
  %651 = vmatmul.mubr.bf16.gmra.mrb[0].mxu0 %v341
  %v652 = vpop.f32.mrb[0].mxu0
  %v653 = vadd.f32 0.0, %v652
  %v654 = vpop.f32.mrb[0].mxu0
  %v655 = vpop.f32.mrb[0].mxu0
  %v656 = vadd.f32 0.0, %v655
  %v657 = vpop.f32.mrb[0].mxu0
  %658 = vmatprep.mubr.bf16.mxu0 0
  %659 = vmatmul.mubr.bf16.gmra.mrb[0].mxu0 %v342
  %v660 = vpop.f32.mrb[0].mxu0
  %v661 = vadd.f32 0.0, %v660
  %v662 = vpop.f32.mrb[0].mxu0
  %v663 = vpop.f32.mrb[0].mxu0
  %v664 = vadd.f32 0.0, %v663
  %v665 = vpop.f32.mrb[0].mxu0
  %666 = vmatprep.mubr.bf16.mxu0 0
  %667 = vmatmul.mubr.bf16.gmra.mrb[0].mxu0 %v343
  %v668 = vpop.f32.mrb[0].mxu0
  %v669 = vadd.f32 0.0, %v668
  %v670 = vpop.f32.mrb[0].mxu0
  %v671 = vpop.f32.mrb[0].mxu0
  %v672 = vadd.f32 0.0, %v671
  %v673 = vpop.f32.mrb[0].mxu0
  %674 = vmatprep.mubr.bf16.mxu0 0
  %675 = vmatmul.mubr.bf16.gmra.mrb[0].mxu0 %v344
  %v676 = vpop.f32.mrb[0].mxu0
  %v677 = vadd.f32 0.0, %v676
  %v678 = vpop.f32.mrb[0].mxu0
  %v679 = vpop.f32.mrb[0].mxu0
  %v680 = vadd.f32 0.0, %v679
  %v681 = vpop.f32.mrb[0].mxu0
  %682 = vmatprep.mubr.bf16.mxu0 0
  %683 = vmatmul.mubr.bf16.gmra.mrb[0].mxu0 %v345
  %v684 = vpop.f32.mrb[0].mxu0
  %v685 = vadd.f32 0.0, %v684
  %v686 = vpop.f32.mrb[0].mxu0
  %v687 = vpop.f32.mrb[0].mxu0
  %v688 = vadd.f32 0.0, %v687
  %v689 = vpop.f32.mrb[0].mxu0
  %690 = vmatprep.mubr.bf16.mxu0 0
  %691 = vmatmul.mubr.bf16.gmra.mrb[0].mxu0 %v346
  %v692 = vpop.f32.mrb[0].mxu0
  %v693 = vadd.f32 0.0, %v692
  %v694 = vpop.f32.mrb[0].mxu0
  %v695 = vpop.f32.mrb[0].mxu0
  %v696 = vadd.f32 0.0, %v695
  %v697 = vpop.f32.mrb[0].mxu0
  %698 = vmatprep.mubr.bf16.mxu0 0
  %699 = vmatmul.mubr.bf16.gmra.mrb[0].mxu0 %v347
  %v700 = vpop.f32.mrb[0].mxu0
  %v701 = vadd.f32 0.0, %v700
  %v702 = vpop.f32.mrb[0].mxu0
  %v703 = vpop.f32.mrb[0].mxu0
  %v704 = vadd.f32 0.0, %v703
  %v705 = vpop.f32.mrb[0].mxu0
  %706 = vmatprep.mubr.bf16.mxu0 0
  %707 = vmatmul.mubr.bf16.gmra.mrb[0].mxu0 %v348
  %v708 = vpop.f32.mrb[0].mxu0
  %v709 = vadd.f32 0.0, %v708
  %v710 = vpop.f32.mrb[0].mxu0
  %v711 = vpop.f32.mrb[0].mxu0
  %v712 = vadd.f32 0.0, %v711
  %v713 = vpop.f32.mrb[0].mxu0
  %714 = vmatprep.mubr.bf16.mxu0 0
  %715 = vmatmul.mubr.bf16.gmra.mrb[0].mxu0 %v349
  %v716 = vpop.f32.mrb[0].mxu0
  %v717 = vadd.f32 0.0, %v716
  %v718 = vpop.f32.mrb[0].mxu0
  %v719 = vpop.f32.mrb[0].mxu0
  %v720 = vadd.f32 0.0, %v719
  %v721 = vpop.f32.mrb[0].mxu0
  %722 = vmatprep.mubr.bf16.mxu0 0
  %723 = vmatmul.mubr.bf16.gmra.mrb[0].mxu0 %v350
  %v724 = vpop.f32.mrb[0].mxu0
  %v725 = vadd.f32 0.0, %v724
  %v726 = vpop.f32.mrb[0].mxu0
  %v727 = vpop.f32.mrb[0].mxu0
  %v728 = vadd.f32 0.0, %v727
  %v729 = vpop.f32.mrb[0].mxu0
  %730 = vmatprep.mubr.bf16.mxu0 0
  %731 = vmatmul.mubr.bf16.gmra.mrb[0].mxu0 %v351
  %v732 = vpop.f32.mrb[0].mxu0
  %v733 = vadd.f32 0.0, %v732
  %v734 = vpop.f32.mrb[0].mxu0
  %v735 = vpop.f32.mrb[0].mxu0
  %v736 = vadd.f32 0.0, %v735
  %v737 = vpop.f32.mrb[0].mxu0
  %738 = vmatprep.mubr.bf16.mxu0 0
  %739 = vmatmul.mubr.bf16.gmra.mrb[0].mxu0 %v352
  %v740 = vpop.f32.mrb[0].mxu0
  %v741 = vadd.f32 0.0, %v740
  %v742 = vpop.f32.mrb[0].mxu0
  %v743 = vpop.f32.mrb[0].mxu0
  %v744 = vadd.f32 0.0, %v743
  %v745 = vpop.f32.mrb[0].mxu0
  %746 = vmatprep.mubr.bf16.mxu0 0
  %747 = vmatmul.mubr.bf16.gmra.mrb[0].mxu0 %v353
  %v748 = vpop.f32.mrb[0].mxu0
  %v749 = vadd.f32 0.0, %v748
  %v750 = vpop.f32.mrb[0].mxu0
  %v751 = vpop.f32.mrb[0].mxu0
  %v752 = vadd.f32 0.0, %v751
  %v753 = vpop.f32.mrb[0].mxu0
  %754 = vmatprep.mubr.bf16.mxu0 0
  %755 = vmatmul.mubr.bf16.gmra.mrb[0].mxu0 %v354
  %v756 = vpop.f32.mrb[0].mxu0
  %v757 = vadd.f32 0.0, %v756
  %v758 = vpop.f32.mrb[0].mxu0
  %v759 = vpop.f32.mrb[0].mxu0
  %v760 = vadd.f32 0.0, %v759
  %v761 = vpop.f32.mrb[0].mxu0
  %762 = vmatprep.mubr.bf16.mxu0 0
  %763 = vmatmul.mubr.bf16.gmra.mrb[0].mxu0 %v355
  %v764 = vpop.f32.mrb[0].mxu0
  %v765 = vadd.f32 0.0, %v764
  %v766 = vpop.f32.mrb[0].mxu0
  %v767 = vpop.f32.mrb[0].mxu0
  %v768 = vadd.f32 0.0, %v767
  %v769 = vpop.f32.mrb[0].mxu0
  %770 = vmatprep.mubr.bf16.mxu0 0
  %771 = vmatmul.mubr.bf16.gmra.mrb[0].mxu0 %v356
  %v772 = vpop.f32.mrb[0].mxu0
  %v773 = vadd.f32 0.0, %v772
  %v774 = vpop.f32.mrb[0].mxu0
  %v775 = vpop.f32.mrb[0].mxu0
  %v776 = vadd.f32 0.0, %v775
  %v777 = vpop.f32.mrb[0].mxu0
  %778 = vmatprep.mubr.bf16.mxu0 0
  %779 = vmatmul.mubr.bf16.gmra.mrb[0].mxu0 %v357
  %v780 = vpop.f32.mrb[0].mxu0
  %v781 = vadd.f32 0.0, %v780
  %v782 = vpop.f32.mrb[0].mxu0
  %v783 = vpop.f32.mrb[0].mxu0
  %v784 = vadd.f32 0.0, %v783
  %v785 = vpop.f32.mrb[0].mxu0
  %786 = vmatprep.mubr.bf16.mxu0 0
  %787 = vmatmul.mubr.bf16.gmra.mrb[0].mxu0 %v358
  %v788 = vpop.f32.mrb[0].mxu0
  %v789 = vadd.f32 0.0, %v788
  %v790 = vpop.f32.mrb[0].mxu0
  %v791 = vpop.f32.mrb[0].mxu0
  %v792 = vadd.f32 0.0, %v791
  %v793 = vpop.f32.mrb[0].mxu0
  %794 = vmatprep.mubr.bf16.mxu0 0
  %795 = vmatmul.mubr.bf16.gmra.mrb[0].mxu0 %v359
  %v796 = vpop.f32.mrb[0].mxu0
  %v797 = vadd.f32 0.0, %v796
  %v798 = vpop.f32.mrb[0].mxu0
  %v799 = vpop.f32.mrb[0].mxu0
  %v800 = vadd.f32 0.0, %v799
  %v801 = vpop.f32.mrb[0].mxu0
  %802 = vmatprep.mubr.bf16.mxu0 0
  %803 = vmatmul.mubr.bf16.gmra.mrb[0].mxu0 %v360
  %v804 = vpop.f32.mrb[0].mxu0
  %v805 = vadd.f32 0.0, %v804
  %v806 = vpop.f32.mrb[0].mxu0
  %v807 = vpop.f32.mrb[0].mxu0
  %v808 = vadd.f32 0.0, %v807
  %v809 = vpop.f32.mrb[0].mxu0
  %810 = vmatprep.mubr.bf16.mxu0 0
  %811 = vmatmul.mubr.bf16.gmra.mrb[0].mxu0 %v361
  %v812 = vpop.f32.mrb[0].mxu0
  %v813 = vadd.f32 0.0, %v812
  %v814 = vpop.f32.mrb[0].mxu0
  %v815 = vpop.f32.mrb[0].mxu0
  %v816 = vadd.f32 0.0, %v815
  %v817 = vpop.f32.mrb[0].mxu0
  %818 = vmatprep.mubr.bf16.mxu0 0
  %819 = vmatmul.mubr.bf16.gmra.mrb[0].mxu0 %v362
  %v820 = vpop.f32.mrb[0].mxu0
  %v821 = vadd.f32 0.0, %v820
  %v822 = vpop.f32.mrb[0].mxu0
  %v823 = vpop.f32.mrb[0].mxu0
  %v824 = vadd.f32 0.0, %v823
  %v825 = vpop.f32.mrb[0].mxu0
  %826 = vmatprep.mubr.bf16.mxu0 0
  %827 = vmatmul.mubr.bf16.gmra.mrb[0].mxu0 %v363
  %v828 = vpop.f32.mrb[0].mxu0
  %v829 = vadd.f32 0.0, %v828
  %v830 = vpop.f32.mrb[0].mxu0
  %v831 = vpop.f32.mrb[0].mxu0
  %v832 = vadd.f32 0.0, %v831
  %v833 = vpop.f32.mrb[0].mxu0
  %834 = vmatprep.mubr.bf16.mxu0 0
  %835 = vmatmul.mubr.bf16.gmra.mrb[0].mxu0 %v364
  %v836 = vpop.f32.mrb[0].mxu0
  %v837 = vadd.f32 0.0, %v836
  %v838 = vpop.f32.mrb[0].mxu0
  %v839 = vpop.f32.mrb[0].mxu0
  %v840 = vadd.f32 0.0, %v839
  %v841 = vpop.f32.mrb[0].mxu0
  %842 = vmatprep.mubr.bf16.mxu0 0
  %843 = vmatmul.mubr.bf16.gmra.mrb[0].mxu0 %v365
  %v844 = vpop.f32.mrb[0].mxu0
  %v845 = vadd.f32 0.0, %v844
  %v846 = vpop.f32.mrb[0].mxu0
  %v847 = vpop.f32.mrb[0].mxu0
  %v848 = vadd.f32 0.0, %v847
  %v849 = vpop.f32.mrb[0].mxu0
  %850 = vmatprep.mubr.bf16.mxu0 0
  %851 = vmatmul.mubr.bf16.gmra.mrb[0].mxu0 %v366
  %v852 = vpop.f32.mrb[0].mxu0
  %v853 = vadd.f32 0.0, %v852
  %v854 = vpop.f32.mrb[0].mxu0
  %v855 = vpop.f32.mrb[0].mxu0
  %v856 = vadd.f32 0.0, %v855
  %v857 = vpop.f32.mrb[0].mxu0
  %858 = vmatprep.mubr.bf16.mxu0 0
  %859 = vmatmul.mubr.bf16.gmra.mrb[0].mxu0 %v367
  %v860 = vpop.f32.mrb[0].mxu0
  %v861 = vadd.f32 0.0, %v860
  %v862 = vpop.f32.mrb[0].mxu0
  %v863 = vpop.f32.mrb[0].mxu0
  %v864 = vadd.f32 0.0, %v863
  %v865 = vpop.f32.mrb[0].mxu0
  %866 = vmatprep.mubr.bf16.mxu0 0
  %867 = vmatmul.mubr.bf16.gmra.mrb[0].mxu0 %v368
  %v868 = vpop.f32.mrb[0].mxu0
  %v869 = vadd.f32 0.0, %v868
  %v870 = vpop.f32.mrb[0].mxu0
  %v871 = vpop.f32.mrb[0].mxu0
  %v872 = vadd.f32 0.0, %v871
  %v873 = vpop.f32.mrb[0].mxu0
  %874 = vmatprep.mubr.bf16.mxu0 0
  %875 = vmatmul.mubr.bf16.gmra.mrb[0].mxu0 %v369
  %v876 = vpop.f32.mrb[0].mxu0
  %v877 = vadd.f32 0.0, %v876
  %v878 = vpop.f32.mrb[0].mxu0
  %v879 = vpop.f32.mrb[0].mxu0
  %v880 = vadd.f32 0.0, %v879
  %v881 = vpop.f32.mrb[0].mxu0
  %882 = vdwg.mxu0
  %vm883 = vcmask 130048
  %v884 = vsel %vm883, %v501, 0.0
  %v885 = vsel %vm883, %v504, 0.0
  %v886 = vadd.f32 %v884, %v885
  %v887 = vsel %vm883, %v509, 0.0
  %v888 = vadd.f32 %v886, %v887
  %v889 = vsel %vm883, %v512, 0.0
  %v890 = vadd.f32 %v888, %v889
  %v891 = vsel %vm883, %v517, 0.0
  %v892 = vadd.f32 %v890, %v891
  %v893 = vsel %vm883, %v520, 0.0
  %v894 = vadd.f32 %v892, %v893
  %v895 = vsel %vm883, %v525, 0.0
  %v896 = vadd.f32 %v894, %v895
  %v897 = vsel %vm883, %v528, 0.0
  %v898 = vadd.f32 %v896, %v897
  %v899 = vsel %vm883, %v533, 0.0
  %v900 = vadd.f32 %v898, %v899
  %v901 = vsel %vm883, %v536, 0.0
  %v902 = vadd.f32 %v900, %v901
  %v903 = vsel %vm883, %v541, 0.0
  %v904 = vadd.f32 %v902, %v903
  %v905 = vsel %vm883, %v544, 0.0
  %v906 = vadd.f32 %v904, %v905
  %v907 = vsel %vm883, %v549, 0.0
  %v908 = vadd.f32 %v906, %v907
  %v909 = vsel %vm883, %v552, 0.0
  %v910 = vadd.f32 %v908, %v909
  %v911 = vsel %vm883, %v557, 0.0
  %v912 = vadd.f32 %v910, %v911
  %v913 = vsel %vm883, %v560, 0.0
  %v914 = vadd.f32 %v912, %v913
  %v915 = vsel %vm883, %v565, 0.0
  %v916 = vadd.f32 %v914, %v915
  %v917 = vsel %vm883, %v568, 0.0
  %v918 = vadd.f32 %v916, %v917
  %v919 = vsel %vm883, %v573, 0.0
  %v920 = vadd.f32 %v918, %v919
  %v921 = vsel %vm883, %v576, 0.0
  %v922 = vadd.f32 %v920, %v921
  %v923 = vsel %vm883, %v581, 0.0
  %v924 = vadd.f32 %v922, %v923
  %v925 = vsel %vm883, %v584, 0.0
  %v926 = vadd.f32 %v924, %v925
  %v927 = vsel %vm883, %v589, 0.0
  %v928 = vadd.f32 %v926, %v927
  %v929 = vsel %vm883, %v592, 0.0
  %v930 = vadd.f32 %v928, %v929
  %v931 = vsel %vm883, %v597, 0.0
  %v932 = vadd.f32 %v930, %v931
  %v933 = vsel %vm883, %v600, 0.0
  %v934 = vadd.f32 %v932, %v933
  %v935 = vsel %vm883, %v605, 0.0
  %v936 = vadd.f32 %v934, %v935
  %v937 = vsel %vm883, %v608, 0.0
  %v938 = vadd.f32 %v936, %v937
  %v939 = vsel %vm883, %v613, 0.0
  %v940 = vadd.f32 %v938, %v939
  %v941 = vsel %vm883, %v616, 0.0
  %v942 = vadd.f32 %v940, %v941
  %v943 = vsel %vm883, %v621, 0.0
  %v944 = vadd.f32 %v942, %v943
  %v945 = vsel %vm883, %v624, 0.0
  %v946 = vadd.f32 %v944, %v945
  %v947 = vsel %vm883, %v629, 0.0
  %v948 = vadd.f32 %v946, %v947
  %v949 = vsel %vm883, %v632, 0.0
  %v950 = vadd.f32 %v948, %v949
  %v951 = vsel %vm883, %v637, 0.0
  %v952 = vadd.f32 %v950, %v951
  %v953 = vsel %vm883, %v640, 0.0
  %v954 = vadd.f32 %v952, %v953
  %v955 = vsel %vm883, %v645, 0.0
  %v956 = vadd.f32 %v954, %v955
  %v957 = vsel %vm883, %v648, 0.0
  %v958 = vadd.f32 %v956, %v957
  %v959 = vsel %vm883, %v653, 0.0
  %v960 = vadd.f32 %v958, %v959
  %v961 = vsel %vm883, %v656, 0.0
  %v962 = vadd.f32 %v960, %v961
  %v963 = vsel %vm883, %v661, 0.0
  %v964 = vadd.f32 %v962, %v963
  %v965 = vsel %vm883, %v664, 0.0
  %v966 = vadd.f32 %v964, %v965
  %v967 = vsel %vm883, %v669, 0.0
  %v968 = vadd.f32 %v966, %v967
  %v969 = vsel %vm883, %v672, 0.0
  %v970 = vadd.f32 %v968, %v969
  %v971 = vsel %vm883, %v677, 0.0
  %v972 = vadd.f32 %v970, %v971
  %v973 = vsel %vm883, %v680, 0.0
  %v974 = vadd.f32 %v972, %v973
  %v975 = vsel %vm883, %v685, 0.0
  %v976 = vadd.f32 %v974, %v975
  %v977 = vsel %vm883, %v688, 0.0
  %v978 = vadd.f32 %v976, %v977
  %v979 = vsel %vm883, %v693, 0.0
  %v980 = vadd.f32 %v978, %v979
  %v981 = vsel %vm883, %v696, 0.0
  %v982 = vadd.f32 %v980, %v981
  %v983 = vsel %vm883, %v701, 0.0
  %v984 = vadd.f32 %v982, %v983
  %v985 = vsel %vm883, %v704, 0.0
  %v986 = vadd.f32 %v984, %v985
  %v987 = vsel %vm883, %v709, 0.0
  %v988 = vadd.f32 %v986, %v987
  %v989 = vsel %vm883, %v712, 0.0
  %v990 = vadd.f32 %v988, %v989
  %v991 = vsel %vm883, %v717, 0.0
  %v992 = vadd.f32 %v990, %v991
  %v993 = vsel %vm883, %v720, 0.0
  %v994 = vadd.f32 %v992, %v993
  %v995 = vsel %vm883, %v725, 0.0
  %v996 = vadd.f32 %v994, %v995
  %v997 = vsel %vm883, %v728, 0.0
  %v998 = vadd.f32 %v996, %v997
  %v999 = vsel %vm883, %v733, 0.0
  %v1000 = vadd.f32 %v998, %v999
  %v1001 = vsel %vm883, %v736, 0.0
  %v1002 = vadd.f32 %v1000, %v1001
  %v1003 = vsel %vm883, %v741, 0.0
  %v1004 = vadd.f32 %v1002, %v1003
  %v1005 = vsel %vm883, %v744, 0.0
  %v1006 = vadd.f32 %v1004, %v1005
  %v1007 = vsel %vm883, %v749, 0.0
  %v1008 = vadd.f32 %v1006, %v1007
  %v1009 = vsel %vm883, %v752, 0.0
  %v1010 = vadd.f32 %v1008, %v1009
  %v1011 = vsel %vm883, %v757, 0.0
  %v1012 = vadd.f32 %v1010, %v1011
  %v1013 = vsel %vm883, %v760, 0.0
  %v1014 = vadd.f32 %v1012, %v1013
  %v1015 = vsel %vm883, %v765, 0.0
  %v1016 = vadd.f32 %v1014, %v1015
  %v1017 = vsel %vm883, %v768, 0.0
  %v1018 = vadd.f32 %v1016, %v1017
  %v1019 = vsel %vm883, %v773, 0.0
  %v1020 = vadd.f32 %v1018, %v1019
  %v1021 = vsel %vm883, %v776, 0.0
  %v1022 = vadd.f32 %v1020, %v1021
  %v1023 = vsel %vm883, %v781, 0.0
  %v1024 = vadd.f32 %v1022, %v1023
  %v1025 = vsel %vm883, %v784, 0.0
  %v1026 = vadd.f32 %v1024, %v1025
  %v1027 = vsel %vm883, %v789, 0.0
  %v1028 = vadd.f32 %v1026, %v1027
  %v1029 = vsel %vm883, %v792, 0.0
  %v1030 = vadd.f32 %v1028, %v1029
  %v1031 = vsel %vm883, %v797, 0.0
  %v1032 = vadd.f32 %v1030, %v1031
  %v1033 = vsel %vm883, %v800, 0.0
  %v1034 = vadd.f32 %v1032, %v1033
  %v1035 = vsel %vm883, %v805, 0.0
  %v1036 = vadd.f32 %v1034, %v1035
  %v1037 = vsel %vm883, %v808, 0.0
  %v1038 = vadd.f32 %v1036, %v1037
  %v1039 = vsel %vm883, %v813, 0.0
  %v1040 = vadd.f32 %v1038, %v1039
  %v1041 = vsel %vm883, %v816, 0.0
  %v1042 = vadd.f32 %v1040, %v1041
  %v1043 = vsel %vm883, %v821, 0.0
  %v1044 = vadd.f32 %v1042, %v1043
  %v1045 = vsel %vm883, %v824, 0.0
  %v1046 = vadd.f32 %v1044, %v1045
  %v1047 = vsel %vm883, %v829, 0.0
  %v1048 = vadd.f32 %v1046, %v1047
  %v1049 = vsel %vm883, %v832, 0.0
  %v1050 = vadd.f32 %v1048, %v1049
  %v1051 = vsel %vm883, %v837, 0.0
  %v1052 = vadd.f32 %v1050, %v1051
  %v1053 = vsel %vm883, %v840, 0.0
  %v1054 = vadd.f32 %v1052, %v1053
  %v1055 = vsel %vm883, %v845, 0.0
  %v1056 = vadd.f32 %v1054, %v1055
  %v1057 = vsel %vm883, %v848, 0.0
  %v1058 = vadd.f32 %v1056, %v1057
  %v1059 = vsel %vm883, %v853, 0.0
  %v1060 = vadd.f32 %v1058, %v1059
  %v1061 = vsel %vm883, %v856, 0.0
  %v1062 = vadd.f32 %v1060, %v1061
  %v1063 = vsel %vm883, %v861, 0.0
  %v1064 = vadd.f32 %v1062, %v1063
  %v1065 = vsel %vm883, %v864, 0.0
  %v1066 = vadd.f32 %v1064, %v1065
  %v1067 = vsel %vm883, %v869, 0.0
  %v1068 = vadd.f32 %v1066, %v1067
  %v1069 = vsel %vm883, %v872, 0.0
  %v1070 = vadd.f32 %v1068, %v1069
  %v1071 = vsel %vm883, %v877, 0.0
  %v1072 = vadd.f32 %v1070, %v1071
  %v1073 = vsel %vm883, %v880, 0.0
  %v1074 = vadd.f32 %v1072, %v1073
  %v1075 = vrot.slane %v1074, 4
  %v1076 = vadd.f32 %v1074, %v1075
  %v1077 = vrot.slane %v1076, 2
  %v1078 = vadd.f32 %v1076, %v1077
  %v1079 = vrot.slane %v1078, 1
  %v1080 = vadd.f32 %v1078, %v1079
  %v1081 = vrcp.pop 768.0
  %v1082 = vmul.f32 %v1080, %v1081
  %v1083 = vsub.f32 %v501, %v1082
  %v1084 = vsub.f32 %v504, %v1082
  %v1085 = vsub.f32 %v509, %v1082
  %v1086 = vsub.f32 %v512, %v1082
  %v1087 = vsub.f32 %v517, %v1082
  %v1088 = vsub.f32 %v520, %v1082
  %v1089 = vsub.f32 %v525, %v1082
  %v1090 = vsub.f32 %v528, %v1082
  %v1091 = vsub.f32 %v533, %v1082
  %v1092 = vsub.f32 %v536, %v1082
  %v1093 = vsub.f32 %v541, %v1082
  %v1094 = vsub.f32 %v544, %v1082
  %v1095 = vsub.f32 %v549, %v1082
  %v1096 = vsub.f32 %v552, %v1082
  %v1097 = vsub.f32 %v557, %v1082
  %v1098 = vsub.f32 %v560, %v1082
  %v1099 = vsub.f32 %v565, %v1082
  %v1100 = vsub.f32 %v568, %v1082
  %v1101 = vsub.f32 %v573, %v1082
  %v1102 = vsub.f32 %v576, %v1082
  %v1103 = vsub.f32 %v581, %v1082
  %v1104 = vsub.f32 %v584, %v1082
  %v1105 = vsub.f32 %v589, %v1082
  %v1106 = vsub.f32 %v592, %v1082
  %v1107 = vsub.f32 %v597, %v1082
  %v1108 = vsub.f32 %v600, %v1082
  %v1109 = vsub.f32 %v605, %v1082
  %v1110 = vsub.f32 %v608, %v1082
  %v1111 = vsub.f32 %v613, %v1082
  %v1112 = vsub.f32 %v616, %v1082
  %v1113 = vsub.f32 %v621, %v1082
  %v1114 = vsub.f32 %v624, %v1082
  %v1115 = vsub.f32 %v629, %v1082
  %v1116 = vsub.f32 %v632, %v1082
  %v1117 = vsub.f32 %v637, %v1082
  %v1118 = vsub.f32 %v640, %v1082
  %v1119 = vsub.f32 %v645, %v1082
  %v1120 = vsub.f32 %v648, %v1082
  %v1121 = vsub.f32 %v653, %v1082
  %v1122 = vsub.f32 %v656, %v1082
  %v1123 = vsub.f32 %v661, %v1082
  %v1124 = vsub.f32 %v664, %v1082
  %v1125 = vsub.f32 %v669, %v1082
  %v1126 = vsub.f32 %v672, %v1082
  %v1127 = vsub.f32 %v677, %v1082
  %v1128 = vsub.f32 %v680, %v1082
  %v1129 = vsub.f32 %v685, %v1082
  %v1130 = vsub.f32 %v688, %v1082
  %v1131 = vsub.f32 %v693, %v1082
  %v1132 = vsub.f32 %v696, %v1082
  %v1133 = vsub.f32 %v701, %v1082
  %v1134 = vsub.f32 %v704, %v1082
  %v1135 = vsub.f32 %v709, %v1082
  %v1136 = vsub.f32 %v712, %v1082
  %v1137 = vsub.f32 %v717, %v1082
  %v1138 = vsub.f32 %v720, %v1082
  %v1139 = vsub.f32 %v725, %v1082
  %v1140 = vsub.f32 %v728, %v1082
  %v1141 = vsub.f32 %v733, %v1082
  %v1142 = vsub.f32 %v736, %v1082
  %v1143 = vsub.f32 %v741, %v1082
  %v1144 = vsub.f32 %v744, %v1082
  %v1145 = vsub.f32 %v749, %v1082
  %v1146 = vsub.f32 %v752, %v1082
  %v1147 = vsub.f32 %v757, %v1082
  %v1148 = vsub.f32 %v760, %v1082
  %v1149 = vsub.f32 %v765, %v1082
  %v1150 = vsub.f32 %v768, %v1082
  %v1151 = vsub.f32 %v773, %v1082
  %v1152 = vsub.f32 %v776, %v1082
  %v1153 = vsub.f32 %v781, %v1082
  %v1154 = vsub.f32 %v784, %v1082
  %v1155 = vsub.f32 %v789, %v1082
  %v1156 = vsub.f32 %v792, %v1082
  %v1157 = vsub.f32 %v797, %v1082
  %v1158 = vsub.f32 %v800, %v1082
  %v1159 = vsub.f32 %v805, %v1082
  %v1160 = vsub.f32 %v808, %v1082
  %v1161 = vsub.f32 %v813, %v1082
  %v1162 = vsub.f32 %v816, %v1082
  %v1163 = vsub.f32 %v821, %v1082
  %v1164 = vsub.f32 %v824, %v1082
  %v1165 = vsub.f32 %v829, %v1082
  %v1166 = vsub.f32 %v832, %v1082
  %v1167 = vsub.f32 %v837, %v1082
  %v1168 = vsub.f32 %v840, %v1082
  %v1169 = vsub.f32 %v845, %v1082
  %v1170 = vsub.f32 %v848, %v1082
  %v1171 = vsub.f32 %v853, %v1082
  %v1172 = vsub.f32 %v856, %v1082
  %v1173 = vsub.f32 %v861, %v1082
  %v1174 = vsub.f32 %v864, %v1082
  %v1175 = vsub.f32 %v869, %v1082
  %v1176 = vsub.f32 %v872, %v1082
  %v1177 = vsub.f32 %v877, %v1082
  %v1178 = vsub.f32 %v880, %v1082
  %v1179 = vmul.f32 %v1083, %v1083
  %v1180 = vmul.f32 %v1084, %v1084
  %v1181 = vmul.f32 %v1085, %v1085
  %v1182 = vmul.f32 %v1086, %v1086
  %v1183 = vmul.f32 %v1087, %v1087
  %v1184 = vmul.f32 %v1088, %v1088
  %v1185 = vmul.f32 %v1089, %v1089
  %v1186 = vmul.f32 %v1090, %v1090
  %v1187 = vmul.f32 %v1091, %v1091
  %v1188 = vmul.f32 %v1092, %v1092
  %v1189 = vmul.f32 %v1093, %v1093
  %v1190 = vmul.f32 %v1094, %v1094
  %v1191 = vmul.f32 %v1095, %v1095
  %v1192 = vmul.f32 %v1096, %v1096
  %v1193 = vmul.f32 %v1097, %v1097
  %v1194 = vmul.f32 %v1098, %v1098
  %v1195 = vmul.f32 %v1099, %v1099
  %v1196 = vmul.f32 %v1100, %v1100
  %v1197 = vmul.f32 %v1101, %v1101
  %v1198 = vmul.f32 %v1102, %v1102
  %v1199 = vmul.f32 %v1103, %v1103
  %v1200 = vmul.f32 %v1104, %v1104
  %v1201 = vmul.f32 %v1105, %v1105
  %v1202 = vmul.f32 %v1106, %v1106
  %v1203 = vmul.f32 %v1107, %v1107
  %v1204 = vmul.f32 %v1108, %v1108
  %v1205 = vmul.f32 %v1109, %v1109
  %v1206 = vmul.f32 %v1110, %v1110
  %v1207 = vmul.f32 %v1111, %v1111
  %v1208 = vmul.f32 %v1112, %v1112
  %v1209 = vmul.f32 %v1113, %v1113
  %v1210 = vmul.f32 %v1114, %v1114
  %v1211 = vmul.f32 %v1115, %v1115
  %v1212 = vmul.f32 %v1116, %v1116
  %v1213 = vmul.f32 %v1117, %v1117
  %v1214 = vmul.f32 %v1118, %v1118
  %v1215 = vmul.f32 %v1119, %v1119
  %v1216 = vmul.f32 %v1120, %v1120
  %v1217 = vmul.f32 %v1121, %v1121
  %v1218 = vmul.f32 %v1122, %v1122
  %v1219 = vmul.f32 %v1123, %v1123
  %v1220 = vmul.f32 %v1124, %v1124
  %v1221 = vmul.f32 %v1125, %v1125
  %v1222 = vmul.f32 %v1126, %v1126
  %v1223 = vmul.f32 %v1127, %v1127
  %v1224 = vmul.f32 %v1128, %v1128
  %v1225 = vmul.f32 %v1129, %v1129
  %v1226 = vmul.f32 %v1130, %v1130
  %v1227 = vmul.f32 %v1131, %v1131
  %v1228 = vmul.f32 %v1132, %v1132
  %v1229 = vmul.f32 %v1133, %v1133
  %v1230 = vmul.f32 %v1134, %v1134
  %v1231 = vmul.f32 %v1135, %v1135
  %v1232 = vmul.f32 %v1136, %v1136
  %v1233 = vmul.f32 %v1137, %v1137
  %v1234 = vmul.f32 %v1138, %v1138
  %v1235 = vmul.f32 %v1139, %v1139
  %v1236 = vmul.f32 %v1140, %v1140
  %v1237 = vmul.f32 %v1141, %v1141
  %v1238 = vmul.f32 %v1142, %v1142
  %v1239 = vmul.f32 %v1143, %v1143
  %v1240 = vmul.f32 %v1144, %v1144
  %v1241 = vmul.f32 %v1145, %v1145
  %v1242 = vmul.f32 %v1146, %v1146
  %v1243 = vmul.f32 %v1147, %v1147
  %v1244 = vmul.f32 %v1148, %v1148
  %v1245 = vmul.f32 %v1149, %v1149
  %v1246 = vmul.f32 %v1150, %v1150
  %v1247 = vmul.f32 %v1151, %v1151
  %v1248 = vmul.f32 %v1152, %v1152
  %v1249 = vmul.f32 %v1153, %v1153
  %v1250 = vmul.f32 %v1154, %v1154
  %v1251 = vmul.f32 %v1155, %v1155
  %v1252 = vmul.f32 %v1156, %v1156
  %v1253 = vmul.f32 %v1157, %v1157
  %v1254 = vmul.f32 %v1158, %v1158
  %v1255 = vmul.f32 %v1159, %v1159
  %v1256 = vmul.f32 %v1160, %v1160
  %v1257 = vmul.f32 %v1161, %v1161
  %v1258 = vmul.f32 %v1162, %v1162
  %v1259 = vmul.f32 %v1163, %v1163
  %v1260 = vmul.f32 %v1164, %v1164
  %v1261 = vmul.f32 %v1165, %v1165
  %v1262 = vmul.f32 %v1166, %v1166
  %v1263 = vmul.f32 %v1167, %v1167
  %v1264 = vmul.f32 %v1168, %v1168
  %v1265 = vmul.f32 %v1169, %v1169
  %v1266 = vmul.f32 %v1170, %v1170
  %v1267 = vmul.f32 %v1171, %v1171
  %v1268 = vmul.f32 %v1172, %v1172
  %v1269 = vmul.f32 %v1173, %v1173
  %v1270 = vmul.f32 %v1174, %v1174
  %v1271 = vmul.f32 %v1175, %v1175
  %v1272 = vmul.f32 %v1176, %v1176
  %v1273 = vmul.f32 %v1177, %v1177
  %v1274 = vmul.f32 %v1178, %v1178
  %v1275 = vsel %vm883, %v1179, 0.0
  %v1276 = vsel %vm883, %v1180, 0.0
  %v1277 = vadd.f32 %v1275, %v1276
  %v1278 = vsel %vm883, %v1181, 0.0
  %v1279 = vadd.f32 %v1277, %v1278
  %v1280 = vsel %vm883, %v1182, 0.0
  %v1281 = vadd.f32 %v1279, %v1280
  %v1282 = vsel %vm883, %v1183, 0.0
  %v1283 = vadd.f32 %v1281, %v1282
  %v1284 = vsel %vm883, %v1184, 0.0
  %v1285 = vadd.f32 %v1283, %v1284
  %v1286 = vsel %vm883, %v1185, 0.0
  %v1287 = vadd.f32 %v1285, %v1286
  %v1288 = vsel %vm883, %v1186, 0.0
  %v1289 = vadd.f32 %v1287, %v1288
  %v1290 = vsel %vm883, %v1187, 0.0
  %v1291 = vadd.f32 %v1289, %v1290
  %v1292 = vsel %vm883, %v1188, 0.0
  %v1293 = vadd.f32 %v1291, %v1292
  %v1294 = vsel %vm883, %v1189, 0.0
  %v1295 = vadd.f32 %v1293, %v1294
  %v1296 = vsel %vm883, %v1190, 0.0
  %v1297 = vadd.f32 %v1295, %v1296
  %v1298 = vsel %vm883, %v1191, 0.0
  %v1299 = vadd.f32 %v1297, %v1298
  %v1300 = vsel %vm883, %v1192, 0.0
  %v1301 = vadd.f32 %v1299, %v1300
  %v1302 = vsel %vm883, %v1193, 0.0
  %v1303 = vadd.f32 %v1301, %v1302
  %v1304 = vsel %vm883, %v1194, 0.0
  %v1305 = vadd.f32 %v1303, %v1304
  %v1306 = vsel %vm883, %v1195, 0.0
  %v1307 = vadd.f32 %v1305, %v1306
  %v1308 = vsel %vm883, %v1196, 0.0
  %v1309 = vadd.f32 %v1307, %v1308
  %v1310 = vsel %vm883, %v1197, 0.0
  %v1311 = vadd.f32 %v1309, %v1310
  %v1312 = vsel %vm883, %v1198, 0.0
  %v1313 = vadd.f32 %v1311, %v1312
  %v1314 = vsel %vm883, %v1199, 0.0
  %v1315 = vadd.f32 %v1313, %v1314
  %v1316 = vsel %vm883, %v1200, 0.0
  %v1317 = vadd.f32 %v1315, %v1316
  %v1318 = vsel %vm883, %v1201, 0.0
  %v1319 = vadd.f32 %v1317, %v1318
  %v1320 = vsel %vm883, %v1202, 0.0
  %v1321 = vadd.f32 %v1319, %v1320
  %v1322 = vsel %vm883, %v1203, 0.0
  %v1323 = vadd.f32 %v1321, %v1322
  %v1324 = vsel %vm883, %v1204, 0.0
  %v1325 = vadd.f32 %v1323, %v1324
  %v1326 = vsel %vm883, %v1205, 0.0
  %v1327 = vadd.f32 %v1325, %v1326
  %v1328 = vsel %vm883, %v1206, 0.0
  %v1329 = vadd.f32 %v1327, %v1328
  %v1330 = vsel %vm883, %v1207, 0.0
  %v1331 = vadd.f32 %v1329, %v1330
  %v1332 = vsel %vm883, %v1208, 0.0
  %v1333 = vadd.f32 %v1331, %v1332
  %v1334 = vsel %vm883, %v1209, 0.0
  %v1335 = vadd.f32 %v1333, %v1334
  %v1336 = vsel %vm883, %v1210, 0.0
  %v1337 = vadd.f32 %v1335, %v1336
  %v1338 = vsel %vm883, %v1211, 0.0
  %v1339 = vadd.f32 %v1337, %v1338
  %v1340 = vsel %vm883, %v1212, 0.0
  %v1341 = vadd.f32 %v1339, %v1340
  %v1342 = vsel %vm883, %v1213, 0.0
  %v1343 = vadd.f32 %v1341, %v1342
  %v1344 = vsel %vm883, %v1214, 0.0
  %v1345 = vadd.f32 %v1343, %v1344
  %v1346 = vsel %vm883, %v1215, 0.0
  %v1347 = vadd.f32 %v1345, %v1346
  %v1348 = vsel %vm883, %v1216, 0.0
  %v1349 = vadd.f32 %v1347, %v1348
  %v1350 = vsel %vm883, %v1217, 0.0
  %v1351 = vadd.f32 %v1349, %v1350
  %v1352 = vsel %vm883, %v1218, 0.0
  %v1353 = vadd.f32 %v1351, %v1352
  %v1354 = vsel %vm883, %v1219, 0.0
  %v1355 = vadd.f32 %v1353, %v1354
  %v1356 = vsel %vm883, %v1220, 0.0
  %v1357 = vadd.f32 %v1355, %v1356
  %v1358 = vsel %vm883, %v1221, 0.0
  %v1359 = vadd.f32 %v1357, %v1358
  %v1360 = vsel %vm883, %v1222, 0.0
  %v1361 = vadd.f32 %v1359, %v1360
  %v1362 = vsel %vm883, %v1223, 0.0
  %v1363 = vadd.f32 %v1361, %v1362
  %v1364 = vsel %vm883, %v1224, 0.0
  %v1365 = vadd.f32 %v1363, %v1364
  %v1366 = vsel %vm883, %v1225, 0.0
  %v1367 = vadd.f32 %v1365, %v1366
  %v1368 = vsel %vm883, %v1226, 0.0
  %v1369 = vadd.f32 %v1367, %v1368
  %v1370 = vsel %vm883, %v1227, 0.0
  %v1371 = vadd.f32 %v1369, %v1370
  %v1372 = vsel %vm883, %v1228, 0.0
  %v1373 = vadd.f32 %v1371, %v1372
  %v1374 = vsel %vm883, %v1229, 0.0
  %v1375 = vadd.f32 %v1373, %v1374
  %v1376 = vsel %vm883, %v1230, 0.0
  %v1377 = vadd.f32 %v1375, %v1376
  %v1378 = vsel %vm883, %v1231, 0.0
  %v1379 = vadd.f32 %v1377, %v1378
  %v1380 = vsel %vm883, %v1232, 0.0
  %v1381 = vadd.f32 %v1379, %v1380
  %v1382 = vsel %vm883, %v1233, 0.0
  %v1383 = vadd.f32 %v1381, %v1382
  %v1384 = vsel %vm883, %v1234, 0.0
  %v1385 = vadd.f32 %v1383, %v1384
  %v1386 = vsel %vm883, %v1235, 0.0
  %v1387 = vadd.f32 %v1385, %v1386
  %v1388 = vsel %vm883, %v1236, 0.0
  %v1389 = vadd.f32 %v1387, %v1388
  %v1390 = vsel %vm883, %v1237, 0.0
  %v1391 = vadd.f32 %v1389, %v1390
  %v1392 = vsel %vm883, %v1238, 0.0
  %v1393 = vadd.f32 %v1391, %v1392
  %v1394 = vsel %vm883, %v1239, 0.0
  %v1395 = vadd.f32 %v1393, %v1394
  %v1396 = vsel %vm883, %v1240, 0.0
  %v1397 = vadd.f32 %v1395, %v1396
  %v1398 = vsel %vm883, %v1241, 0.0
  %v1399 = vadd.f32 %v1397, %v1398
  %v1400 = vsel %vm883, %v1242, 0.0
  %v1401 = vadd.f32 %v1399, %v1400
  %v1402 = vsel %vm883, %v1243, 0.0
  %v1403 = vadd.f32 %v1401, %v1402
  %v1404 = vsel %vm883, %v1244, 0.0
  %v1405 = vadd.f32 %v1403, %v1404
  %v1406 = vsel %vm883, %v1245, 0.0
  %v1407 = vadd.f32 %v1405, %v1406
  %v1408 = vsel %vm883, %v1246, 0.0
  %v1409 = vadd.f32 %v1407, %v1408
  %v1410 = vsel %vm883, %v1247, 0.0
  %v1411 = vadd.f32 %v1409, %v1410
  %v1412 = vsel %vm883, %v1248, 0.0
  %v1413 = vadd.f32 %v1411, %v1412
  %v1414 = vsel %vm883, %v1249, 0.0
  %v1415 = vadd.f32 %v1413, %v1414
  %v1416 = vsel %vm883, %v1250, 0.0
  %v1417 = vadd.f32 %v1415, %v1416
  %v1418 = vsel %vm883, %v1251, 0.0
  %v1419 = vadd.f32 %v1417, %v1418
  %v1420 = vsel %vm883, %v1252, 0.0
  %v1421 = vadd.f32 %v1419, %v1420
  %v1422 = vsel %vm883, %v1253, 0.0
  %v1423 = vadd.f32 %v1421, %v1422
  %v1424 = vsel %vm883, %v1254, 0.0
  %v1425 = vadd.f32 %v1423, %v1424
  %v1426 = vsel %vm883, %v1255, 0.0
  %v1427 = vadd.f32 %v1425, %v1426
  %v1428 = vsel %vm883, %v1256, 0.0
  %v1429 = vadd.f32 %v1427, %v1428
  %v1430 = vsel %vm883, %v1257, 0.0
  %v1431 = vadd.f32 %v1429, %v1430
  %v1432 = vsel %vm883, %v1258, 0.0
  %v1433 = vadd.f32 %v1431, %v1432
  %v1434 = vsel %vm883, %v1259, 0.0
  %v1435 = vadd.f32 %v1433, %v1434
  %v1436 = vsel %vm883, %v1260, 0.0
  %v1437 = vadd.f32 %v1435, %v1436
  %v1438 = vsel %vm883, %v1261, 0.0
  %v1439 = vadd.f32 %v1437, %v1438
  %v1440 = vsel %vm883, %v1262, 0.0
  %v1441 = vadd.f32 %v1439, %v1440
  %v1442 = vsel %vm883, %v1263, 0.0
  %v1443 = vadd.f32 %v1441, %v1442
  %v1444 = vsel %vm883, %v1264, 0.0
  %v1445 = vadd.f32 %v1443, %v1444
  %v1446 = vsel %vm883, %v1265, 0.0
  %v1447 = vadd.f32 %v1445, %v1446
  %v1448 = vsel %vm883, %v1266, 0.0
  %v1449 = vadd.f32 %v1447, %v1448
  %v1450 = vsel %vm883, %v1267, 0.0
  %v1451 = vadd.f32 %v1449, %v1450
  %v1452 = vsel %vm883, %v1268, 0.0
  %v1453 = vadd.f32 %v1451, %v1452
  %v1454 = vsel %vm883, %v1269, 0.0
  %v1455 = vadd.f32 %v1453, %v1454
  %v1456 = vsel %vm883, %v1270, 0.0
  %v1457 = vadd.f32 %v1455, %v1456
  %v1458 = vsel %vm883, %v1271, 0.0
  %v1459 = vadd.f32 %v1457, %v1458
  %v1460 = vsel %vm883, %v1272, 0.0
  %v1461 = vadd.f32 %v1459, %v1460
  %v1462 = vsel %vm883, %v1273, 0.0
  %v1463 = vadd.f32 %v1461, %v1462
  %v1464 = vsel %vm883, %v1274, 0.0
  %v1465 = vadd.f32 %v1463, %v1464
  %v1466 = vrot.slane %v1465, 4
  %v1467 = vadd.f32 %v1465, %v1466
  %v1468 = vrot.slane %v1467, 2
  %v1469 = vadd.f32 %v1467, %v1468
  %v1470 = vrot.slane %v1469, 1
  %v1471 = vadd.f32 %v1469, %v1470
  %v1472 = vmul.f32 %v1471, %v1081
  %v1473 = vld [vmem:[%s2] sm:$0x1]
  %v1474 = vadd.f32 %v1472, 1e-05
  %v1475 = vrsqrt.pop %v1474
  %v1476 = vmul.f32 %v1473, %v1475
  %v1478 = vlaneseq
  %v1479 = vshrl.u32 %v1478, 7
  %v1480 = vsub.s32 0, %v1479
  %v1481 = vrot.slane %v1476, %v1480
  %v1483 = vmul.f32 %v1083, %v1481
  %v1484 = vmul.f32 %v1084, %v1481
  %v1485 = vmul.f32 %v1085, %v1481
  %v1486 = vmul.f32 %v1086, %v1481
  %v1487 = vmul.f32 %v1087, %v1481
  %v1488 = vmul.f32 %v1088, %v1481
  %v1489 = vmul.f32 %v1089, %v1481
  %v1490 = vmul.f32 %v1090, %v1481
  %v1491 = vmul.f32 %v1091, %v1481
  %v1492 = vmul.f32 %v1092, %v1481
  %v1493 = vmul.f32 %v1093, %v1481
  %v1494 = vmul.f32 %v1094, %v1481
  %v1495 = vmul.f32 %v1095, %v1481
  %v1496 = vmul.f32 %v1096, %v1481
  %v1497 = vmul.f32 %v1097, %v1481
  %v1498 = vmul.f32 %v1098, %v1481
  %v1499 = vmul.f32 %v1099, %v1481
  %v1500 = vmul.f32 %v1100, %v1481
  %v1501 = vmul.f32 %v1101, %v1481
  %v1502 = vmul.f32 %v1102, %v1481
  %v1503 = vmul.f32 %v1103, %v1481
  %v1504 = vmul.f32 %v1104, %v1481
  %v1505 = vmul.f32 %v1105, %v1481
  %v1506 = vmul.f32 %v1106, %v1481
  %v1507 = vmul.f32 %v1107, %v1481
  %v1508 = vmul.f32 %v1108, %v1481
  %v1509 = vmul.f32 %v1109, %v1481
  %v1510 = vmul.f32 %v1110, %v1481
  %v1511 = vmul.f32 %v1111, %v1481
  %v1512 = vmul.f32 %v1112, %v1481
  %v1513 = vmul.f32 %v1113, %v1481
  %v1514 = vmul.f32 %v1114, %v1481
  %v1515 = vmul.f32 %v1115, %v1481
  %v1516 = vmul.f32 %v1116, %v1481
  %v1517 = vmul.f32 %v1117, %v1481
  %v1518 = vmul.f32 %v1118, %v1481
  %v1519 = vmul.f32 %v1119, %v1481
  %v1520 = vmul.f32 %v1120, %v1481
  %v1521 = vmul.f32 %v1121, %v1481
  %v1522 = vmul.f32 %v1122, %v1481
  %v1523 = vmul.f32 %v1123, %v1481
  %v1524 = vmul.f32 %v1124, %v1481
  %v1525 = vmul.f32 %v1125, %v1481
  %v1526 = vmul.f32 %v1126, %v1481
  %v1527 = vmul.f32 %v1127, %v1481
  %v1528 = vmul.f32 %v1128, %v1481
  %v1529 = vmul.f32 %v1129, %v1481
  %v1530 = vmul.f32 %v1130, %v1481
  %v1531 = vmul.f32 %v1131, %v1481
  %v1532 = vmul.f32 %v1132, %v1481
  %v1533 = vmul.f32 %v1133, %v1481
  %v1534 = vmul.f32 %v1134, %v1481
  %v1535 = vmul.f32 %v1135, %v1481
  %v1536 = vmul.f32 %v1136, %v1481
  %v1537 = vmul.f32 %v1137, %v1481
  %v1538 = vmul.f32 %v1138, %v1481
  %v1539 = vmul.f32 %v1139, %v1481
  %v1540 = vmul.f32 %v1140, %v1481
  %v1541 = vmul.f32 %v1141, %v1481
  %v1542 = vmul.f32 %v1142, %v1481
  %v1543 = vmul.f32 %v1143, %v1481
  %v1544 = vmul.f32 %v1144, %v1481
  %v1545 = vmul.f32 %v1145, %v1481
  %v1546 = vmul.f32 %v1146, %v1481
  %v1547 = vmul.f32 %v1147, %v1481
  %v1548 = vmul.f32 %v1148, %v1481
  %v1549 = vmul.f32 %v1149, %v1481
  %v1550 = vmul.f32 %v1150, %v1481
  %v1551 = vmul.f32 %v1151, %v1481
  %v1552 = vmul.f32 %v1152, %v1481
  %v1553 = vmul.f32 %v1153, %v1481
  %v1554 = vmul.f32 %v1154, %v1481
  %v1555 = vmul.f32 %v1155, %v1481
  %v1556 = vmul.f32 %v1156, %v1481
  %v1557 = vmul.f32 %v1157, %v1481
  %v1558 = vmul.f32 %v1158, %v1481
  %v1559 = vmul.f32 %v1159, %v1481
  %v1560 = vmul.f32 %v1160, %v1481
  %v1561 = vmul.f32 %v1161, %v1481
  %v1562 = vmul.f32 %v1162, %v1481
  %v1563 = vmul.f32 %v1163, %v1481
  %v1564 = vmul.f32 %v1164, %v1481
  %v1565 = vmul.f32 %v1165, %v1481
  %v1566 = vmul.f32 %v1166, %v1481
  %v1567 = vmul.f32 %v1167, %v1481
  %v1568 = vmul.f32 %v1168, %v1481
  %v1569 = vmul.f32 %v1169, %v1481
  %v1570 = vmul.f32 %v1170, %v1481
  %v1571 = vmul.f32 %v1171, %v1481
  %v1572 = vmul.f32 %v1172, %v1481
  %v1573 = vmul.f32 %v1173, %v1481
  %v1574 = vmul.f32 %v1174, %v1481
  %v1575 = vmul.f32 %v1175, %v1481
  %v1576 = vmul.f32 %v1176, %v1481
  %v1577 = vmul.f32 %v1177, %v1481
  %v1578 = vmul.f32 %v1178, %v1481
  %v1579 = vld [vmem:[%s3] sm:$0x1]
  %v1581 = vlaneseq
  %v1582 = vshrl.u32 %v1581, 7
  %v1583 = vsub.s32 0, %v1582
  %v1584 = vrot.slane %v1579, %v1583
  %v1586 = vadd.f32 %v1483, %v1584
  %v1587 = vadd.f32 %v1484, %v1584
  %v1588 = vadd.f32 %v1485, %v1584
  %v1589 = vadd.f32 %v1486, %v1584
  %v1590 = vadd.f32 %v1487, %v1584
  %v1591 = vadd.f32 %v1488, %v1584
  %v1592 = vadd.f32 %v1489, %v1584
  %v1593 = vadd.f32 %v1490, %v1584
  %v1594 = vadd.f32 %v1491, %v1584
  %v1595 = vadd.f32 %v1492, %v1584
  %v1596 = vadd.f32 %v1493, %v1584
  %v1597 = vadd.f32 %v1494, %v1584
  %v1598 = vadd.f32 %v1495, %v1584
  %v1599 = vadd.f32 %v1496, %v1584
  %v1600 = vadd.f32 %v1497, %v1584
  %v1601 = vadd.f32 %v1498, %v1584
  %v1602 = vadd.f32 %v1499, %v1584
  %v1603 = vadd.f32 %v1500, %v1584
  %v1604 = vadd.f32 %v1501, %v1584
  %v1605 = vadd.f32 %v1502, %v1584
  %v1606 = vadd.f32 %v1503, %v1584
  %v1607 = vadd.f32 %v1504, %v1584
  %v1608 = vadd.f32 %v1505, %v1584
  %v1609 = vadd.f32 %v1506, %v1584
  %v1610 = vadd.f32 %v1507, %v1584
  %v1611 = vadd.f32 %v1508, %v1584
  %v1612 = vadd.f32 %v1509, %v1584
  %v1613 = vadd.f32 %v1510, %v1584
  %v1614 = vadd.f32 %v1511, %v1584
  %v1615 = vadd.f32 %v1512, %v1584
  %v1616 = vadd.f32 %v1513, %v1584
  %v1617 = vadd.f32 %v1514, %v1584
  %v1618 = vadd.f32 %v1515, %v1584
  %v1619 = vadd.f32 %v1516, %v1584
  %v1620 = vadd.f32 %v1517, %v1584
  %v1621 = vadd.f32 %v1518, %v1584
  %v1622 = vadd.f32 %v1519, %v1584
  %v1623 = vadd.f32 %v1520, %v1584
  %v1624 = vadd.f32 %v1521, %v1584
  %v1625 = vadd.f32 %v1522, %v1584
  %v1626 = vadd.f32 %v1523, %v1584
  %v1627 = vadd.f32 %v1524, %v1584
  %v1628 = vadd.f32 %v1525, %v1584
  %v1629 = vadd.f32 %v1526, %v1584
  %v1630 = vadd.f32 %v1527, %v1584
  %v1631 = vadd.f32 %v1528, %v1584
  %v1632 = vadd.f32 %v1529, %v1584
  %v1633 = vadd.f32 %v1530, %v1584
  %v1634 = vadd.f32 %v1531, %v1584
  %v1635 = vadd.f32 %v1532, %v1584
  %v1636 = vadd.f32 %v1533, %v1584
  %v1637 = vadd.f32 %v1534, %v1584
  %v1638 = vadd.f32 %v1535, %v1584
  %v1639 = vadd.f32 %v1536, %v1584
  %v1640 = vadd.f32 %v1537, %v1584
  %v1641 = vadd.f32 %v1538, %v1584
  %v1642 = vadd.f32 %v1539, %v1584
  %v1643 = vadd.f32 %v1540, %v1584
  %v1644 = vadd.f32 %v1541, %v1584
  %v1645 = vadd.f32 %v1542, %v1584
  %v1646 = vadd.f32 %v1543, %v1584
  %v1647 = vadd.f32 %v1544, %v1584
  %v1648 = vadd.f32 %v1545, %v1584
  %v1649 = vadd.f32 %v1546, %v1584
  %v1650 = vadd.f32 %v1547, %v1584
  %v1651 = vadd.f32 %v1548, %v1584
  %v1652 = vadd.f32 %v1549, %v1584
  %v1653 = vadd.f32 %v1550, %v1584
  %v1654 = vadd.f32 %v1551, %v1584
  %v1655 = vadd.f32 %v1552, %v1584
  %v1656 = vadd.f32 %v1553, %v1584
  %v1657 = vadd.f32 %v1554, %v1584
  %v1658 = vadd.f32 %v1555, %v1584
  %v1659 = vadd.f32 %v1556, %v1584
  %v1660 = vadd.f32 %v1557, %v1584
  %v1661 = vadd.f32 %v1558, %v1584
  %v1662 = vadd.f32 %v1559, %v1584
  %v1663 = vadd.f32 %v1560, %v1584
  %v1664 = vadd.f32 %v1561, %v1584
  %v1665 = vadd.f32 %v1562, %v1584
  %v1666 = vadd.f32 %v1563, %v1584
  %v1667 = vadd.f32 %v1564, %v1584
  %v1668 = vadd.f32 %v1565, %v1584
  %v1669 = vadd.f32 %v1566, %v1584
  %v1670 = vadd.f32 %v1567, %v1584
  %v1671 = vadd.f32 %v1568, %v1584
  %v1672 = vadd.f32 %v1569, %v1584
  %v1673 = vadd.f32 %v1570, %v1584
  %v1674 = vadd.f32 %v1571, %v1584
  %v1675 = vadd.f32 %v1572, %v1584
  %v1676 = vadd.f32 %v1573, %v1584
  %v1677 = vadd.f32 %v1574, %v1584
  %v1678 = vadd.f32 %v1575, %v1584
  %v1679 = vadd.f32 %v1576, %v1584
  %v1680 = vadd.f32 %v1577, %v1584
  %v1681 = vadd.f32 %v1578, %v1584
  %vm1682 = vcmp.ge.f32.partialorder %v1586, 0.0
  %vm1683 = vcmp.ge.f32.partialorder %v1587, 0.0
  %vm1684 = vcmp.ge.f32.partialorder %v1588, 0.0
  %vm1685 = vcmp.ge.f32.partialorder %v1589, 0.0
  %vm1686 = vcmp.ge.f32.partialorder %v1590, 0.0
  %vm1687 = vcmp.ge.f32.partialorder %v1591, 0.0
  %vm1688 = vcmp.ge.f32.partialorder %v1592, 0.0
  %vm1689 = vcmp.ge.f32.partialorder %v1593, 0.0
  %vm1690 = vcmp.ge.f32.partialorder %v1594, 0.0
  %vm1691 = vcmp.ge.f32.partialorder %v1595, 0.0
  %vm1692 = vcmp.ge.f32.partialorder %v1596, 0.0
  %vm1693 = vcmp.ge.f32.partialorder %v1597, 0.0
  %vm1694 = vcmp.ge.f32.partialorder %v1598, 0.0
  %vm1695 = vcmp.ge.f32.partialorder %v1599, 0.0
  %vm1696 = vcmp.ge.f32.partialorder %v1600, 0.0
  %vm1697 = vcmp.ge.f32.partialorder %v1601, 0.0
  %vm1698 = vcmp.ge.f32.partialorder %v1602, 0.0
  %vm1699 = vcmp.ge.f32.partialorder %v1603, 0.0
  %vm1700 = vcmp.ge.f32.partialorder %v1604, 0.0
  %vm1701 = vcmp.ge.f32.partialorder %v1605, 0.0
  %vm1702 = vcmp.ge.f32.partialorder %v1606, 0.0
  %vm1703 = vcmp.ge.f32.partialorder %v1607, 0.0
  %vm1704 = vcmp.ge.f32.partialorder %v1608, 0.0
  %vm1705 = vcmp.ge.f32.partialorder %v1609, 0.0
  %vm1706 = vcmp.ge.f32.partialorder %v1610, 0.0
  %vm1707 = vcmp.ge.f32.partialorder %v1611, 0.0
  %vm1708 = vcmp.ge.f32.partialorder %v1612, 0.0
  %vm1709 = vcmp.ge.f32.partialorder %v1613, 0.0
  %vm1710 = vcmp.ge.f32.partialorder %v1614, 0.0
  %vm1711 = vcmp.ge.f32.partialorder %v1615, 0.0
  %vm1712 = vcmp.ge.f32.partialorder %v1616, 0.0
  %vm1713 = vcmp.ge.f32.partialorder %v1617, 0.0
  %vm1714 = vcmp.ge.f32.partialorder %v1618, 0.0
  %vm1715 = vcmp.ge.f32.partialorder %v1619, 0.0
  %vm1716 = vcmp.ge.f32.partialorder %v1620, 0.0
  %vm1717 = vcmp.ge.f32.partialorder %v1621, 0.0
  %vm1718 = vcmp.ge.f32.partialorder %v1622, 0.0
  %vm1719 = vcmp.ge.f32.partialorder %v1623, 0.0
  %vm1720 = vcmp.ge.f32.partialorder %v1624, 0.0
  %vm1721 = vcmp.ge.f32.partialorder %v1625, 0.0
  %vm1722 = vcmp.ge.f32.partialorder %v1626, 0.0
  %vm1723 = vcmp.ge.f32.partialorder %v1627, 0.0
  %vm1724 = vcmp.ge.f32.partialorder %v1628, 0.0
  %vm1725 = vcmp.ge.f32.partialorder %v1629, 0.0
  %vm1726 = vcmp.ge.f32.partialorder %v1630, 0.0
  %vm1727 = vcmp.ge.f32.partialorder %v1631, 0.0
  %vm1728 = vcmp.ge.f32.partialorder %v1632, 0.0
  %vm1729 = vcmp.ge.f32.partialorder %v1633, 0.0
  %vm1730 = vcmp.ge.f32.partialorder %v1634, 0.0
  %vm1731 = vcmp.ge.f32.partialorder %v1635, 0.0
  %vm1732 = vcmp.ge.f32.partialorder %v1636, 0.0
  %vm1733 = vcmp.ge.f32.partialorder %v1637, 0.0
  %vm1734 = vcmp.ge.f32.partialorder %v1638, 0.0
  %vm1735 = vcmp.ge.f32.partialorder %v1639, 0.0
  %vm1736 = vcmp.ge.f32.partialorder %v1640, 0.0
  %vm1737 = vcmp.ge.f32.partialorder %v1641, 0.0
  %vm1738 = vcmp.ge.f32.partialorder %v1642, 0.0
  %vm1739 = vcmp.ge.f32.partialorder %v1643, 0.0
  %vm1740 = vcmp.ge.f32.partialorder %v1644, 0.0
  %vm1741 = vcmp.ge.f32.partialorder %v1645, 0.0
  %vm1742 = vcmp.ge.f32.partialorder %v1646, 0.0
  %vm1743 = vcmp.ge.f32.partialorder %v1647, 0.0
  %vm1744 = vcmp.ge.f32.partialorder %v1648, 0.0
  %vm1745 = vcmp.ge.f32.partialorder %v1649, 0.0
  %vm1746 = vcmp.ge.f32.partialorder %v1650, 0.0
  %vm1747 = vcmp.ge.f32.partialorder %v1651, 0.0
  %vm1748 = vcmp.ge.f32.partialorder %v1652, 0.0
  %vm1749 = vcmp.ge.f32.partialorder %v1653, 0.0
  %vm1750 = vcmp.ge.f32.partialorder %v1654, 0.0
  %vm1751 = vcmp.ge.f32.partialorder %v1655, 0.0
  %vm1752 = vcmp.ge.f32.partialorder %v1656, 0.0
  %vm1753 = vcmp.ge.f32.partialorder %v1657, 0.0
  %vm1754 = vcmp.ge.f32.partialorder %v1658, 0.0
  %vm1755 = vcmp.ge.f32.partialorder %v1659, 0.0
  %vm1756 = vcmp.ge.f32.partialorder %v1660, 0.0
  %vm1757 = vcmp.ge.f32.partialorder %v1661, 0.0
  %vm1758 = vcmp.ge.f32.partialorder %v1662, 0.0
  %vm1759 = vcmp.ge.f32.partialorder %v1663, 0.0
  %vm1760 = vcmp.ge.f32.partialorder %v1664, 0.0
  %vm1761 = vcmp.ge.f32.partialorder %v1665, 0.0
  %vm1762 = vcmp.ge.f32.partialorder %v1666, 0.0
  %vm1763 = vcmp.ge.f32.partialorder %v1667, 0.0
  %vm1764 = vcmp.ge.f32.partialorder %v1668, 0.0
  %vm1765 = vcmp.ge.f32.partialorder %v1669, 0.0
  %vm1766 = vcmp.ge.f32.partialorder %v1670, 0.0
  %vm1767 = vcmp.ge.f32.partialorder %v1671, 0.0
  %vm1768 = vcmp.ge.f32.partialorder %v1672, 0.0
  %vm1769 = vcmp.ge.f32.partialorder %v1673, 0.0
  %vm1770 = vcmp.ge.f32.partialorder %v1674, 0.0
  %vm1771 = vcmp.ge.f32.partialorder %v1675, 0.0
  %vm1772 = vcmp.ge.f32.partialorder %v1676, 0.0
  %vm1773 = vcmp.ge.f32.partialorder %v1677, 0.0
  %vm1774 = vcmp.ge.f32.partialorder %v1678, 0.0
  %vm1775 = vcmp.ge.f32.partialorder %v1679, 0.0
  %vm1776 = vcmp.ge.f32.partialorder %v1680, 0.0
  %vm1777 = vcmp.ge.f32.partialorder %v1681, 0.0
  %v1778 = vmul.f32 %v1586, 0.2
  %v1779 = vmul.f32 %v1587, 0.2
  %v1780 = vmul.f32 %v1588, 0.2
  %v1781 = vmul.f32 %v1589, 0.2
  %v1782 = vmul.f32 %v1590, 0.2
  %v1783 = vmul.f32 %v1591, 0.2
  %v1784 = vmul.f32 %v1592, 0.2
  %v1785 = vmul.f32 %v1593, 0.2
  %v1786 = vmul.f32 %v1594, 0.2
  %v1787 = vmul.f32 %v1595, 0.2
  %v1788 = vmul.f32 %v1596, 0.2
  %v1789 = vmul.f32 %v1597, 0.2
  %v1790 = vmul.f32 %v1598, 0.2
  %v1791 = vmul.f32 %v1599, 0.2
  %v1792 = vmul.f32 %v1600, 0.2
  %v1793 = vmul.f32 %v1601, 0.2
  %v1794 = vmul.f32 %v1602, 0.2
  %v1795 = vmul.f32 %v1603, 0.2
  %v1796 = vmul.f32 %v1604, 0.2
  %v1797 = vmul.f32 %v1605, 0.2
  %v1798 = vmul.f32 %v1606, 0.2
  %v1799 = vmul.f32 %v1607, 0.2
  %v1800 = vmul.f32 %v1608, 0.2
  %v1801 = vmul.f32 %v1609, 0.2
  %v1802 = vmul.f32 %v1610, 0.2
  %v1803 = vmul.f32 %v1611, 0.2
  %v1804 = vmul.f32 %v1612, 0.2
  %v1805 = vmul.f32 %v1613, 0.2
  %v1806 = vmul.f32 %v1614, 0.2
  %v1807 = vmul.f32 %v1615, 0.2
  %v1808 = vmul.f32 %v1616, 0.2
  %v1809 = vmul.f32 %v1617, 0.2
  %v1810 = vmul.f32 %v1618, 0.2
  %v1811 = vmul.f32 %v1619, 0.2
  %v1812 = vmul.f32 %v1620, 0.2
  %v1813 = vmul.f32 %v1621, 0.2
  %v1814 = vmul.f32 %v1622, 0.2
  %v1815 = vmul.f32 %v1623, 0.2
  %v1816 = vmul.f32 %v1624, 0.2
  %v1817 = vmul.f32 %v1625, 0.2
  %v1818 = vmul.f32 %v1626, 0.2
  %v1819 = vmul.f32 %v1627, 0.2
  %v1820 = vmul.f32 %v1628, 0.2
  %v1821 = vmul.f32 %v1629, 0.2
  %v1822 = vmul.f32 %v1630, 0.2
  %v1823 = vmul.f32 %v1631, 0.2
  %v1824 = vmul.f32 %v1632, 0.2
  %v1825 = vmul.f32 %v1633, 0.2
  %v1826 = vmul.f32 %v1634, 0.2
  %v1827 = vmul.f32 %v1635, 0.2
  %v1828 = vmul.f32 %v1636, 0.2
  %v1829 = vmul.f32 %v1637, 0.2
  %v1830 = vmul.f32 %v1638, 0.2
  %v1831 = vmul.f32 %v1639, 0.2
  %v1832 = vmul.f32 %v1640, 0.2
  %v1833 = vmul.f32 %v1641, 0.2
  %v1834 = vmul.f32 %v1642, 0.2
  %v1835 = vmul.f32 %v1643, 0.2
  %v1836 = vmul.f32 %v1644, 0.2
  %v1837 = vmul.f32 %v1645, 0.2
  %v1838 = vmul.f32 %v1646, 0.2
  %v1839 = vmul.f32 %v1647, 0.2
  %v1840 = vmul.f32 %v1648, 0.2
  %v1841 = vmul.f32 %v1649, 0.2
  %v1842 = vmul.f32 %v1650, 0.2
  %v1843 = vmul.f32 %v1651, 0.2
  %v1844 = vmul.f32 %v1652, 0.2
  %v1845 = vmul.f32 %v1653, 0.2
  %v1846 = vmul.f32 %v1654, 0.2
  %v1847 = vmul.f32 %v1655, 0.2
  %v1848 = vmul.f32 %v1656, 0.2
  %v1849 = vmul.f32 %v1657, 0.2
  %v1850 = vmul.f32 %v1658, 0.2
  %v1851 = vmul.f32 %v1659, 0.2
  %v1852 = vmul.f32 %v1660, 0.2
  %v1853 = vmul.f32 %v1661, 0.2
  %v1854 = vmul.f32 %v1662, 0.2
  %v1855 = vmul.f32 %v1663, 0.2
  %v1856 = vmul.f32 %v1664, 0.2
  %v1857 = vmul.f32 %v1665, 0.2
  %v1858 = vmul.f32 %v1666, 0.2
  %v1859 = vmul.f32 %v1667, 0.2
  %v1860 = vmul.f32 %v1668, 0.2
  %v1861 = vmul.f32 %v1669, 0.2
  %v1862 = vmul.f32 %v1670, 0.2
  %v1863 = vmul.f32 %v1671, 0.2
  %v1864 = vmul.f32 %v1672, 0.2
  %v1865 = vmul.f32 %v1673, 0.2
  %v1866 = vmul.f32 %v1674, 0.2
  %v1867 = vmul.f32 %v1675, 0.2
  %v1868 = vmul.f32 %v1676, 0.2
  %v1869 = vmul.f32 %v1677, 0.2
  %v1870 = vmul.f32 %v1678, 0.2
  %v1871 = vmul.f32 %v1679, 0.2
  %v1872 = vmul.f32 %v1680, 0.2
  %v1873 = vmul.f32 %v1681, 0.2
  %v1874 = vsel %vm1682, %v1586, %v1778
  %v1875 = vsel %vm1683, %v1587, %v1779
  %v1876 = vsel %vm1684, %v1588, %v1780
  %v1877 = vsel %vm1685, %v1589, %v1781
  %v1878 = vsel %vm1686, %v1590, %v1782
  %v1879 = vsel %vm1687, %v1591, %v1783
  %v1880 = vsel %vm1688, %v1592, %v1784
  %v1881 = vsel %vm1689, %v1593, %v1785
  %v1882 = vsel %vm1690, %v1594, %v1786
  %v1883 = vsel %vm1691, %v1595, %v1787
  %v1884 = vsel %vm1692, %v1596, %v1788
  %v1885 = vsel %vm1693, %v1597, %v1789
  %v1886 = vsel %vm1694, %v1598, %v1790
  %v1887 = vsel %vm1695, %v1599, %v1791
  %v1888 = vsel %vm1696, %v1600, %v1792
  %v1889 = vsel %vm1697, %v1601, %v1793
  %v1890 = vsel %vm1698, %v1602, %v1794
  %v1891 = vsel %vm1699, %v1603, %v1795
  %v1892 = vsel %vm1700, %v1604, %v1796
  %v1893 = vsel %vm1701, %v1605, %v1797
  %v1894 = vsel %vm1702, %v1606, %v1798
  %v1895 = vsel %vm1703, %v1607, %v1799
  %v1896 = vsel %vm1704, %v1608, %v1800
  %v1897 = vsel %vm1705, %v1609, %v1801
  %v1898 = vsel %vm1706, %v1610, %v1802
  %v1899 = vsel %vm1707, %v1611, %v1803
  %v1900 = vsel %vm1708, %v1612, %v1804
  %v1901 = vsel %vm1709, %v1613, %v1805
  %v1902 = vsel %vm1710, %v1614, %v1806
  %v1903 = vsel %vm1711, %v1615, %v1807
  %v1904 = vsel %vm1712, %v1616, %v1808
  %v1905 = vsel %vm1713, %v1617, %v1809
  %v1906 = vsel %vm1714, %v1618, %v1810
  %v1907 = vsel %vm1715, %v1619, %v1811
  %v1908 = vsel %vm1716, %v1620, %v1812
  %v1909 = vsel %vm1717, %v1621, %v1813
  %v1910 = vsel %vm1718, %v1622, %v1814
  %v1911 = vsel %vm1719, %v1623, %v1815
  %v1912 = vsel %vm1720, %v1624, %v1816
  %v1913 = vsel %vm1721, %v1625, %v1817
  %v1914 = vsel %vm1722, %v1626, %v1818
  %v1915 = vsel %vm1723, %v1627, %v1819
  %v1916 = vsel %vm1724, %v1628, %v1820
  %v1917 = vsel %vm1725, %v1629, %v1821
  %v1918 = vsel %vm1726, %v1630, %v1822
  %v1919 = vsel %vm1727, %v1631, %v1823
  %v1920 = vsel %vm1728, %v1632, %v1824
  %v1921 = vsel %vm1729, %v1633, %v1825
  %v1922 = vsel %vm1730, %v1634, %v1826
  %v1923 = vsel %vm1731, %v1635, %v1827
  %v1924 = vsel %vm1732, %v1636, %v1828
  %v1925 = vsel %vm1733, %v1637, %v1829
  %v1926 = vsel %vm1734, %v1638, %v1830
  %v1927 = vsel %vm1735, %v1639, %v1831
  %v1928 = vsel %vm1736, %v1640, %v1832
  %v1929 = vsel %vm1737, %v1641, %v1833
  %v1930 = vsel %vm1738, %v1642, %v1834
  %v1931 = vsel %vm1739, %v1643, %v1835
  %v1932 = vsel %vm1740, %v1644, %v1836
  %v1933 = vsel %vm1741, %v1645, %v1837
  %v1934 = vsel %vm1742, %v1646, %v1838
  %v1935 = vsel %vm1743, %v1647, %v1839
  %v1936 = vsel %vm1744, %v1648, %v1840
  %v1937 = vsel %vm1745, %v1649, %v1841
  %v1938 = vsel %vm1746, %v1650, %v1842
  %v1939 = vsel %vm1747, %v1651, %v1843
  %v1940 = vsel %vm1748, %v1652, %v1844
  %v1941 = vsel %vm1749, %v1653, %v1845
  %v1942 = vsel %vm1750, %v1654, %v1846
  %v1943 = vsel %vm1751, %v1655, %v1847
  %v1944 = vsel %vm1752, %v1656, %v1848
  %v1945 = vsel %vm1753, %v1657, %v1849
  %v1946 = vsel %vm1754, %v1658, %v1850
  %v1947 = vsel %vm1755, %v1659, %v1851
  %v1948 = vsel %vm1756, %v1660, %v1852
  %v1949 = vsel %vm1757, %v1661, %v1853
  %v1950 = vsel %vm1758, %v1662, %v1854
  %v1951 = vsel %vm1759, %v1663, %v1855
  %v1952 = vsel %vm1760, %v1664, %v1856
  %v1953 = vsel %vm1761, %v1665, %v1857
  %v1954 = vsel %vm1762, %v1666, %v1858
  %v1955 = vsel %vm1763, %v1667, %v1859
  %v1956 = vsel %vm1764, %v1668, %v1860
  %v1957 = vsel %vm1765, %v1669, %v1861
  %v1958 = vsel %vm1766, %v1670, %v1862
  %v1959 = vsel %vm1767, %v1671, %v1863
  %v1960 = vsel %vm1768, %v1672, %v1864
  %v1961 = vsel %vm1769, %v1673, %v1865
  %v1962 = vsel %vm1770, %v1674, %v1866
  %v1963 = vsel %vm1771, %v1675, %v1867
  %v1964 = vsel %vm1772, %v1676, %v1868
  %v1965 = vsel %vm1773, %v1677, %v1869
  %v1966 = vsel %vm1774, %v1678, %v1870
  %v1967 = vsel %vm1775, %v1679, %v1871
  %v1968 = vsel %vm1776, %v1680, %v1872
  %v1969 = vsel %vm1777, %v1681, %v1873
  %1970 = vst.msk [vmem:[%s4] sm:$0xff] %vm883, %v1874
  %1971 = vst.msk [vmem:[%s4 + $0x8] sm:$0xff] %vm883, %v1875
  %1972 = vst.msk [vmem:[%s4 + $0x10] sm:$0xff] %vm883, %v1876
  %1973 = vst.msk [vmem:[%s4 + $0x18] sm:$0xff] %vm883, %v1877
  %1974 = vst.msk [vmem:[%s4 + $0x20] sm:$0xff] %vm883, %v1878
  %1975 = vst.msk [vmem:[%s4 + $0x28] sm:$0xff] %vm883, %v1879
  %1976 = vst.msk [vmem:[%s4 + $0x30] sm:$0xff] %vm883, %v1880
  %1977 = vst.msk [vmem:[%s4 + $0x38] sm:$0xff] %vm883, %v1881
  %1978 = vst.msk [vmem:[%s4 + $0x40] sm:$0xff] %vm883, %v1882
  %1979 = vst.msk [vmem:[%s4 + $0x48] sm:$0xff] %vm883, %v1883
  %1980 = vst.msk [vmem:[%s4 + $0x50] sm:$0xff] %vm883, %v1884
  %1981 = vst.msk [vmem:[%s4 + $0x58] sm:$0xff] %vm883, %v1885
  %1982 = vst.msk [vmem:[%s4 + $0x60] sm:$0xff] %vm883, %v1886
  %1983 = vst.msk [vmem:[%s4 + $0x68] sm:$0xff] %vm883, %v1887
  %1984 = vst.msk [vmem:[%s4 + $0x70] sm:$0xff] %vm883, %v1888
  %1985 = vst.msk [vmem:[%s4 + $0x78] sm:$0xff] %vm883, %v1889
  %1986 = vst.msk [vmem:[%s4 + $0x80] sm:$0xff] %vm883, %v1890
  %1987 = vst.msk [vmem:[%s4 + $0x88] sm:$0xff] %vm883, %v1891
  %1988 = vst.msk [vmem:[%s4 + $0x90] sm:$0xff] %vm883, %v1892
  %1989 = vst.msk [vmem:[%s4 + $0x98] sm:$0xff] %vm883, %v1893
  %1990 = vst.msk [vmem:[%s4 + $0xa0] sm:$0xff] %vm883, %v1894
  %1991 = vst.msk [vmem:[%s4 + $0xa8] sm:$0xff] %vm883, %v1895
  %1992 = vst.msk [vmem:[%s4 + $0xb0] sm:$0xff] %vm883, %v1896
  %1993 = vst.msk [vmem:[%s4 + $0xb8] sm:$0xff] %vm883, %v1897
  %1994 = vst.msk [vmem:[%s4 + $0xc0] sm:$0xff] %vm883, %v1898
  %1995 = vst.msk [vmem:[%s4 + $0xc8] sm:$0xff] %vm883, %v1899
  %1996 = vst.msk [vmem:[%s4 + $0xd0] sm:$0xff] %vm883, %v1900
  %1997 = vst.msk [vmem:[%s4 + $0xd8] sm:$0xff] %vm883, %v1901
  %1998 = vst.msk [vmem:[%s4 + $0xe0] sm:$0xff] %vm883, %v1902
  %1999 = vst.msk [vmem:[%s4 + $0xe8] sm:$0xff] %vm883, %v1903
  %2000 = vst.msk [vmem:[%s4 + $0xf0] sm:$0xff] %vm883, %v1904
  %2001 = vst.msk [vmem:[%s4 + $0xf8] sm:$0xff] %vm883, %v1905
  %2002 = vst.msk [vmem:[%s4 + $0x100] sm:$0xff] %vm883, %v1906
  %2003 = vst.msk [vmem:[%s4 + $0x108] sm:$0xff] %vm883, %v1907
  %2004 = vst.msk [vmem:[%s4 + $0x110] sm:$0xff] %vm883, %v1908
  %2005 = vst.msk [vmem:[%s4 + $0x118] sm:$0xff] %vm883, %v1909
  %2006 = vst.msk [vmem:[%s4 + $0x120] sm:$0xff] %vm883, %v1910
  %2007 = vst.msk [vmem:[%s4 + $0x128] sm:$0xff] %vm883, %v1911
  %2008 = vst.msk [vmem:[%s4 + $0x130] sm:$0xff] %vm883, %v1912
  %2009 = vst.msk [vmem:[%s4 + $0x138] sm:$0xff] %vm883, %v1913
  %2010 = vst.msk [vmem:[%s4 + $0x140] sm:$0xff] %vm883, %v1914
  %2011 = vst.msk [vmem:[%s4 + $0x148] sm:$0xff] %vm883, %v1915
  %2012 = vst.msk [vmem:[%s4 + $0x150] sm:$0xff] %vm883, %v1916
  %2013 = vst.msk [vmem:[%s4 + $0x158] sm:$0xff] %vm883, %v1917
  %2014 = vst.msk [vmem:[%s4 + $0x160] sm:$0xff] %vm883, %v1918
  %2015 = vst.msk [vmem:[%s4 + $0x168] sm:$0xff] %vm883, %v1919
  %2016 = vst.msk [vmem:[%s4 + $0x170] sm:$0xff] %vm883, %v1920
  %2017 = vst.msk [vmem:[%s4 + $0x178] sm:$0xff] %vm883, %v1921
  %2018 = vst.msk [vmem:[%s4 + $0x180] sm:$0xff] %vm883, %v1922
  %2019 = vst.msk [vmem:[%s4 + $0x188] sm:$0xff] %vm883, %v1923
  %2020 = vst.msk [vmem:[%s4 + $0x190] sm:$0xff] %vm883, %v1924
  %2021 = vst.msk [vmem:[%s4 + $0x198] sm:$0xff] %vm883, %v1925
  %2022 = vst.msk [vmem:[%s4 + $0x1a0] sm:$0xff] %vm883, %v1926
  %2023 = vst.msk [vmem:[%s4 + $0x1a8] sm:$0xff] %vm883, %v1927
  %2024 = vst.msk [vmem:[%s4 + $0x1b0] sm:$0xff] %vm883, %v1928
  %2025 = vst.msk [vmem:[%s4 + $0x1b8] sm:$0xff] %vm883, %v1929
  %2026 = vst.msk [vmem:[%s4 + $0x1c0] sm:$0xff] %vm883, %v1930
  %2027 = vst.msk [vmem:[%s4 + $0x1c8] sm:$0xff] %vm883, %v1931
  %2028 = vst.msk [vmem:[%s4 + $0x1d0] sm:$0xff] %vm883, %v1932
  %2029 = vst.msk [vmem:[%s4 + $0x1d8] sm:$0xff] %vm883, %v1933
  %2030 = vst.msk [vmem:[%s4 + $0x1e0] sm:$0xff] %vm883, %v1934
  %2031 = vst.msk [vmem:[%s4 + $0x1e8] sm:$0xff] %vm883, %v1935
  %2032 = vst.msk [vmem:[%s4 + $0x1f0] sm:$0xff] %vm883, %v1936
  %2033 = vst.msk [vmem:[%s4 + $0x1f8] sm:$0xff] %vm883, %v1937
  %2034 = vst.msk [vmem:[%s4 + $0x200] sm:$0xff] %vm883, %v1938
  %2035 = vst.msk [vmem:[%s4 + $0x208] sm:$0xff] %vm883, %v1939
  %2036 = vst.msk [vmem:[%s4 + $0x210] sm:$0xff] %vm883, %v1940
  %2037 = vst.msk [vmem:[%s4 + $0x218] sm:$0xff] %vm883, %v1941
  %2038 = vst.msk [vmem:[%s4 + $0x220] sm:$0xff] %vm883, %v1942
  %2039 = vst.msk [vmem:[%s4 + $0x228] sm:$0xff] %vm883, %v1943
  %2040 = vst.msk [vmem:[%s4 + $0x230] sm:$0xff] %vm883, %v1944
  %2041 = vst.msk [vmem:[%s4 + $0x238] sm:$0xff] %vm883, %v1945
  %2042 = vst.msk [vmem:[%s4 + $0x240] sm:$0xff] %vm883, %v1946
  %2043 = vst.msk [vmem:[%s4 + $0x248] sm:$0xff] %vm883, %v1947
  %2044 = vst.msk [vmem:[%s4 + $0x250] sm:$0xff] %vm883, %v1948
  %2045 = vst.msk [vmem:[%s4 + $0x258] sm:$0xff] %vm883, %v1949
  %2046 = vst.msk [vmem:[%s4 + $0x260] sm:$0xff] %vm883, %v1950
  %2047 = vst.msk [vmem:[%s4 + $0x268] sm:$0xff] %vm883, %v1951
  %2048 = vst.msk [vmem:[%s4 + $0x270] sm:$0xff] %vm883, %v1952
  %2049 = vst.msk [vmem:[%s4 + $0x278] sm:$0xff] %vm883, %v1953
  %2050 = vst.msk [vmem:[%s4 + $0x280] sm:$0xff] %vm883, %v1954
  %2051 = vst.msk [vmem:[%s4 + $0x288] sm:$0xff] %vm883, %v1955
  %2052 = vst.msk [vmem:[%s4 + $0x290] sm:$0xff] %vm883, %v1956
  %2053 = vst.msk [vmem:[%s4 + $0x298] sm:$0xff] %vm883, %v1957
  %2054 = vst.msk [vmem:[%s4 + $0x2a0] sm:$0xff] %vm883, %v1958
  %2055 = vst.msk [vmem:[%s4 + $0x2a8] sm:$0xff] %vm883, %v1959
  %2056 = vst.msk [vmem:[%s4 + $0x2b0] sm:$0xff] %vm883, %v1960
  %2057 = vst.msk [vmem:[%s4 + $0x2b8] sm:$0xff] %vm883, %v1961
  %2058 = vst.msk [vmem:[%s4 + $0x2c0] sm:$0xff] %vm883, %v1962
  %2059 = vst.msk [vmem:[%s4 + $0x2c8] sm:$0xff] %vm883, %v1963
  %2060 = vst.msk [vmem:[%s4 + $0x2d0] sm:$0xff] %vm883, %v1964
  %2061 = vst.msk [vmem:[%s4 + $0x2d8] sm:$0xff] %vm883, %v1965
  %2062 = vst.msk [vmem:[%s4 + $0x2e0] sm:$0xff] %vm883, %v1966
  %2063 = vst.msk [vmem:[%s4 + $0x2e8] sm:$0xff] %vm883, %v1967
  %2064 = vst.msk [vmem:[%s4 + $0x2f0] sm:$0xff] %vm883, %v1968
  %2065 = vst.msk [vmem:[%s4 + $0x2f8] sm:$0xff] %vm883, %v1969
  // Predicated region
  $region18: #{discriminator_forward.7} parent=0 // pred_check
    _
  $region19: #{discriminator_forward.7} parent=0 // pred_check_branch
    %2067 = sbr.rel (0) target = $region21
  $region20: #{discriminator_forward.7} parent=0 // pred_region
    _
  $region21: #{discriminator_forward.7} parent=0 // pred_fallthru
    _
  // Predicated region
  $region22: #{discriminator_forward.7} parent=0 // pred_check
    _
  $region23: #{discriminator_forward.7} parent=0 // pred_check_branch
    %2069 = sbr.rel (0) target = $region25
  $region24: #{discriminator_forward.7} parent=0 // pred_region
    _
  $region25: #{discriminator_forward.7} parent=0 // pred_fallthru
    _

// kernel: discriminator_forward.8
$region0: #{discriminator_forward.8}
  #allocation0 [shape = 'u32[]', space=smem, size = 0x4, offset = 0x4, fixed_abs, tag = 'smem constant byte address 0x4 - core index']
  #allocation1 [shape = 'u32[144,128]{1,0:T(1,128)}', space=vmem, size = 0x12000, scoped, tag = 'internal scratch']
  %s0 = inlined_call_operand.vmem [shape: bf16[192,256], index: 0, kind: input, shape index: {}]
  %s1 = inlined_call_operand.vmem [shape: bf16[256,32], index: 1, kind: input, shape index: {}]
  %s2 = inlined_call_operand.vmem [shape: f32[1,32], index: 2, kind: input, shape index: {}]
  %s3 = inlined_call_operand.vmem [shape: f32[1,32], index: 3, kind: input, shape index: {}]
  %s4 = inlined_call_operand.vmem [shape: f32[192,32], index: 4, kind: output, shape index: {}]
  %s5 = sld [smem:[#allocation0]]
  $region26: #{discriminator_forward.8} parent=0
    _
  %s7 = ssub.s32 1, %s5
  %s8 = scalar_select 0, %s7, %s5
  // Predicated region
  $region2: #{discriminator_forward.8} parent=0 // pred_check
    _
  $region3: #{discriminator_forward.8} parent=0 // pred_check_branch
    %10 = sbr.rel (0) target = $region5
  $region4: #{discriminator_forward.8} parent=0 // pred_region
    _
  $region5: #{discriminator_forward.8} parent=0 // pred_fallthru
    _
  // Predicated region
  $region6: #{discriminator_forward.8} parent=0 // pred_check
    _
  $region7: #{discriminator_forward.8} parent=0 // pred_check_branch
    %12 = sbr.rel (0) target = $region9
  $region8: #{discriminator_forward.8} parent=0 // pred_region
    _
  $region9: #{discriminator_forward.8} parent=0 // pred_fallthru
    _
  // Predicated region
  $region10: #{discriminator_forward.8} parent=0 // pred_check
    _
  $region11: #{discriminator_forward.8} parent=0 // pred_check_branch
    %14 = sbr.rel (0) target = $region13
  $region12: #{discriminator_forward.8} parent=0 // pred_region
    _
  $region13: #{discriminator_forward.8} parent=0 // pred_fallthru
    _
  // Predicated region
  $region14: #{discriminator_forward.8} parent=0 // pred_check
    _
  $region15: #{discriminator_forward.8} parent=0 // pred_check_branch
    %16 = sbr.rel (0) target = $region17
  $region16: #{discriminator_forward.8} parent=0 // pred_region
    _
  $region17: #{discriminator_forward.8} parent=0 // pred_fallthru
    _
  %v18 = vld [vmem:[%s0] sm:$0xff]
  %v19 = vld [vmem:[%s0 + $0x8] sm:$0xff]
  %v20 = vld [vmem:[%s0 + $0x10] sm:$0xff]
  %v21 = vld [vmem:[%s0 + $0x18] sm:$0xff]
  %v22 = vld [vmem:[%s0 + $0x20] sm:$0xff]
  %v23 = vld [vmem:[%s0 + $0x28] sm:$0xff]
  %v24 = vld [vmem:[%s0 + $0x30] sm:$0xff]
  %v25 = vld [vmem:[%s0 + $0x38] sm:$0xff]
  %v26 = vld [vmem:[%s0 + $0x40] sm:$0xff]
  %v27 = vld [vmem:[%s0 + $0x48] sm:$0xff]
  %v28 = vld [vmem:[%s0 + $0x50] sm:$0xff]
  %v29 = vld [vmem:[%s0 + $0x58] sm:$0xff]
  %v30 = vld [vmem:[%s0 + $0x60] sm:$0xff]
  %v31 = vld [vmem:[%s0 + $0x68] sm:$0xff]
  %v32 = vld [vmem:[%s0 + $0x70] sm:$0xff]
  %v33 = vld [vmem:[%s0 + $0x78] sm:$0xff]
  %v34 = vld [vmem:[%s0 + $0x80] sm:$0xff]
  %v35 = vld [vmem:[%s0 + $0x88] sm:$0xff]
  %v36 = vld [vmem:[%s0 + $0x90] sm:$0xff]
  %v37 = vld [vmem:[%s0 + $0x98] sm:$0xff]
  %v38 = vld [vmem:[%s0 + $0xa0] sm:$0xff]
  %v39 = vld [vmem:[%s0 + $0xa8] sm:$0xff]
  %v40 = vld [vmem:[%s0 + $0xb0] sm:$0xff]
  %v41 = vld [vmem:[%s0 + $0xb8] sm:$0xff]
  %v42 = vld [vmem:[%s1] sm:$0xf]
  %v43 = vld [vmem:[%s1 + $0x4] sm:$0xf]
  %v44 = vld [vmem:[%s1 + $0x8] sm:$0xf]
  %v45 = vld [vmem:[%s1 + $0xc] sm:$0xf]
  %v46 = vld [vmem:[%s1 + $0x10] sm:$0xf]
  %v47 = vld [vmem:[%s1 + $0x14] sm:$0xf]
  %v48 = vld [vmem:[%s1 + $0x18] sm:$0xf]
  %v49 = vld [vmem:[%s1 + $0x1c] sm:$0xf]
  %v50 = vld [vmem:[%s1 + $0x20] sm:$0xf]
  %v51 = vld [vmem:[%s1 + $0x24] sm:$0xf]
  %v52 = vld [vmem:[%s1 + $0x28] sm:$0xf]
  %v53 = vld [vmem:[%s1 + $0x2c] sm:$0xf]
  %v54 = vld [vmem:[%s1 + $0x30] sm:$0xf]
  %v55 = vld [vmem:[%s1 + $0x34] sm:$0xf]
  %v56 = vld [vmem:[%s1 + $0x38] sm:$0xf]
  %v57 = vld [vmem:[%s1 + $0x3c] sm:$0xf]
  %v58 = vld [vmem:[%s1 + $0x40] sm:$0xf]
  %v59 = vld [vmem:[%s1 + $0x44] sm:$0xf]
  %v60 = vld [vmem:[%s1 + $0x48] sm:$0xf]
  %v61 = vld [vmem:[%s1 + $0x4c] sm:$0xf]
  %v62 = vld [vmem:[%s1 + $0x50] sm:$0xf]
  %v63 = vld [vmem:[%s1 + $0x54] sm:$0xf]
  %v64 = vld [vmem:[%s1 + $0x58] sm:$0xf]
  %v65 = vld [vmem:[%s1 + $0x5c] sm:$0xf]
  %v66 = vld [vmem:[%s1 + $0x60] sm:$0xf]
  %v67 = vld [vmem:[%s1 + $0x64] sm:$0xf]
  %v68 = vld [vmem:[%s1 + $0x68] sm:$0xf]
  %v69 = vld [vmem:[%s1 + $0x6c] sm:$0xf]
  %v70 = vld [vmem:[%s1 + $0x70] sm:$0xf]
  %v71 = vld [vmem:[%s1 + $0x74] sm:$0xf]
  %v72 = vld [vmem:[%s1 + $0x78] sm:$0xf]
  %v73 = vld [vmem:[%s1 + $0x7c] sm:$0xf]
  %v98 = vunpack.c.l.b16 %v18
  %v99 = vunpack.c.h.b16 %v18
  %v100 = vunpack.c.l.b16 %v19
  %v101 = vunpack.c.h.b16 %v19
  %v102 = vunpack.c.l.b16 %v20
  %v103 = vunpack.c.h.b16 %v20
  %v104 = vunpack.c.l.b16 %v21
  %v105 = vunpack.c.h.b16 %v21
  %v106 = vunpack.c.l.b16 %v22
  %v107 = vunpack.c.h.b16 %v22
  %v108 = vunpack.c.l.b16 %v23
  %v109 = vunpack.c.h.b16 %v23
  %v110 = vunpack.c.l.b16 %v24
  %v111 = vunpack.c.h.b16 %v24
  %v112 = vunpack.c.l.b16 %v25
  %v113 = vunpack.c.h.b16 %v25
  %v114 = vunpack.c.l.b16 %v26
  %v115 = vunpack.c.h.b16 %v26
  %v116 = vunpack.c.l.b16 %v27
  %v117 = vunpack.c.h.b16 %v27
  %v118 = vunpack.c.l.b16 %v28
  %v119 = vunpack.c.h.b16 %v28
  %v120 = vunpack.c.l.b16 %v29
  %v121 = vunpack.c.h.b16 %v29
  %v122 = vunpack.c.l.b16 %v30
  %v123 = vunpack.c.h.b16 %v30
  %v124 = vunpack.c.l.b16 %v31
  %v125 = vunpack.c.h.b16 %v31
  %v126 = vunpack.c.l.b16 %v32
  %v127 = vunpack.c.h.b16 %v32
  %v128 = vunpack.c.l.b16 %v33
  %v129 = vunpack.c.h.b16 %v33
  %v130 = vunpack.c.l.b16 %v34
  %v131 = vunpack.c.h.b16 %v34
  %v132 = vunpack.c.l.b16 %v35
  %v133 = vunpack.c.h.b16 %v35
  %v134 = vunpack.c.l.b16 %v36
  %v135 = vunpack.c.h.b16 %v36
  %v136 = vunpack.c.l.b16 %v37
  %v137 = vunpack.c.h.b16 %v37
  %v138 = vunpack.c.l.b16 %v38
  %v139 = vunpack.c.h.b16 %v38
  %v140 = vunpack.c.l.b16 %v39
  %v141 = vunpack.c.h.b16 %v39
  %v142 = vunpack.c.l.b16 %v40
  %v143 = vunpack.c.h.b16 %v40
  %v144 = vunpack.c.l.b16 %v41
  %v145 = vunpack.c.h.b16 %v41
  %v146 = vpack.c.b16 %v100, %v98
  %v147 = vpack.c.b16 %v101, %v99
  %v148 = vpack.c.b16 %v104, %v102
  %v149 = vpack.c.b16 %v105, %v103
  %v150 = vpack.c.b16 %v108, %v106
  %v151 = vpack.c.b16 %v109, %v107
  %v152 = vpack.c.b16 %v112, %v110
  %v153 = vpack.c.b16 %v113, %v111
  %v154 = vpack.c.b16 %v116, %v114
  %v155 = vpack.c.b16 %v117, %v115
  %v156 = vpack.c.b16 %v120, %v118
  %v157 = vpack.c.b16 %v121, %v119
  %v158 = vpack.c.b16 %v124, %v122
  %v159 = vpack.c.b16 %v125, %v123
  %v160 = vpack.c.b16 %v128, %v126
  %v161 = vpack.c.b16 %v129, %v127
  %v162 = vpack.c.b16 %v132, %v130
  %v163 = vpack.c.b16 %v133, %v131
  %v164 = vpack.c.b16 %v136, %v134
  %v165 = vpack.c.b16 %v137, %v135
  %v166 = vpack.c.b16 %v140, %v138
  %v167 = vpack.c.b16 %v141, %v139
  %v168 = vpack.c.b16 %v144, %v142
  %v169 = vpack.c.b16 %v145, %v143
  %v226 = vunpack.c.l.b16 %v42
  %v227 = vunpack.c.l.b16 %v43
  %v228 = vunpack.c.l.b16 %v44
  %v229 = vunpack.c.l.b16 %v45
  %v230 = vunpack.c.l.b16 %v46
  %v231 = vunpack.c.l.b16 %v47
  %v232 = vunpack.c.l.b16 %v48
  %v233 = vunpack.c.l.b16 %v49
  %v234 = vunpack.c.l.b16 %v50
  %v235 = vunpack.c.l.b16 %v51
  %v236 = vunpack.c.l.b16 %v52
  %v237 = vunpack.c.l.b16 %v53
  %v238 = vunpack.c.l.b16 %v54
  %v239 = vunpack.c.l.b16 %v55
  %v240 = vunpack.c.l.b16 %v56
  %v241 = vunpack.c.l.b16 %v57
  %v242 = vunpack.c.l.b16 %v58
  %v243 = vunpack.c.l.b16 %v59
  %v244 = vunpack.c.l.b16 %v60
  %v245 = vunpack.c.l.b16 %v61
  %v246 = vunpack.c.l.b16 %v62
  %v247 = vunpack.c.l.b16 %v63
  %v248 = vunpack.c.l.b16 %v64
  %v249 = vunpack.c.l.b16 %v65
  %v250 = vunpack.c.l.b16 %v66
  %v251 = vunpack.c.l.b16 %v67
  %v252 = vunpack.c.l.b16 %v68
  %v253 = vunpack.c.l.b16 %v69
  %v254 = vunpack.c.l.b16 %v70
  %v255 = vunpack.c.l.b16 %v71
  %v256 = vunpack.c.l.b16 %v72
  %v257 = vunpack.c.l.b16 %v73
  %v258 = vpack.c.b16 %v227, %v226
  %v259 = vpack.c.b16 %v229, %v228
  %v260 = vpack.c.b16 %v231, %v230
  %v261 = vpack.c.b16 %v233, %v232
  %v262 = vpack.c.b16 %v235, %v234
  %v263 = vpack.c.b16 %v237, %v236
  %v264 = vpack.c.b16 %v239, %v238
  %v265 = vpack.c.b16 %v241, %v240
  %v266 = vpack.c.b16 %v243, %v242
  %v267 = vpack.c.b16 %v245, %v244
  %v268 = vpack.c.b16 %v247, %v246
  %v269 = vpack.c.b16 %v249, %v248
  %v270 = vpack.c.b16 %v251, %v250
  %v271 = vpack.c.b16 %v253, %v252
  %v272 = vpack.c.b16 %v255, %v254
  %v273 = vpack.c.b16 %v257, %v256
  %290 = vmatprep.subr.bf16.mxu0 0
  %291 = vmatpush1.bf16.msra.mxu0 %v258
  %292 = vmatprep.subr.bf16.mxu0 0
  %293 = vmatpush1.bf16.msra.mxu0 %v259
  %294 = vmatprep.subr.bf16.mxu0 0
  %295 = vmatpush1.bf16.msra.mxu0 %v260
  %296 = vmatprep.subr.bf16.mxu0 0
  %297 = vmatpush1.bf16.msra.mxu0 %v261
  %298 = vmatprep.subr.bf16.mxu0 0
  %299 = vmatpush1.bf16.msra.mxu0 %v262
  %300 = vmatprep.subr.bf16.mxu0 0
  %301 = vmatpush1.bf16.msra.mxu0 %v263
  %302 = vmatprep.subr.bf16.mxu0 0
  %303 = vmatpush1.bf16.msra.mxu0 %v264
  %304 = vmatprep.subr.bf16.mxu0 0
  %305 = vmatpush1.bf16.msra.mxu0 %v265
  %306 = vmatprep.subr.bf16.mxu0 0
  %307 = vmatpush1.bf16.msra.mxu0 %v266
  %308 = vmatprep.subr.bf16.mxu0 0
  %309 = vmatpush1.bf16.msra.mxu0 %v267
  %310 = vmatprep.subr.bf16.mxu0 0
  %311 = vmatpush1.bf16.msra.mxu0 %v268
  %312 = vmatprep.subr.bf16.mxu0 0
  %313 = vmatpush1.bf16.msra.mxu0 %v269
  %314 = vmatprep.subr.bf16.mxu0 0
  %315 = vmatpush1.bf16.msra.mxu0 %v270
  %316 = vmatprep.subr.bf16.mxu0 0
  %317 = vmatpush1.bf16.msra.mxu0 %v271
  %318 = vmatprep.subr.bf16.mxu0 0
  %319 = vmatpush1.bf16.msra.mxu0 %v272
  %320 = vmatprep.subr.bf16.mxu0 0
  %321 = vmatpush1.bf16.msra.mxu0 %v273
  %322 = vmatprep.mubr.bf16.mxu0 %v147
  %323 = vmatmul.mubr.bf16.gmra.mrb[0].mxu0 %v146
  %v324 = vpop.f32.mrb[0].mxu0
  %v325 = vadd.f32 0.0, %v324
  %v326 = vpop.f32.mrb[0].mxu0
  %v327 = vpop.f32.mrb[0].mxu0
  %v328 = vadd.f32 0.0, %v327
  %v329 = vpop.f32.mrb[0].mxu0
  %330 = vmatprep.mubr.bf16.mxu0 %v149
  %331 = vmatmul.mubr.bf16.gmra.mrb[0].mxu0 %v148
  %v332 = vpop.f32.mrb[0].mxu0
  %v333 = vadd.f32 0.0, %v332
  %v334 = vpop.f32.mrb[0].mxu0
  %v335 = vpop.f32.mrb[0].mxu0
  %v336 = vadd.f32 0.0, %v335
  %v337 = vpop.f32.mrb[0].mxu0
  %338 = vmatprep.mubr.bf16.mxu0 %v151
  %339 = vmatmul.mubr.bf16.gmra.mrb[0].mxu0 %v150
  %v340 = vpop.f32.mrb[0].mxu0
  %v341 = vadd.f32 0.0, %v340
  %v342 = vpop.f32.mrb[0].mxu0
  %v343 = vpop.f32.mrb[0].mxu0
  %v344 = vadd.f32 0.0, %v343
  %v345 = vpop.f32.mrb[0].mxu0
  %346 = vmatprep.mubr.bf16.mxu0 %v153
  %347 = vmatmul.mubr.bf16.gmra.mrb[0].mxu0 %v152
  %v348 = vpop.f32.mrb[0].mxu0
  %v349 = vadd.f32 0.0, %v348
  %v350 = vpop.f32.mrb[0].mxu0
  %v351 = vpop.f32.mrb[0].mxu0
  %v352 = vadd.f32 0.0, %v351
  %v353 = vpop.f32.mrb[0].mxu0
  %354 = vmatprep.mubr.bf16.mxu0 %v155
  %355 = vmatmul.mubr.bf16.gmra.mrb[0].mxu0 %v154
  %v356 = vpop.f32.mrb[0].mxu0
  %v357 = vadd.f32 0.0, %v356
  %v358 = vpop.f32.mrb[0].mxu0
  %v359 = vpop.f32.mrb[0].mxu0
  %v360 = vadd.f32 0.0, %v359
  %v361 = vpop.f32.mrb[0].mxu0
  %362 = vmatprep.mubr.bf16.mxu0 %v157
  %363 = vmatmul.mubr.bf16.gmra.mrb[0].mxu0 %v156
  %v364 = vpop.f32.mrb[0].mxu0
  %v365 = vadd.f32 0.0, %v364
  %v366 = vpop.f32.mrb[0].mxu0
  %v367 = vpop.f32.mrb[0].mxu0
  %v368 = vadd.f32 0.0, %v367
  %v369 = vpop.f32.mrb[0].mxu0
  %370 = vmatprep.mubr.bf16.mxu0 %v159
  %371 = vmatmul.mubr.bf16.gmra.mrb[0].mxu0 %v158
  %v372 = vpop.f32.mrb[0].mxu0
  %v373 = vadd.f32 0.0, %v372
  %v374 = vpop.f32.mrb[0].mxu0
  %v375 = vpop.f32.mrb[0].mxu0
  %v376 = vadd.f32 0.0, %v375
  %v377 = vpop.f32.mrb[0].mxu0
  %378 = vmatprep.mubr.bf16.mxu0 %v161
  %379 = vmatmul.mubr.bf16.gmra.mrb[0].mxu0 %v160
  %v380 = vpop.f32.mrb[0].mxu0
  %v381 = vadd.f32 0.0, %v380
  %v382 = vpop.f32.mrb[0].mxu0
  %v383 = vpop.f32.mrb[0].mxu0
  %v384 = vadd.f32 0.0, %v383
  %v385 = vpop.f32.mrb[0].mxu0
  %386 = vmatprep.mubr.bf16.mxu0 %v163
  %387 = vmatmul.mubr.bf16.gmra.mrb[0].mxu0 %v162
  %v388 = vpop.f32.mrb[0].mxu0
  %v389 = vadd.f32 0.0, %v388
  %v390 = vpop.f32.mrb[0].mxu0
  %v391 = vpop.f32.mrb[0].mxu0
  %v392 = vadd.f32 0.0, %v391
  %v393 = vpop.f32.mrb[0].mxu0
  %394 = vmatprep.mubr.bf16.mxu0 %v165
  %395 = vmatmul.mubr.bf16.gmra.mrb[0].mxu0 %v164
  %v396 = vpop.f32.mrb[0].mxu0
  %v397 = vadd.f32 0.0, %v396
  %v398 = vpop.f32.mrb[0].mxu0
  %v399 = vpop.f32.mrb[0].mxu0
  %v400 = vadd.f32 0.0, %v399
  %v401 = vpop.f32.mrb[0].mxu0
  %402 = vmatprep.mubr.bf16.mxu0 %v167
  %403 = vmatmul.mubr.bf16.gmra.mrb[0].mxu0 %v166
  %v404 = vpop.f32.mrb[0].mxu0
  %v405 = vadd.f32 0.0, %v404
  %v406 = vpop.f32.mrb[0].mxu0
  %v407 = vpop.f32.mrb[0].mxu0
  %v408 = vadd.f32 0.0, %v407
  %v409 = vpop.f32.mrb[0].mxu0
  %410 = vmatprep.mubr.bf16.mxu0 %v169
  %411 = vmatmul.mubr.bf16.gmra.mrb[0].mxu0 %v168
  %v412 = vpop.f32.mrb[0].mxu0
  %v413 = vadd.f32 0.0, %v412
  %v414 = vpop.f32.mrb[0].mxu0
  %v415 = vpop.f32.mrb[0].mxu0
  %v416 = vadd.f32 0.0, %v415
  %v417 = vpop.f32.mrb[0].mxu0
  %418 = vdwg.mxu0
  %vm419 = vcmask 261120
  %v420 = vsel %vm419, %v325, 0.0
  %v421 = vsel %vm419, %v328, 0.0
  %v422 = vadd.f32 %v420, %v421
  %v423 = vsel %vm419, %v333, 0.0
  %v424 = vadd.f32 %v422, %v423
  %v425 = vsel %vm419, %v336, 0.0
  %v426 = vadd.f32 %v424, %v425
  %v427 = vsel %vm419, %v341, 0.0
  %v428 = vadd.f32 %v426, %v427
  %v429 = vsel %vm419, %v344, 0.0
  %v430 = vadd.f32 %v428, %v429
  %v431 = vsel %vm419, %v349, 0.0
  %v432 = vadd.f32 %v430, %v431
  %v433 = vsel %vm419, %v352, 0.0
  %v434 = vadd.f32 %v432, %v433
  %v435 = vsel %vm419, %v357, 0.0
  %v436 = vadd.f32 %v434, %v435
  %v437 = vsel %vm419, %v360, 0.0
  %v438 = vadd.f32 %v436, %v437
  %v439 = vsel %vm419, %v365, 0.0
  %v440 = vadd.f32 %v438, %v439
  %v441 = vsel %vm419, %v368, 0.0
  %v442 = vadd.f32 %v440, %v441
  %v443 = vsel %vm419, %v373, 0.0
  %v444 = vadd.f32 %v442, %v443
  %v445 = vsel %vm419, %v376, 0.0
  %v446 = vadd.f32 %v444, %v445
  %v447 = vsel %vm419, %v381, 0.0
  %v448 = vadd.f32 %v446, %v447
  %v449 = vsel %vm419, %v384, 0.0
  %v450 = vadd.f32 %v448, %v449
  %v451 = vsel %vm419, %v389, 0.0
  %v452 = vadd.f32 %v450, %v451
  %v453 = vsel %vm419, %v392, 0.0
  %v454 = vadd.f32 %v452, %v453
  %v455 = vsel %vm419, %v397, 0.0
  %v456 = vadd.f32 %v454, %v455
  %v457 = vsel %vm419, %v400, 0.0
  %v458 = vadd.f32 %v456, %v457
  %v459 = vsel %vm419, %v405, 0.0
  %v460 = vadd.f32 %v458, %v459
  %v461 = vsel %vm419, %v408, 0.0
  %v462 = vadd.f32 %v460, %v461
  %v463 = vsel %vm419, %v413, 0.0
  %v464 = vadd.f32 %v462, %v463
  %v465 = vsel %vm419, %v416, 0.0
  %v466 = vadd.f32 %v464, %v465
  %v467 = vrot.slane %v466, 4
  %v468 = vadd.f32 %v466, %v467
  %v469 = vrot.slane %v468, 2
  %v470 = vadd.f32 %v468, %v469
  %v471 = vrot.slane %v470, 1
  %v472 = vadd.f32 %v470, %v471
  %v473 = vrcp.pop 192.0
  %v474 = vmul.f32 %v472, %v473
  %v475 = vsub.f32 %v325, %v474
  %v476 = vsub.f32 %v328, %v474
  %v477 = vsub.f32 %v333, %v474
  %v478 = vsub.f32 %v336, %v474
  %v479 = vsub.f32 %v341, %v474
  %v480 = vsub.f32 %v344, %v474
  %v481 = vsub.f32 %v349, %v474
  %v482 = vsub.f32 %v352, %v474
  %v483 = vsub.f32 %v357, %v474
  %v484 = vsub.f32 %v360, %v474
  %v485 = vsub.f32 %v365, %v474
  %v486 = vsub.f32 %v368, %v474
  %v487 = vsub.f32 %v373, %v474
  %v488 = vsub.f32 %v376, %v474
  %v489 = vsub.f32 %v381, %v474
  %v490 = vsub.f32 %v384, %v474
  %v491 = vsub.f32 %v389, %v474
  %v492 = vsub.f32 %v392, %v474
  %v493 = vsub.f32 %v397, %v474
  %v494 = vsub.f32 %v400, %v474
  %v495 = vsub.f32 %v405, %v474
  %v496 = vsub.f32 %v408, %v474
  %v497 = vsub.f32 %v413, %v474
  %v498 = vsub.f32 %v416, %v474
  %v499 = vmul.f32 %v475, %v475
  %v500 = vmul.f32 %v476, %v476
  %v501 = vmul.f32 %v477, %v477
  %v502 = vmul.f32 %v478, %v478
  %v503 = vmul.f32 %v479, %v479
  %v504 = vmul.f32 %v480, %v480
  %v505 = vmul.f32 %v481, %v481
  %v506 = vmul.f32 %v482, %v482
  %v507 = vmul.f32 %v483, %v483
  %v508 = vmul.f32 %v484, %v484
  %v509 = vmul.f32 %v485, %v485
  %v510 = vmul.f32 %v486, %v486
  %v511 = vmul.f32 %v487, %v487
  %v512 = vmul.f32 %v488, %v488
  %v513 = vmul.f32 %v489, %v489
  %v514 = vmul.f32 %v490, %v490
  %v515 = vmul.f32 %v491, %v491
  %v516 = vmul.f32 %v492, %v492
  %v517 = vmul.f32 %v493, %v493
  %v518 = vmul.f32 %v494, %v494
  %v519 = vmul.f32 %v495, %v495
  %v520 = vmul.f32 %v496, %v496
  %v521 = vmul.f32 %v497, %v497
  %v522 = vmul.f32 %v498, %v498
  %v523 = vsel %vm419, %v499, 0.0
  %v524 = vsel %vm419, %v500, 0.0
  %v525 = vadd.f32 %v523, %v524
  %v526 = vsel %vm419, %v501, 0.0
  %v527 = vadd.f32 %v525, %v526
  %v528 = vsel %vm419, %v502, 0.0
  %v529 = vadd.f32 %v527, %v528
  %v530 = vsel %vm419, %v503, 0.0
  %v531 = vadd.f32 %v529, %v530
  %v532 = vsel %vm419, %v504, 0.0
  %v533 = vadd.f32 %v531, %v532
  %v534 = vsel %vm419, %v505, 0.0
  %v535 = vadd.f32 %v533, %v534
  %v536 = vsel %vm419, %v506, 0.0
  %v537 = vadd.f32 %v535, %v536
  %v538 = vsel %vm419, %v507, 0.0
  %v539 = vadd.f32 %v537, %v538
  %v540 = vsel %vm419, %v508, 0.0
  %v541 = vadd.f32 %v539, %v540
  %v542 = vsel %vm419, %v509, 0.0
  %v543 = vadd.f32 %v541, %v542
  %v544 = vsel %vm419, %v510, 0.0
  %v545 = vadd.f32 %v543, %v544
  %v546 = vsel %vm419, %v511, 0.0
  %v547 = vadd.f32 %v545, %v546
  %v548 = vsel %vm419, %v512, 0.0
  %v549 = vadd.f32 %v547, %v548
  %v550 = vsel %vm419, %v513, 0.0
  %v551 = vadd.f32 %v549, %v550
  %v552 = vsel %vm419, %v514, 0.0
  %v553 = vadd.f32 %v551, %v552
  %v554 = vsel %vm419, %v515, 0.0
  %v555 = vadd.f32 %v553, %v554
  %v556 = vsel %vm419, %v516, 0.0
  %v557 = vadd.f32 %v555, %v556
  %v558 = vsel %vm419, %v517, 0.0
  %v559 = vadd.f32 %v557, %v558
  %v560 = vsel %vm419, %v518, 0.0
  %v561 = vadd.f32 %v559, %v560
  %v562 = vsel %vm419, %v519, 0.0
  %v563 = vadd.f32 %v561, %v562
  %v564 = vsel %vm419, %v520, 0.0
  %v565 = vadd.f32 %v563, %v564
  %v566 = vsel %vm419, %v521, 0.0
  %v567 = vadd.f32 %v565, %v566
  %v568 = vsel %vm419, %v522, 0.0
  %v569 = vadd.f32 %v567, %v568
  %v570 = vrot.slane %v569, 4
  %v571 = vadd.f32 %v569, %v570
  %v572 = vrot.slane %v571, 2
  %v573 = vadd.f32 %v571, %v572
  %v574 = vrot.slane %v573, 1
  %v575 = vadd.f32 %v573, %v574
  %v576 = vmul.f32 %v575, %v473
  %v577 = vld [vmem:[%s2] sm:$0x1]
  %v578 = vadd.f32 %v576, 1e-05
  %v579 = vrsqrt.pop %v578
  %v580 = vmul.f32 %v577, %v579
  %v582 = vlaneseq
  %v583 = vshrl.u32 %v582, 7
  %v584 = vsub.s32 0, %v583
  %v585 = vrot.slane %v580, %v584
  %v587 = vmul.f32 %v475, %v585
  %v588 = vmul.f32 %v476, %v585
  %v589 = vmul.f32 %v477, %v585
  %v590 = vmul.f32 %v478, %v585
  %v591 = vmul.f32 %v479, %v585
  %v592 = vmul.f32 %v480, %v585
  %v593 = vmul.f32 %v481, %v585
  %v594 = vmul.f32 %v482, %v585
  %v595 = vmul.f32 %v483, %v585
  %v596 = vmul.f32 %v484, %v585
  %v597 = vmul.f32 %v485, %v585
  %v598 = vmul.f32 %v486, %v585
  %v599 = vmul.f32 %v487, %v585
  %v600 = vmul.f32 %v488, %v585
  %v601 = vmul.f32 %v489, %v585
  %v602 = vmul.f32 %v490, %v585
  %v603 = vmul.f32 %v491, %v585
  %v604 = vmul.f32 %v492, %v585
  %v605 = vmul.f32 %v493, %v585
  %v606 = vmul.f32 %v494, %v585
  %v607 = vmul.f32 %v495, %v585
  %v608 = vmul.f32 %v496, %v585
  %v609 = vmul.f32 %v497, %v585
  %v610 = vmul.f32 %v498, %v585
  %v611 = vld [vmem:[%s3] sm:$0x1]
  %v613 = vlaneseq
  %v614 = vshrl.u32 %v613, 7
  %v615 = vsub.s32 0, %v614
  %v616 = vrot.slane %v611, %v615
  %v618 = vadd.f32 %v587, %v616
  %v619 = vadd.f32 %v588, %v616
  %v620 = vadd.f32 %v589, %v616
  %v621 = vadd.f32 %v590, %v616
  %v622 = vadd.f32 %v591, %v616
  %v623 = vadd.f32 %v592, %v616
  %v624 = vadd.f32 %v593, %v616
  %v625 = vadd.f32 %v594, %v616
  %v626 = vadd.f32 %v595, %v616
  %v627 = vadd.f32 %v596, %v616
  %v628 = vadd.f32 %v597, %v616
  %v629 = vadd.f32 %v598, %v616
  %v630 = vadd.f32 %v599, %v616
  %v631 = vadd.f32 %v600, %v616
  %v632 = vadd.f32 %v601, %v616
  %v633 = vadd.f32 %v602, %v616
  %v634 = vadd.f32 %v603, %v616
  %v635 = vadd.f32 %v604, %v616
  %v636 = vadd.f32 %v605, %v616
  %v637 = vadd.f32 %v606, %v616
  %v638 = vadd.f32 %v607, %v616
  %v639 = vadd.f32 %v608, %v616
  %v640 = vadd.f32 %v609, %v616
  %v641 = vadd.f32 %v610, %v616
  %vm642 = vcmp.ge.f32.partialorder %v618, 0.0
  %vm643 = vcmp.ge.f32.partialorder %v619, 0.0
  %vm644 = vcmp.ge.f32.partialorder %v620, 0.0
  %vm645 = vcmp.ge.f32.partialorder %v621, 0.0
  %vm646 = vcmp.ge.f32.partialorder %v622, 0.0
  %vm647 = vcmp.ge.f32.partialorder %v623, 0.0
  %vm648 = vcmp.ge.f32.partialorder %v624, 0.0
  %vm649 = vcmp.ge.f32.partialorder %v625, 0.0
  %vm650 = vcmp.ge.f32.partialorder %v626, 0.0
  %vm651 = vcmp.ge.f32.partialorder %v627, 0.0
  %vm652 = vcmp.ge.f32.partialorder %v628, 0.0
  %vm653 = vcmp.ge.f32.partialorder %v629, 0.0
  %vm654 = vcmp.ge.f32.partialorder %v630, 0.0
  %vm655 = vcmp.ge.f32.partialorder %v631, 0.0
  %vm656 = vcmp.ge.f32.partialorder %v632, 0.0
  %vm657 = vcmp.ge.f32.partialorder %v633, 0.0
  %vm658 = vcmp.ge.f32.partialorder %v634, 0.0
  %vm659 = vcmp.ge.f32.partialorder %v635, 0.0
  %vm660 = vcmp.ge.f32.partialorder %v636, 0.0
  %vm661 = vcmp.ge.f32.partialorder %v637, 0.0
  %vm662 = vcmp.ge.f32.partialorder %v638, 0.0
  %vm663 = vcmp.ge.f32.partialorder %v639, 0.0
  %vm664 = vcmp.ge.f32.partialorder %v640, 0.0
  %vm665 = vcmp.ge.f32.partialorder %v641, 0.0
  %v666 = vmul.f32 %v618, 0.2
  %v667 = vmul.f32 %v619, 0.2
  %v668 = vmul.f32 %v620, 0.2
  %v669 = vmul.f32 %v621, 0.2
  %v670 = vmul.f32 %v622, 0.2
  %v671 = vmul.f32 %v623, 0.2
  %v672 = vmul.f32 %v624, 0.2
  %v673 = vmul.f32 %v625, 0.2
  %v674 = vmul.f32 %v626, 0.2
  %v675 = vmul.f32 %v627, 0.2
  %v676 = vmul.f32 %v628, 0.2
  %v677 = vmul.f32 %v629, 0.2
  %v678 = vmul.f32 %v630, 0.2
  %v679 = vmul.f32 %v631, 0.2
  %v680 = vmul.f32 %v632, 0.2
  %v681 = vmul.f32 %v633, 0.2
  %v682 = vmul.f32 %v634, 0.2
  %v683 = vmul.f32 %v635, 0.2
  %v684 = vmul.f32 %v636, 0.2
  %v685 = vmul.f32 %v637, 0.2
  %v686 = vmul.f32 %v638, 0.2
  %v687 = vmul.f32 %v639, 0.2
  %v688 = vmul.f32 %v640, 0.2
  %v689 = vmul.f32 %v641, 0.2
  %v690 = vsel %vm642, %v618, %v666
  %v691 = vsel %vm643, %v619, %v667
  %v692 = vsel %vm644, %v620, %v668
  %v693 = vsel %vm645, %v621, %v669
  %v694 = vsel %vm646, %v622, %v670
  %v695 = vsel %vm647, %v623, %v671
  %v696 = vsel %vm648, %v624, %v672
  %v697 = vsel %vm649, %v625, %v673
  %v698 = vsel %vm650, %v626, %v674
  %v699 = vsel %vm651, %v627, %v675
  %v700 = vsel %vm652, %v628, %v676
  %v701 = vsel %vm653, %v629, %v677
  %v702 = vsel %vm654, %v630, %v678
  %v703 = vsel %vm655, %v631, %v679
  %v704 = vsel %vm656, %v632, %v680
  %v705 = vsel %vm657, %v633, %v681
  %v706 = vsel %vm658, %v634, %v682
  %v707 = vsel %vm659, %v635, %v683
  %v708 = vsel %vm660, %v636, %v684
  %v709 = vsel %vm661, %v637, %v685
  %v710 = vsel %vm662, %v638, %v686
  %v711 = vsel %vm663, %v639, %v687
  %v712 = vsel %vm664, %v640, %v688
  %v713 = vsel %vm665, %v641, %v689
  %714 = vst.msk [vmem:[%s4] sm:$0xff] %vm419, %v690
  %715 = vst.msk [vmem:[%s4 + $0x8] sm:$0xff] %vm419, %v691
  %716 = vst.msk [vmem:[%s4 + $0x10] sm:$0xff] %vm419, %v692
  %717 = vst.msk [vmem:[%s4 + $0x18] sm:$0xff] %vm419, %v693
  %718 = vst.msk [vmem:[%s4 + $0x20] sm:$0xff] %vm419, %v694
  %719 = vst.msk [vmem:[%s4 + $0x28] sm:$0xff] %vm419, %v695
  %720 = vst.msk [vmem:[%s4 + $0x30] sm:$0xff] %vm419, %v696
  %721 = vst.msk [vmem:[%s4 + $0x38] sm:$0xff] %vm419, %v697
  %722 = vst.msk [vmem:[%s4 + $0x40] sm:$0xff] %vm419, %v698
  %723 = vst.msk [vmem:[%s4 + $0x48] sm:$0xff] %vm419, %v699
  %724 = vst.msk [vmem:[%s4 + $0x50] sm:$0xff] %vm419, %v700
  %725 = vst.msk [vmem:[%s4 + $0x58] sm:$0xff] %vm419, %v701
  %726 = vst.msk [vmem:[%s4 + $0x60] sm:$0xff] %vm419, %v702
  %727 = vst.msk [vmem:[%s4 + $0x68] sm:$0xff] %vm419, %v703
  %728 = vst.msk [vmem:[%s4 + $0x70] sm:$0xff] %vm419, %v704
  %729 = vst.msk [vmem:[%s4 + $0x78] sm:$0xff] %vm419, %v705
  %730 = vst.msk [vmem:[%s4 + $0x80] sm:$0xff] %vm419, %v706
  %731 = vst.msk [vmem:[%s4 + $0x88] sm:$0xff] %vm419, %v707
  %732 = vst.msk [vmem:[%s4 + $0x90] sm:$0xff] %vm419, %v708
  %733 = vst.msk [vmem:[%s4 + $0x98] sm:$0xff] %vm419, %v709
  %734 = vst.msk [vmem:[%s4 + $0xa0] sm:$0xff] %vm419, %v710
  %735 = vst.msk [vmem:[%s4 + $0xa8] sm:$0xff] %vm419, %v711
  %736 = vst.msk [vmem:[%s4 + $0xb0] sm:$0xff] %vm419, %v712
  %737 = vst.msk [vmem:[%s4 + $0xb8] sm:$0xff] %vm419, %v713
  // Predicated region
  $region18: #{discriminator_forward.8} parent=0 // pred_check
    _
  $region19: #{discriminator_forward.8} parent=0 // pred_check_branch
    %739 = sbr.rel (0) target = $region21
  $region20: #{discriminator_forward.8} parent=0 // pred_region
    _
  $region21: #{discriminator_forward.8} parent=0 // pred_fallthru
    _
  // Predicated region
  $region22: #{discriminator_forward.8} parent=0 // pred_check
    _
  $region23: #{discriminator_forward.8} parent=0 // pred_check_branch
    %741 = sbr.rel (0) target = $region25
  $region24: #{discriminator_forward.8} parent=0 // pred_region
    _
  $region25: #{discriminator_forward.8} parent=0 // pred_fallthru
    _

// kernel: discriminator_forward.9
$region0: #{discriminator_forward.9}
  #allocation0 [shape = 'u32[]', space=smem, size = 0x4, offset = 0x4, fixed_abs, tag = 'smem constant byte address 0x4 - core index']
  #allocation1 [shape = 'u32[144,128]{1,0:T(1,128)}', space=vmem, size = 0x12000, scoped, tag = 'internal scratch']
  %s0 = inlined_call_operand.vmem [shape: bf16[48,512], index: 0, kind: input, shape index: {}]
  %s1 = inlined_call_operand.vmem [shape: bf16[512,64], index: 1, kind: input, shape index: {}]
  %s2 = inlined_call_operand.vmem [shape: f32[48,64], index: 2, kind: output, shape index: {}]
  %s3 = sld [smem:[#allocation0]]
  $region18: #{discriminator_forward.9} parent=0
    _
  %s5 = ssub.s32 1, %s3
  %s6 = scalar_select 0, %s5, %s3
  // Predicated region
  $region2: #{discriminator_forward.9} parent=0 // pred_check
    _
  $region3: #{discriminator_forward.9} parent=0 // pred_check_branch
    %8 = sbr.rel (0) target = $region5
  $region4: #{discriminator_forward.9} parent=0 // pred_region
    _
  $region5: #{discriminator_forward.9} parent=0 // pred_fallthru
    _
  // Predicated region
  $region6: #{discriminator_forward.9} parent=0 // pred_check
    _
  $region7: #{discriminator_forward.9} parent=0 // pred_check_branch
    %10 = sbr.rel (0) target = $region9
  $region8: #{discriminator_forward.9} parent=0 // pred_region
    _
  $region9: #{discriminator_forward.9} parent=0 // pred_fallthru
    _
  %v12 = vld [vmem:[%s0] sm:$0xff]
  %v13 = vld [vmem:[%s0 + $0x8] sm:$0xff]
  %v14 = vld [vmem:[%s0 + $0x10] sm:$0xff]
  %v15 = vld [vmem:[%s0 + $0x18] sm:$0xff]
  %v16 = vld [vmem:[%s0 + $0x20] sm:$0xff]
  %v17 = vld [vmem:[%s0 + $0x28] sm:$0xff]
  %v18 = vld [vmem:[%s0 + $0x30] sm:$0xff]
  %v19 = vld [vmem:[%s0 + $0x38] sm:$0xff]
  %v20 = vld [vmem:[%s0 + $0x40] sm:$0xff]
  %v21 = vld [vmem:[%s0 + $0x48] sm:$0xff]
  %v22 = vld [vmem:[%s0 + $0x50] sm:$0xff]
  %v23 = vld [vmem:[%s0 + $0x58] sm:$0xff]
  %v24 = vld [vmem:[%s1] sm:$0xf]
  %v25 = vld [vmem:[%s1 + $0x4] sm:$0xf]
  %v26 = vld [vmem:[%s1 + $0x8] sm:$0xf]
  %v27 = vld [vmem:[%s1 + $0xc] sm:$0xf]
  %v28 = vld [vmem:[%s1 + $0x10] sm:$0xf]
  %v29 = vld [vmem:[%s1 + $0x14] sm:$0xf]
  %v30 = vld [vmem:[%s1 + $0x18] sm:$0xf]
  %v31 = vld [vmem:[%s1 + $0x1c] sm:$0xf]
  %v32 = vld [vmem:[%s1 + $0x20] sm:$0xf]
  %v33 = vld [vmem:[%s1 + $0x24] sm:$0xf]
  %v34 = vld [vmem:[%s1 + $0x28] sm:$0xf]
  %v35 = vld [vmem:[%s1 + $0x2c] sm:$0xf]
  %v36 = vld [vmem:[%s1 + $0x30] sm:$0xf]
  %v37 = vld [vmem:[%s1 + $0x34] sm:$0xf]
  %v38 = vld [vmem:[%s1 + $0x38] sm:$0xf]
  %v39 = vld [vmem:[%s1 + $0x3c] sm:$0xf]
  %v40 = vld [vmem:[%s1 + $0x40] sm:$0xf]
  %v41 = vld [vmem:[%s1 + $0x44] sm:$0xf]
  %v42 = vld [vmem:[%s1 + $0x48] sm:$0xf]
  %v43 = vld [vmem:[%s1 + $0x4c] sm:$0xf]
  %v44 = vld [vmem:[%s1 + $0x50] sm:$0xf]
  %v45 = vld [vmem:[%s1 + $0x54] sm:$0xf]
  %v46 = vld [vmem:[%s1 + $0x58] sm:$0xf]
  %v47 = vld [vmem:[%s1 + $0x5c] sm:$0xf]
  %v48 = vld [vmem:[%s1 + $0x60] sm:$0xf]
  %v49 = vld [vmem:[%s1 + $0x64] sm:$0xf]
  %v50 = vld [vmem:[%s1 + $0x68] sm:$0xf]
  %v51 = vld [vmem:[%s1 + $0x6c] sm:$0xf]
  %v52 = vld [vmem:[%s1 + $0x70] sm:$0xf]
  %v53 = vld [vmem:[%s1 + $0x74] sm:$0xf]
  %v54 = vld [vmem:[%s1 + $0x78] sm:$0xf]
  %v55 = vld [vmem:[%s1 + $0x7c] sm:$0xf]
  %v56 = vld [vmem:[%s1 + $0x80] sm:$0xf]
  %v57 = vld [vmem:[%s1 + $0x84] sm:$0xf]
  %v58 = vld [vmem:[%s1 + $0x88] sm:$0xf]
  %v59 = vld [vmem:[%s1 + $0x8c] sm:$0xf]
  %v60 = vld [vmem:[%s1 + $0x90] sm:$0xf]
  %v61 = vld [vmem:[%s1 + $0x94] sm:$0xf]
  %v62 = vld [vmem:[%s1 + $0x98] sm:$0xf]
  %v63 = vld [vmem:[%s1 + $0x9c] sm:$0xf]
  %v64 = vld [vmem:[%s1 + $0xa0] sm:$0xf]
  %v65 = vld [vmem:[%s1 + $0xa4] sm:$0xf]
  %v66 = vld [vmem:[%s1 + $0xa8] sm:$0xf]
  %v67 = vld [vmem:[%s1 + $0xac] sm:$0xf]
  %v68 = vld [vmem:[%s1 + $0xb0] sm:$0xf]
  %v69 = vld [vmem:[%s1 + $0xb4] sm:$0xf]
  %v70 = vld [vmem:[%s1 + $0xb8] sm:$0xf]
  %v71 = vld [vmem:[%s1 + $0xbc] sm:$0xf]
  %v72 = vld [vmem:[%s1 + $0xc0] sm:$0xf]
  %v73 = vld [vmem:[%s1 + $0xc4] sm:$0xf]
  %v74 = vld [vmem:[%s1 + $0xc8] sm:$0xf]
  %v75 = vld [vmem:[%s1 + $0xcc] sm:$0xf]
  %v76 = vld [vmem:[%s1 + $0xd0] sm:$0xf]
  %v77 = vld [vmem:[%s1 + $0xd4] sm:$0xf]
  %v78 = vld [vmem:[%s1 + $0xd8] sm:$0xf]
  %v79 = vld [vmem:[%s1 + $0xdc] sm:$0xf]
  %v80 = vld [vmem:[%s1 + $0xe0] sm:$0xf]
  %v81 = vld [vmem:[%s1 + $0xe4] sm:$0xf]
  %v82 = vld [vmem:[%s1 + $0xe8] sm:$0xf]
  %v83 = vld [vmem:[%s1 + $0xec] sm:$0xf]
  %v84 = vld [vmem:[%s1 + $0xf0] sm:$0xf]
  %v85 = vld [vmem:[%s1 + $0xf4] sm:$0xf]
  %v86 = vld [vmem:[%s1 + $0xf8] sm:$0xf]
  %v87 = vld [vmem:[%s1 + $0xfc] sm:$0xf]
  %v100 = vunpack.c.l.b16 %v12
  %v101 = vunpack.c.h.b16 %v12
  %v102 = vunpack.c.l.b16 %v13
  %v103 = vunpack.c.h.b16 %v13
  %v104 = vunpack.c.l.b16 %v14
  %v105 = vunpack.c.h.b16 %v14
  %v106 = vunpack.c.l.b16 %v15
  %v107 = vunpack.c.h.b16 %v15
  %v108 = vunpack.c.l.b16 %v16
  %v109 = vunpack.c.h.b16 %v16
  %v110 = vunpack.c.l.b16 %v17
  %v111 = vunpack.c.h.b16 %v17
  %v112 = vunpack.c.l.b16 %v18
  %v113 = vunpack.c.h.b16 %v18
  %v114 = vunpack.c.l.b16 %v19
  %v115 = vunpack.c.h.b16 %v19
  %v116 = vunpack.c.l.b16 %v20
  %v117 = vunpack.c.h.b16 %v20
  %v118 = vunpack.c.l.b16 %v21
  %v119 = vunpack.c.h.b16 %v21
  %v120 = vunpack.c.l.b16 %v22
  %v121 = vunpack.c.h.b16 %v22
  %v122 = vunpack.c.l.b16 %v23
  %v123 = vunpack.c.h.b16 %v23
  %v124 = vpack.c.b16 %v104, %v100
  %v125 = vpack.c.b16 %v105, %v101
  %v126 = vpack.c.b16 %v106, %v102
  %v127 = vpack.c.b16 %v107, %v103
  %v128 = vpack.c.b16 %v112, %v108
  %v129 = vpack.c.b16 %v113, %v109
  %v130 = vpack.c.b16 %v114, %v110
  %v131 = vpack.c.b16 %v115, %v111
  %v132 = vpack.c.b16 %v120, %v116
  %v133 = vpack.c.b16 %v121, %v117
  %v134 = vpack.c.b16 %v122, %v118
  %v135 = vpack.c.b16 %v123, %v119
  %v212 = vunpack.c.l.b16 %v24
  %v213 = vunpack.c.l.b16 %v25
  %v214 = vunpack.c.l.b16 %v26
  %v215 = vunpack.c.l.b16 %v27
  %v216 = vunpack.c.l.b16 %v28
  %v217 = vunpack.c.l.b16 %v29
  %v218 = vunpack.c.l.b16 %v30
  %v219 = vunpack.c.l.b16 %v31
  %v220 = vunpack.c.l.b16 %v32
  %v221 = vunpack.c.l.b16 %v33
  %v222 = vunpack.c.l.b16 %v34
  %v223 = vunpack.c.l.b16 %v35
  %v224 = vunpack.c.l.b16 %v36
  %v225 = vunpack.c.l.b16 %v37
  %v226 = vunpack.c.l.b16 %v38
  %v227 = vunpack.c.l.b16 %v39
  %v228 = vunpack.c.l.b16 %v40
  %v229 = vunpack.c.l.b16 %v41
  %v230 = vunpack.c.l.b16 %v42
  %v231 = vunpack.c.l.b16 %v43
  %v232 = vunpack.c.l.b16 %v44
  %v233 = vunpack.c.l.b16 %v45
  %v234 = vunpack.c.l.b16 %v46
  %v235 = vunpack.c.l.b16 %v47
  %v236 = vunpack.c.l.b16 %v48
  %v237 = vunpack.c.l.b16 %v49
  %v238 = vunpack.c.l.b16 %v50
  %v239 = vunpack.c.l.b16 %v51
  %v240 = vunpack.c.l.b16 %v52
  %v241 = vunpack.c.l.b16 %v53
  %v242 = vunpack.c.l.b16 %v54
  %v243 = vunpack.c.l.b16 %v55
  %v244 = vunpack.c.l.b16 %v56
  %v245 = vunpack.c.l.b16 %v57
  %v246 = vunpack.c.l.b16 %v58
  %v247 = vunpack.c.l.b16 %v59
  %v248 = vunpack.c.l.b16 %v60
  %v249 = vunpack.c.l.b16 %v61
  %v250 = vunpack.c.l.b16 %v62
  %v251 = vunpack.c.l.b16 %v63
  %v252 = vunpack.c.l.b16 %v64
  %v253 = vunpack.c.l.b16 %v65
  %v254 = vunpack.c.l.b16 %v66
  %v255 = vunpack.c.l.b16 %v67
  %v256 = vunpack.c.l.b16 %v68
  %v257 = vunpack.c.l.b16 %v69
  %v258 = vunpack.c.l.b16 %v70
  %v259 = vunpack.c.l.b16 %v71
  %v260 = vunpack.c.l.b16 %v72
  %v261 = vunpack.c.l.b16 %v73
  %v262 = vunpack.c.l.b16 %v74
  %v263 = vunpack.c.l.b16 %v75
  %v264 = vunpack.c.l.b16 %v76
  %v265 = vunpack.c.l.b16 %v77
  %v266 = vunpack.c.l.b16 %v78
  %v267 = vunpack.c.l.b16 %v79
  %v268 = vunpack.c.l.b16 %v80
  %v269 = vunpack.c.l.b16 %v81
  %v270 = vunpack.c.l.b16 %v82
  %v271 = vunpack.c.l.b16 %v83
  %v272 = vunpack.c.l.b16 %v84
  %v273 = vunpack.c.l.b16 %v85
  %v274 = vunpack.c.l.b16 %v86
  %v275 = vunpack.c.l.b16 %v87
  %v276 = vpack.c.b16 %v213, %v212
  %v277 = vpack.c.b16 %v215, %v214
  %v278 = vpack.c.b16 %v217, %v216
  %v279 = vpack.c.b16 %v219, %v218
  %v280 = vpack.c.b16 %v221, %v220
  %v281 = vpack.c.b16 %v223, %v222
  %v282 = vpack.c.b16 %v225, %v224
  %v283 = vpack.c.b16 %v227, %v226
  %v284 = vpack.c.b16 %v229, %v228
  %v285 = vpack.c.b16 %v231, %v230
  %v286 = vpack.c.b16 %v233, %v232
  %v287 = vpack.c.b16 %v235, %v234
  %v288 = vpack.c.b16 %v237, %v236
  %v289 = vpack.c.b16 %v239, %v238
  %v290 = vpack.c.b16 %v241, %v240
  %v291 = vpack.c.b16 %v243, %v242
  %v292 = vpack.c.b16 %v245, %v244
  %v293 = vpack.c.b16 %v247, %v246
  %v294 = vpack.c.b16 %v249, %v248
  %v295 = vpack.c.b16 %v251, %v250
  %v296 = vpack.c.b16 %v253, %v252
  %v297 = vpack.c.b16 %v255, %v254
  %v298 = vpack.c.b16 %v257, %v256
  %v299 = vpack.c.b16 %v259, %v258
  %v300 = vpack.c.b16 %v261, %v260
  %v301 = vpack.c.b16 %v263, %v262
  %v302 = vpack.c.b16 %v265, %v264
  %v303 = vpack.c.b16 %v267, %v266
  %v304 = vpack.c.b16 %v269, %v268
  %v305 = vpack.c.b16 %v271, %v270
  %v306 = vpack.c.b16 %v273, %v272
  %v307 = vpack.c.b16 %v275, %v274
  %340 = vmatprep.subr.bf16.mxu0 0
  %341 = vmatpush1.bf16.msra.mxu0 %v276
  %342 = vmatprep.subr.bf16.mxu0 0
  %343 = vmatpush1.bf16.msra.mxu0 %v277
  %344 = vmatprep.subr.bf16.mxu0 0
  %345 = vmatpush1.bf16.msra.mxu0 %v278
  %346 = vmatprep.subr.bf16.mxu0 0
  %347 = vmatpush1.bf16.msra.mxu0 %v279
  %348 = vmatprep.subr.bf16.mxu0 0
  %349 = vmatpush1.bf16.msra.mxu0 %v280
  %350 = vmatprep.subr.bf16.mxu0 0
  %351 = vmatpush1.bf16.msra.mxu0 %v281
  %352 = vmatprep.subr.bf16.mxu0 0
  %353 = vmatpush1.bf16.msra.mxu0 %v282
  %354 = vmatprep.subr.bf16.mxu0 0
  %355 = vmatpush1.bf16.msra.mxu0 %v283
  %356 = vmatprep.subr.bf16.mxu0 0
  %357 = vmatpush1.bf16.msra.mxu0 %v284
  %358 = vmatprep.subr.bf16.mxu0 0
  %359 = vmatpush1.bf16.msra.mxu0 %v285
  %360 = vmatprep.subr.bf16.mxu0 0
  %361 = vmatpush1.bf16.msra.mxu0 %v286
  %362 = vmatprep.subr.bf16.mxu0 0
  %363 = vmatpush1.bf16.msra.mxu0 %v287
  %364 = vmatprep.subr.bf16.mxu0 0
  %365 = vmatpush1.bf16.msra.mxu0 %v288
  %366 = vmatprep.subr.bf16.mxu0 0
  %367 = vmatpush1.bf16.msra.mxu0 %v289
  %368 = vmatprep.subr.bf16.mxu0 0
  %369 = vmatpush1.bf16.msra.mxu0 %v290
  %370 = vmatprep.subr.bf16.mxu0 0
  %371 = vmatpush1.bf16.msra.mxu0 %v291
  %372 = vmatprep.mubr.bf16.mxu0 %v125
  %373 = vmatmul.mubr.bf16.gmra.mrb[0].mxu0 %v124
  %v374 = vpop.f32.mrb[0].mxu0
  %v375 = vadd.f32 0.0, %v374
  %v376 = vpop.f32.mrb[0].mxu0
  %v377 = vpop.f32.mrb[0].mxu0
  %v378 = vadd.f32 0.0, %v377
  %v379 = vpop.f32.mrb[0].mxu0
  %380 = vmatprep.mubr.bf16.mxu0 %v129
  %381 = vmatmul.mubr.bf16.gmra.mrb[0].mxu0 %v128
  %v382 = vpop.f32.mrb[0].mxu0
  %v383 = vadd.f32 0.0, %v382
  %v384 = vpop.f32.mrb[0].mxu0
  %v385 = vpop.f32.mrb[0].mxu0
  %v386 = vadd.f32 0.0, %v385
  %v387 = vpop.f32.mrb[0].mxu0
  %388 = vmatprep.mubr.bf16.mxu0 %v133
  %389 = vmatmul.mubr.bf16.gmra.mrb[0].mxu0 %v132
  %v390 = vpop.f32.mrb[0].mxu0
  %v391 = vadd.f32 0.0, %v390
  %v392 = vpop.f32.mrb[0].mxu0
  %v393 = vpop.f32.mrb[0].mxu0
  %v394 = vadd.f32 0.0, %v393
  %v395 = vpop.f32.mrb[0].mxu0
  %396 = vdwg.mxu0
  %397 = vmatprep.subr.bf16.mxu0 0
  %398 = vmatpush1.bf16.msra.mxu0 %v292
  %399 = vmatprep.subr.bf16.mxu0 0
  %400 = vmatpush1.bf16.msra.mxu0 %v293
  %401 = vmatprep.subr.bf16.mxu0 0
  %402 = vmatpush1.bf16.msra.mxu0 %v294
  %403 = vmatprep.subr.bf16.mxu0 0
  %404 = vmatpush1.bf16.msra.mxu0 %v295
  %405 = vmatprep.subr.bf16.mxu0 0
  %406 = vmatpush1.bf16.msra.mxu0 %v296
  %407 = vmatprep.subr.bf16.mxu0 0
  %408 = vmatpush1.bf16.msra.mxu0 %v297
  %409 = vmatprep.subr.bf16.mxu0 0
  %410 = vmatpush1.bf16.msra.mxu0 %v298
  %411 = vmatprep.subr.bf16.mxu0 0
  %412 = vmatpush1.bf16.msra.mxu0 %v299
  %413 = vmatprep.subr.bf16.mxu0 0
  %414 = vmatpush1.bf16.msra.mxu0 %v300
  %415 = vmatprep.subr.bf16.mxu0 0
  %416 = vmatpush1.bf16.msra.mxu0 %v301
  %417 = vmatprep.subr.bf16.mxu0 0
  %418 = vmatpush1.bf16.msra.mxu0 %v302
  %419 = vmatprep.subr.bf16.mxu0 0
  %420 = vmatpush1.bf16.msra.mxu0 %v303
  %421 = vmatprep.subr.bf16.mxu0 0
  %422 = vmatpush1.bf16.msra.mxu0 %v304
  %423 = vmatprep.subr.bf16.mxu0 0
  %424 = vmatpush1.bf16.msra.mxu0 %v305
  %425 = vmatprep.subr.bf16.mxu0 0
  %426 = vmatpush1.bf16.msra.mxu0 %v306
  %427 = vmatprep.subr.bf16.mxu0 0
  %428 = vmatpush1.bf16.msra.mxu0 %v307
  %429 = vmatprep.mubr.bf16.mxu0 %v127
  %430 = vmatmul.mubr.bf16.gmra.mrb[0].mxu0 %v126
  %v431 = vpop.f32.mrb[0].mxu0
  %v432 = vadd.f32 %v375, %v431
  %v433 = vpop.f32.mrb[0].mxu0
  %v434 = vpop.f32.mrb[0].mxu0
  %v435 = vadd.f32 %v378, %v434
  %v436 = vpop.f32.mrb[0].mxu0
  %437 = vmatprep.mubr.bf16.mxu0 %v131
  %438 = vmatmul.mubr.bf16.gmra.mrb[0].mxu0 %v130
  %v439 = vpop.f32.mrb[0].mxu0
  %v440 = vadd.f32 %v383, %v439
  %v441 = vpop.f32.mrb[0].mxu0
  %v442 = vpop.f32.mrb[0].mxu0
  %v443 = vadd.f32 %v386, %v442
  %v444 = vpop.f32.mrb[0].mxu0
  %445 = vmatprep.mubr.bf16.mxu0 %v135
  %446 = vmatmul.mubr.bf16.gmra.mrb[0].mxu0 %v134
  %v447 = vpop.f32.mrb[0].mxu0
  %v448 = vadd.f32 %v391, %v447
  %v449 = vpop.f32.mrb[0].mxu0
  %v450 = vpop.f32.mrb[0].mxu0
  %v451 = vadd.f32 %v394, %v450
  %v452 = vpop.f32.mrb[0].mxu0
  %453 = vdwg.mxu0
  %vm454 = vcmp.ge.f32.partialorder %v432, 0.0
  %vm455 = vcmp.ge.f32.partialorder %v435, 0.0
  %vm456 = vcmp.ge.f32.partialorder %v440, 0.0
  %vm457 = vcmp.ge.f32.partialorder %v443, 0.0
  %vm458 = vcmp.ge.f32.partialorder %v448, 0.0
  %vm459 = vcmp.ge.f32.partialorder %v451, 0.0
  %v460 = vmul.f32 %v432, 0.01
  %v461 = vmul.f32 %v435, 0.01
  %v462 = vmul.f32 %v440, 0.01
  %v463 = vmul.f32 %v443, 0.01
  %v464 = vmul.f32 %v448, 0.01
  %v465 = vmul.f32 %v451, 0.01
  %v466 = vsel %vm454, %v432, %v460
  %v467 = vsel %vm455, %v435, %v461
  %v468 = vsel %vm456, %v440, %v462
  %v469 = vsel %vm457, %v443, %v463
  %v470 = vsel %vm458, %v448, %v464
  %v471 = vsel %vm459, %v451, %v465
  %vm472 = vcmask 523264
  %473 = vst.msk [vmem:[%s2] sm:$0xff] %vm472, %v466
  %474 = vst.msk [vmem:[%s2 + $0x8] sm:$0xff] %vm472, %v467
  %475 = vst.msk [vmem:[%s2 + $0x10] sm:$0xff] %vm472, %v468
  %476 = vst.msk [vmem:[%s2 + $0x18] sm:$0xff] %vm472, %v469
  %477 = vst.msk [vmem:[%s2 + $0x20] sm:$0xff] %vm472, %v470
  %478 = vst.msk [vmem:[%s2 + $0x28] sm:$0xff] %vm472, %v471
  // Predicated region
  $region10: #{discriminator_forward.9} parent=0 // pred_check
    _
  $region11: #{discriminator_forward.9} parent=0 // pred_check_branch
    %480 = sbr.rel (0) target = $region13
  $region12: #{discriminator_forward.9} parent=0 // pred_region
    _
  $region13: #{discriminator_forward.9} parent=0 // pred_fallthru
    _
  // Predicated region
  $region14: #{discriminator_forward.9} parent=0 // pred_check
    _
  $region15: #{discriminator_forward.9} parent=0 // pred_check_branch
    %482 = sbr.rel (0) target = $region17
  $region16: #{discriminator_forward.9} parent=0 // pred_region
    _
  $region17: #{discriminator_forward.9} parent=0 // pred_fallthru
    _

// kernel: discriminator_forward.10
$region0: #{discriminator_forward.10}
  #allocation0 [shape = 'u32[]', space=smem, size = 0x4, offset = 0x4, fixed_abs, tag = 'smem constant byte address 0x4 - core index']
  #allocation1 [shape = 'u32[144,128]{1,0:T(1,128)}', space=vmem, size = 0x12000, scoped, tag = 'internal scratch']
  %s0 = inlined_call_operand.vmem [shape: f32[6,1024], index: 0, kind: input, shape index: {}]
  %s1 = inlined_call_operand.vmem [shape: f32[1,1024], index: 1, kind: input, shape index: {}]
  %s2 = inlined_call_operand.vmem [shape: f32[6,1], index: 2, kind: output, shape index: {}]
  %s3 = sld [smem:[#allocation0]]
  $region18: #{discriminator_forward.10} parent=0
    _
  %s5 = ssub.s32 1, %s3
  %s6 = scalar_select 0, %s5, %s3
  // Predicated region
  $region2: #{discriminator_forward.10} parent=0 // pred_check
    _
  $region3: #{discriminator_forward.10} parent=0 // pred_check_branch
    %8 = sbr.rel (0) target = $region5
  $region4: #{discriminator_forward.10} parent=0 // pred_region
    _
  $region5: #{discriminator_forward.10} parent=0 // pred_fallthru
    _
  // Predicated region
  $region6: #{discriminator_forward.10} parent=0 // pred_check
    _
  $region7: #{discriminator_forward.10} parent=0 // pred_check_branch
    %10 = sbr.rel (0) target = $region9
  $region8: #{discriminator_forward.10} parent=0 // pred_region
    _
  $region9: #{discriminator_forward.10} parent=0 // pred_fallthru
    _
  %v11 = vld [vmem:[%s0] sm:$0x3f]
  %v12 = vld [vmem:[%s0 + $0x8] sm:$0x3f]
  %v13 = vld [vmem:[%s0 + $0x10] sm:$0x3f]
  %v14 = vld [vmem:[%s0 + $0x18] sm:$0x3f]
  %v15 = vld [vmem:[%s0 + $0x20] sm:$0x3f]
  %v16 = vld [vmem:[%s0 + $0x28] sm:$0x3f]
  %v17 = vld [vmem:[%s0 + $0x30] sm:$0x3f]
  %v18 = vld [vmem:[%s0 + $0x38] sm:$0x3f]
  %v19 = vld [vmem:[%s1] sm:$0xff]
  %v21 = vlaneseq
  %v22 = vshrl.u32 %v21, 7
  %v23 = vsub.s32 0, %v22
  %v24 = vrot.slane %v19, %v23
  %v25 = vlaneseq
  %v26 = vshrl.u32 %v25, 7
  %v27 = vsub.s32 1, %v26
  %v28 = vrot.slane %v19, %v27
  %v29 = vlaneseq
  %v30 = vshrl.u32 %v29, 7
  %v31 = vsub.s32 2, %v30
  %v32 = vrot.slane %v19, %v31
  %v33 = vlaneseq
  %v34 = vshrl.u32 %v33, 7
  %v35 = vsub.s32 3, %v34
  %v36 = vrot.slane %v19, %v35
  %v37 = vlaneseq
  %v38 = vshrl.u32 %v37, 7
  %v39 = vsub.s32 4, %v38
  %v40 = vrot.slane %v19, %v39
  %v41 = vlaneseq
  %v42 = vshrl.u32 %v41, 7
  %v43 = vsub.s32 5, %v42
  %v44 = vrot.slane %v19, %v43
  %v45 = vlaneseq
  %v46 = vshrl.u32 %v45, 7
  %v47 = vsub.s32 6, %v46
  %v48 = vrot.slane %v19, %v47
  %v49 = vlaneseq
  %v50 = vshrl.u32 %v49, 7
  %v51 = vsub.s32 7, %v50
  %v52 = vrot.slane %v19, %v51
  %v61 = vmul.f32 %v11, %v24
  %v62 = vmul.f32 %v12, %v28
  %v63 = vmul.f32 %v13, %v32
  %v64 = vmul.f32 %v14, %v36
  %v65 = vmul.f32 %v15, %v40
  %v66 = vmul.f32 %v16, %v44
  %v67 = vmul.f32 %v17, %v48
  %v68 = vmul.f32 %v18, %v52
  %vm69 = vcmask 1045504
  %v70 = vsel %vm69, %v61, 0.0
  %v71 = vsel %vm69, %v62, 0.0
  %v72 = vadd.f32 %v70, %v71
  %v73 = vsel %vm69, %v63, 0.0
  %v74 = vadd.f32 %v72, %v73
  %v75 = vsel %vm69, %v64, 0.0
  %v76 = vadd.f32 %v74, %v75
  %v77 = vsel %vm69, %v65, 0.0
  %v78 = vadd.f32 %v76, %v77
  %v79 = vsel %vm69, %v66, 0.0
  %v80 = vadd.f32 %v78, %v79
  %v81 = vsel %vm69, %v67, 0.0
  %v82 = vadd.f32 %v80, %v81
  %v83 = vsel %vm69, %v68, 0.0
  %v84 = vadd.f32 %v82, %v83
  %85 = vadd.xlane.f32.xlu0 %v84
  %v86 = vpop.xlane.xlu0 %85
  %vm87 = vcmp.ge.f32.partialorder %v86, 0.0
  %v88 = vmul.f32 %v86, 0.01
  %v89 = vsel %vm87, %v86, %v88
  %vm90 = vcmask 5120
  %91 = vst.msk [vmem:[%s2] sm:$0x3f] %vm90, %v89
  // Predicated region
  $region10: #{discriminator_forward.10} parent=0 // pred_check
    _
  $region11: #{discriminator_forward.10} parent=0 // pred_check_branch
    %93 = sbr.rel (0) target = $region13
  $region12: #{discriminator_forward.10} parent=0 // pred_region
    _
  $region13: #{discriminator_forward.10} parent=0 // pred_fallthru
    _
  // Predicated region
  $region14: #{discriminator_forward.10} parent=0 // pred_check
    _
  $region15: #{discriminator_forward.10} parent=0 // pred_check_branch
    %95 = sbr.rel (0) target = $region17
  $region16: #{discriminator_forward.10} parent=0 // pred_region
    _
  $region17: #{discriminator_forward.10} parent=0 // pred_fallthru
    _

// kernel: discriminator_forward.11
$region0: #{discriminator_forward.11}
  #allocation0 [shape = 'u32[]', space=smem, size = 0x4, offset = 0x4, fixed_abs, tag = 'smem constant byte address 0x4 - core index']
  #allocation1 [shape = 'u32[144,128]{1,0:T(1,128)}', space=vmem, size = 0x12000, scoped, tag = 'internal scratch']
  %s0 = inlined_call_operand.vmem [shape: f32[2,3], index: 0, kind: input, shape index: {}]
  %s1 = inlined_call_operand.vmem [shape: f32[1,3], index: 1, kind: input, shape index: {}]
  %s2 = inlined_call_operand.vmem [shape: f32[2,1], index: 2, kind: output, shape index: {}]
  %s3 = sld [smem:[#allocation0]]
  $region18: #{discriminator_forward.11} parent=0
    _
  %s5 = ssub.s32 1, %s3
  %s6 = scalar_select 0, %s5, %s3
  // Predicated region
  $region2: #{discriminator_forward.11} parent=0 // pred_check
    _
  $region3: #{discriminator_forward.11} parent=0 // pred_check_branch
    %8 = sbr.rel (0) target = $region5
  $region4: #{discriminator_forward.11} parent=0 // pred_region
    _
  $region5: #{discriminator_forward.11} parent=0 // pred_fallthru
    _
  // Predicated region
  $region6: #{discriminator_forward.11} parent=0 // pred_check
    _
  $region7: #{discriminator_forward.11} parent=0 // pred_check_branch
    %10 = sbr.rel (0) target = $region9
  $region8: #{discriminator_forward.11} parent=0 // pred_region
    _
  $region9: #{discriminator_forward.11} parent=0 // pred_fallthru
    _
  %v11 = vld [vmem:[%s0] sm:$0x3]
  %v12 = vld [vmem:[%s1] sm:$0x1]
  %v14 = vlaneseq
  %v15 = vshrl.u32 %v14, 7
  %v16 = vsub.s32 0, %v15
  %v17 = vrot.slane %v12, %v16
  %v19 = vmul.f32 %v11, %v17
  %vm20 = vcmask 17408
  %v21 = vsel %vm20, %v19, 0.0
  %22 = vadd.xlane.f32.xlu0 %v21
  %v23 = vpop.xlane.xlu0 %22
  %v24 = vxor.u32 %v23, 2147483648
  %v25 = vmul.f32 %v24, 1.442695
  %v26 = vpow.pop %v25
  %v27 = vadd.f32 %v26, 1.0
  %v28 = vrcp.pop %v27
  %v29 = vmul.f32 1.0, %v28
  %vm30 = vcmask 1024
  %31 = vst.msk [vmem:[%s2] sm:$0x3] %vm30, %v29
  // Predicated region
  $region10: #{discriminator_forward.11} parent=0 // pred_check
    _
  $region11: #{discriminator_forward.11} parent=0 // pred_check_branch
    %33 = sbr.rel (0) target = $region13
  $region12: #{discriminator_forward.11} parent=0 // pred_region
    _
  $region13: #{discriminator_forward.11} parent=0 // pred_fallthru
    _
  // Predicated region
  $region14: #{discriminator_forward.11} parent=0 // pred_check
    _
  $region15: #{discriminator_forward.11} parent=0 // pred_check_branch
    %35 = sbr.rel (0) target = $region17
  $region16: #{discriminator_forward.11} parent=0 // pred_region
    _
  $region17: #{discriminator_forward.11} parent=0 // pred_fallthru
    _

</llo_original>
